<compile_context>
chip_gen: v7x
topology: tpu7x:2x2x1
jax: 0.10.0
libtpu: 0.0.40
codegen_flags: <defaults>
</compile_context>

<pallas_src>
import functools

import jax
import jax.numpy as jnp
from jax.experimental import pallas as pl
from jax.experimental.pallas import tpu as pltpu


def _derive_vmem_limit():
    """~75% of physical VMEM (capped at 100 MiB).  v5e/v6e (128 MiB) -> ~96 MiB of
    big-tile headroom; v7x (64 MiB per TensorCore) -> ~48 MiB.  Falls back to a
    conservative 32 MiB if the hardware query is unavailable at import time."""
    try:
        cap = getattr(pltpu.get_tpu_info(), "vmem_capacity_bytes", None)
        if cap:
            return int(min(cap * 3 // 4, 100 * 1024 * 1024))
    except Exception:
        pass
    return 32 * 1024 * 1024


VMEM_LIMIT = _derive_vmem_limit()


def _tile(dim, pref, align):
    """Largest tile <= pref that is a multiple of `align` and divides `dim`,
    or the full dim when that is impossible (full-dim blocks are always legal)."""
    if dim <= pref:
        return dim
    if dim % align != 0:
        return dim
    t = (pref // align) * align
    while t > 0 and dim % t != 0:
        t -= align
    return t if t > 0 else dim


# ----------------------------------------------------------------------------
# Fused feed-forward: out = relu(x @ w1 + b1) @ w2 + b2   (hidden stays in VMEM)
# ----------------------------------------------------------------------------
def _ffn_kernel(x_ref, w1_ref, b1_ref, w2_ref, b2_ref, o_ref, acc_ref):
    h = pl.program_id(1)

    @pl.when(h == 0)
    def _():
        acc_ref[...] = jnp.zeros_like(acc_ref)

    hid = jnp.dot(x_ref[...], w1_ref[...], preferred_element_type=jnp.float32)
    hid = jnp.maximum(hid + b1_ref[...].astype(jnp.float32), 0.0)
    acc_ref[...] += jnp.dot(hid.astype(x_ref.dtype), w2_ref[...],
                            preferred_element_type=jnp.float32)

    @pl.when(h == pl.num_programs(1) - 1)
    def _():
        o_ref[...] = (acc_ref[...] + b2_ref[...].astype(jnp.float32)).astype(o_ref.dtype)


def ffn(x2d, p, *, tm=512, th=512):
    M, D = x2d.shape
    Hd = p["w1"].shape[1]
    tm = _tile(M, tm, 8)
    th = _tile(Hd, th, 128)
    return pl.pallas_call(
        _ffn_kernel,
        out_shape=jax.ShapeDtypeStruct((M, D), x2d.dtype),
        grid=(M // tm, Hd // th),
        in_specs=[
            pl.BlockSpec((tm, D), lambda i, h: (i, 0)),
            pl.BlockSpec((D, th), lambda i, h: (0, h)),
            pl.BlockSpec((1, th), lambda i, h: (0, h)),
            pl.BlockSpec((th, D), lambda i, h: (h, 0)),
            pl.BlockSpec((1, D), lambda i, h: (0, 0)),
        ],
        out_specs=pl.BlockSpec((tm, D), lambda i, h: (i, 0)),
        scratch_shapes=[pltpu.VMEM((tm, D), jnp.float32)],
        compiler_params=pltpu.CompilerParams(
            dimension_semantics=("parallel", "arbitrary"),
            vmem_limit_bytes=VMEM_LIMIT),
    )(x2d, p["w1"], p["b1"], p["w2"], p["b2"])


# ----------------------------------------------------------------------------
# Fully fused multi-head attention block:
#   projections (QKV or Q + packed KV) + all heads + softmax + output projection,
#   one batch element per grid step, nothing but the final (Sq, D) block hits HBM.
# ----------------------------------------------------------------------------
def _fused_attn_kernel(*refs, heads, dim, self_attn, has_bias):
    it = iter(refs)
    x_ref = next(it)
    if self_attn:
        wqkv_ref, bqkv_ref = next(it), next(it)
    else:
        kv_ref, wq_ref, bq_ref, wkv_ref, bkv_ref = (next(it) for _ in range(5))
    wo_ref, bo_ref = next(it), next(it)
    bias_ref = next(it) if has_bias else None
    o_ref = next(it)

    x = x_ref[...]                                          # (Sq, D) bf16
    if self_attn:
        # Fused QKV projection: the (Sq, 3D) intermediate never touches HBM.
        qkv = (jnp.dot(x, wqkv_ref[...], preferred_element_type=jnp.float32)
               + bqkv_ref[...].astype(jnp.float32)).astype(x.dtype)
        q = qkv[:, 0 * dim:1 * dim]                         # 1/sqrt(dh) pre-folded into Wq
        k = qkv[:, 1 * dim:2 * dim]
        v = qkv[:, 2 * dim:3 * dim]
    else:
        q = (jnp.dot(x, wq_ref[...], preferred_element_type=jnp.float32)
             + bq_ref[...].astype(jnp.float32)).astype(x.dtype)
        src = kv_ref[...]                                   # (Sk, D) keys/values source
        kv = (jnp.dot(src, wkv_ref[...], preferred_element_type=jnp.float32)
              + bkv_ref[...].astype(jnp.float32)).astype(x.dtype)
        k = kv[:, 0 * dim:1 * dim]
        v = kv[:, 1 * dim:2 * dim]

    bias = bias_ref[...] if has_bias else None              # (1|Sq, Sk) f32 additive
    wo = wo_ref[...]                                        # (D, D) resident in VMEM
    dh = dim // heads
    sq = x.shape[0]

    # Per-head results are folded straight into the output projection:
    #   concat(heads) @ Wo == sum_h o_h @ Wo[h*dh:(h+1)*dh, :]
    # so no concatenate relayout is needed and the only value carried across heads
    # is a single (Sq, D) f32 accumulator (per-head score/prob buffers die at once).
    acc = jnp.zeros((sq, dim), jnp.float32)
    for h in range(heads):                                  # heads is small & static
        sl = slice(h * dh, (h + 1) * dh)
        qh, kh, vh = q[:, sl], k[:, sl], v[:, sl]
        # q @ k^T via dot_general contracting the last dims (no explicit transpose)
        s = jax.lax.dot_general(qh, kh, (((1,), (1,)), ((), ())),
                                preferred_element_type=jnp.float32)
        if bias is not None:
            s = s + bias                                    # broadcast over Sq rows
        s = s - jnp.max(s, axis=-1, keepdims=True)
        p = jnp.exp(s)
        p = p * pl.reciprocal(jnp.sum(p, axis=-1, keepdims=True), approx=True)
        oh = jnp.dot(p.astype(vh.dtype), vh, preferred_element_type=jnp.float32)
        acc = acc + jnp.dot(oh.astype(x.dtype), wo[sl, :],
                            preferred_element_type=jnp.float32)

    o_ref[...] = (acc + bo_ref[...].astype(jnp.float32)).astype(o_ref.dtype)


def fused_mha(x, kv_src, bias, p, heads):
    """Fused attention block.

    x:      (B, Sq, D) queries source.
    kv_src: None  -> self-attention (fused QKV projection from x);
            (Sk, D)    shared keys/values source (positional table);
            (B, Sk, D) per-batch keys/values source (encoder memory).
    bias:   None, or (B, 1, Sk) / (B, Sq, Sk) additive f32 mask bias (0 / -1e9).
    """
    B, Sq, D = x.shape
    self_attn = kv_src is None

    inputs = [x]
    specs = [pl.BlockSpec((None, Sq, D), lambda b: (b, 0, 0))]
    if self_attn:
        Sk = Sq
        inputs += [p["w_qkv"], p["b_qkv"]]
        specs += [pl.BlockSpec((D, 3 * D), lambda b: (0, 0)),
                  pl.BlockSpec((1, 3 * D), lambda b: (0, 0))]
    else:
        if kv_src.ndim == 2:          # shared across the batch (positional table)
            Sk = kv_src.shape[0]
            specs.append(pl.BlockSpec((Sk, D), lambda b: (0, 0)))
        else:                         # per-batch (encoder memory)
            Sk = kv_src.shape[1]
            specs.append(pl.BlockSpec((None, Sk, D), lambda b: (b, 0, 0)))
        inputs.append(kv_src)
        inputs += [p["wq"], p["bq"], p["w_kv"], p["b_kv"]]
        specs += [pl.BlockSpec((D, D), lambda b: (0, 0)),
                  pl.BlockSpec((1, D), lambda b: (0, 0)),
                  pl.BlockSpec((D, 2 * D), lambda b: (0, 0)),
                  pl.BlockSpec((1, 2 * D), lambda b: (0, 0))]
    inputs += [p["wo"], p["bo"]]
    specs += [pl.BlockSpec((D, D), lambda b: (0, 0)),
              pl.BlockSpec((1, D), lambda b: (0, 0))]

    has_bias = bias is not None
    if has_bias:
        inputs.append(bias)
        specs.append(pl.BlockSpec((None, bias.shape[1], Sk), lambda b: (b, 0, 0)))

    kern = functools.partial(_fused_attn_kernel, heads=heads, dim=D,
                             self_attn=self_attn, has_bias=has_bias)
    return pl.pallas_call(
        kern,
        out_shape=jax.ShapeDtypeStruct((B, Sq, D), x.dtype),
        grid=(B,),
        in_specs=specs,
        out_specs=pl.BlockSpec((None, Sq, D), lambda b: (b, 0, 0)),
        compiler_params=pltpu.CompilerParams(
            dimension_semantics=("parallel",),
            vmem_limit_bytes=VMEM_LIMIT),
    )(*inputs)


# ----------------------------------------------------------------------------
# Model glue (reshapes / parameter plumbing in plain JAX)
# ----------------------------------------------------------------------------
def nat_decoder_layer(x, memory, p, bias, heads):
    B, S, D = x.shape
    # 4 pallas_calls per layer (was 12): three fused attention blocks + one fused FFN.
    x = fused_mha(x, None, bias, p["attention"], heads)                # self-attention
    pos = p["pos_embed_params"][:S]                                    # (S, D) shared over batch
    x = fused_mha(x, pos, bias, p["pos_embed"], heads)                 # positional attention
    x = fused_mha(x, memory, None, p["mask_attn"], heads)              # cross attention (no mask)
    x = ffn(x.reshape(B * S, D), p["feed_forward"]).reshape(B, S, D)   # fused FFN
    return x


def nat_decoder(src, memory, params, mask, heads):
    S = src.shape[1]
    cdtype = params["pos_embed"].dtype
    hidden = params["pos_embed"][:S][None, :, :] + src.astype(cdtype)
    memory = memory.astype(cdtype)
    # Additive mask bias (0 keep / -1e9 masked), built once for all layers/heads.
    # A (B, Sk) key-padding mask is broadcast in-kernel (rank-reduced HBM traffic);
    # a full (B, Sq, Sk) mask is also accepted.
    if mask is None:
        bias = None
    else:
        m = mask.astype(jnp.float32)
        if m.ndim == 2:
            m = m[:, None, :]                       # (B, 1, Sk)
        bias = (1.0 - m) * -1e9
    for layer_p in params["layers"]:
        hidden = nat_decoder_layer(hidden, memory, layer_p, bias, heads)
    return hidden.astype(jnp.float32)


# ----------------------------------------------------------------------------
# Deterministic parameter initialization + bf16 / fused-weight preparation
# ----------------------------------------------------------------------------
def _uniform(key, shape, lim):
    return jax.random.uniform(key, shape, jnp.float32, -lim, lim)


def init_mha_params(key, dim):
    ks = jax.random.split(key, 8)
    lim = (1.0 / dim) ** 0.5
    return {
        "wq": _uniform(ks[0], (dim, dim), lim), "bq": _uniform(ks[1], (dim,), lim),
        "wk": _uniform(ks[2], (dim, dim), lim), "bk": _uniform(ks[3], (dim,), lim),
        "wv": _uniform(ks[4], (dim, dim), lim), "bv": _uniform(ks[5], (dim,), lim),
        "wo": _uniform(ks[6], (dim, dim), lim), "bo": _uniform(ks[7], (dim,), lim),
    }


def init_layer_params(key, dim, max_seq_len):
    ks = jax.random.split(key, 6)
    hid = dim * 4
    return {
        "attention": init_mha_params(ks[0], dim),
        "pos_embed": init_mha_params(ks[1], dim),
        "mask_attn": init_mha_params(ks[2], dim),
        "feed_forward": {
            "w1": _uniform(ks[3], (dim, hid), (1.0 / dim) ** 0.5),
            "b1": jnp.zeros((hid,), jnp.float32),
            "w2": _uniform(ks[4], (hid, dim), (1.0 / hid) ** 0.5),
            "b2": jnp.zeros((dim,), jnp.float32),
        },
        "pos_embed_params": jax.random.normal(ks[5], (max_seq_len, dim), jnp.float32) * 0.02,
    }


def init_nat_decoder_params(key, dim, heads, depth, max_seq_len):
    ks = jax.random.split(key, depth + 1)
    return {
        # torch inits this to zeros; use small deterministic values so it is non-trivial
        "pos_embed": jax.random.normal(ks[0], (max_seq_len, dim), jnp.float32) * 0.02,
        "layers": [init_layer_params(ks[i + 1], dim, max_seq_len) for i in range(depth)],
    }


def prepare_params(params, heads, dtype=jnp.bfloat16):
    """Cast to bf16, fuse QKV / KV projection weights, fold 1/sqrt(dh) into Wq/bq,
    and pre-shape biases to (1, N) — all one-time transforms ahead of the forward."""
    def prep_mha(p, fuse_qkv):
        dim = p["wq"].shape[0]
        scale = 1.0 / float(dim // heads) ** 0.5
        wq, bq = p["wq"] * scale, p["bq"] * scale           # fold 1/sqrt(dh) here
        out = {"wo": p["wo"].astype(dtype),
               "bo": p["bo"].reshape(1, -1).astype(dtype)}
        if fuse_qkv:
            out["w_qkv"] = jnp.concatenate([wq, p["wk"], p["wv"]], axis=1).astype(dtype)
            out["b_qkv"] = jnp.concatenate([bq, p["bk"], p["bv"]]).reshape(1, -1).astype(dtype)
        else:
            out["wq"] = wq.astype(dtype)
            out["bq"] = bq.reshape(1, -1).astype(dtype)
            out["w_kv"] = jnp.concatenate([p["wk"], p["wv"]], axis=1).astype(dtype)
            out["b_kv"] = jnp.concatenate([p["bk"], p["bv"]]).reshape(1, -1).astype(dtype)
        return out

    layers = []
    for lp in params["layers"]:
        layers.append({
            "attention": prep_mha(lp["attention"], True),
            "pos_embed": prep_mha(lp["pos_embed"], False),
            "mask_attn": prep_mha(lp["mask_attn"], False),
            "feed_forward": {
                "w1": lp["feed_forward"]["w1"].astype(dtype),
                "b1": lp["feed_forward"]["b1"].reshape(1, -1).astype(dtype),
                "w2": lp["feed_forward"]["w2"].astype(dtype),
                "b2": lp["feed_forward"]["b2"].reshape(1, -1).astype(dtype),
            },
            "pos_embed_params": lp["pos_embed_params"].astype(dtype),
        })
    return {"pos_embed": params["pos_embed"].astype(dtype), "layers": layers}


# ----------------------------------------------------------------------------
if __name__ == "__main__":
    dim, heads, depth, max_seq_len = 32, 4, 2, 16
    B, S_dec, S_mem = 2, 8, 8

    key = jax.random.PRNGKey(0)
    k_param, k_src, k_mem = jax.random.split(key, 3)

    raw_params = init_nat_decoder_params(k_param, dim, heads, depth, max_seq_len)
    params = prepare_params(raw_params, heads, dtype=jnp.bfloat16)

    src = jax.random.normal(k_src, (B, S_dec, dim), jnp.float32)
    memory = jax.random.normal(k_mem, (B, S_mem, dim), jnp.float32)

    # key-padding mask (1 = keep, 0 = masked); last key position of batch 1 masked out
    mask = jnp.ones((B, S_dec), jnp.float32)
    mask = mask.at[1, -1].set(0.0)

    fwd = jax.jit(functools.partial(nat_decoder, heads=heads))
    out = fwd(src, memory, params, mask)
    out = jax.block_until_ready(out)
    assert out.shape == (B, S_dec, dim)
    assert bool(jnp.all(jnp.isfinite(out)))
    print("KERNEL_OK")
</pallas_src>

<mosaic_0001>
module attributes {stable_mosaic.version = 11 : i64} {
  func.func @_fused_attn_kernel(%arg0: i32, %arg1: memref<1x8x32xbf16, #tpu.memory_space<vmem>>, %arg2: memref<32x96xbf16, #tpu.memory_space<vmem>>, %arg3: memref<1x96xbf16, #tpu.memory_space<vmem>>, %arg4: memref<32x32xbf16, #tpu.memory_space<vmem>>, %arg5: memref<1x32xbf16, #tpu.memory_space<vmem>>, %arg6: memref<1x1x8xf32, #tpu.memory_space<vmem>>, %arg7: memref<1x8x32xbf16, #tpu.memory_space<vmem>>) attributes {dimension_semantics = [#tpu.dimension_semantics<parallel>], iteration_bounds = array<i64: 2>, scalar_prefetch = 0 : i64, scratch_operands = 0 : i64, tpu.core_type = #tpu.core_type<tc>, window_params = [{transform_indices = @transform_0, window_bounds = array<i64: 1, 8, 32>}, {pipeline_mode = #tpu.pipeline_mode<synchronous>, transform_indices = @transform_1, window_bounds = array<i64: 32, 96>}, {pipeline_mode = #tpu.pipeline_mode<synchronous>, transform_indices = @transform_2, window_bounds = array<i64: 1, 96>}, {pipeline_mode = #tpu.pipeline_mode<synchronous>, transform_indices = @transform_3, window_bounds = array<i64: 32, 32>}, {pipeline_mode = #tpu.pipeline_mode<synchronous>, transform_indices = @transform_4, window_bounds = array<i64: 1, 32>}, {transform_indices = @transform_5, window_bounds = array<i64: 1, 1, 8>}, {transform_indices = @transform_6, window_bounds = array<i64: 1, 8, 32>}]} {
    %c0 = arith.constant 0 : index
    %c0_0 = arith.constant 0 : index
    %c0_1 = arith.constant 0 : index
    %0 = vector.load %arg1[%c0, %c0_0, %c0_1] : memref<1x8x32xbf16, #tpu.memory_space<vmem>>, vector<1x8x32xbf16>
    %1 = vector.shape_cast %0 : vector<1x8x32xbf16> to vector<8x32xbf16>
    %c0_2 = arith.constant 0 : index
    %c0_3 = arith.constant 0 : index
    %2 = vector.load %arg2[%c0_2, %c0_3] : memref<32x96xbf16, #tpu.memory_space<vmem>>, vector<32x96xbf16>
    %cst = arith.constant dense<0.000000e+00> : vector<8x96xf32>
    %3 = tpu.matmul %1, %2, %cst {dimension_numbers = #tpu.dot_dimension_numbers<[1], [0], [0], [1], [0, 0, 1, 1], [], []>} : vector<8x32xbf16>, vector<32x96xbf16>, vector<8x96xf32> -> vector<8x96xf32>
    %c0_4 = arith.constant 0 : index
    %c0_5 = arith.constant 0 : index
    %4 = vector.load %arg3[%c0_4, %c0_5] : memref<1x96xbf16, #tpu.memory_space<vmem>>, vector<1x96xbf16>
    %5 = arith.extf %4 : vector<1x96xbf16> to vector<1x96xf32>
    %6 = vector.broadcast %5 : vector<1x96xf32> to vector<8x96xf32>
    %7 = arith.addf %3, %6 : vector<8x96xf32>
    %8 = arith.truncf %7 : vector<8x96xf32> to vector<8x96xbf16>
    %9 = vector.extract_strided_slice %8 {offsets = [0, 0], sizes = [8, 32], strides = [1, 1]} : vector<8x96xbf16> to vector<8x32xbf16>
    %10 = vector.extract_strided_slice %8 {offsets = [0, 32], sizes = [8, 32], strides = [1, 1]} : vector<8x96xbf16> to vector<8x32xbf16>
    %11 = vector.extract_strided_slice %8 {offsets = [0, 64], sizes = [8, 32], strides = [1, 1]} : vector<8x96xbf16> to vector<8x32xbf16>
    %c0_6 = arith.constant 0 : index
    %c0_7 = arith.constant 0 : index
    %c0_8 = arith.constant 0 : index
    %12 = vector.load %arg6[%c0_6, %c0_7, %c0_8] : memref<1x1x8xf32, #tpu.memory_space<vmem>>, vector<1x1x8xf32>
    %13 = vector.shape_cast %12 : vector<1x1x8xf32> to vector<1x8xf32>
    %c0_9 = arith.constant 0 : index
    %c0_10 = arith.constant 0 : index
    %14 = vector.load %arg4[%c0_9, %c0_10] : memref<32x32xbf16, #tpu.memory_space<vmem>>, vector<32x32xbf16>
    %cst_11 = arith.constant 0.000000e+00 : f32
    %15 = vector.broadcast %cst_11 : f32 to vector<8x32xf32>
    %16 = vector.extract_strided_slice %9 {offsets = [0, 0], sizes = [8, 8], strides = [1, 1]} : vector<8x32xbf16> to vector<8x8xbf16>
    %17 = vector.extract_strided_slice %10 {offsets = [0, 0], sizes = [8, 8], strides = [1, 1]} : vector<8x32xbf16> to vector<8x8xbf16>
    %18 = vector.extract_strided_slice %11 {offsets = [0, 0], sizes = [8, 8], strides = [1, 1]} : vector<8x32xbf16> to vector<8x8xbf16>
    %cst_12 = arith.constant dense<0.000000e+00> : vector<8x8xf32>
    %19 = tpu.matmul %16, %17, %cst_12 {dimension_numbers = #tpu.dot_dimension_numbers<[1], [1], [0], [0], [0, 0, 1, 0], [], []>} : vector<8x8xbf16>, vector<8x8xbf16>, vector<8x8xf32> -> vector<8x8xf32>
    %20 = vector.broadcast %13 : vector<1x8xf32> to vector<8x8xf32>
    %21 = arith.addf %19, %20 : vector<8x8xf32>
    %cst_13 = arith.constant dense<0xFF800000> : vector<8xf32>
    %22 = vector.multi_reduction <maximumf>, %21, %cst_13 [1] : vector<8x8xf32> to vector<8xf32>
    %23 = vector.shape_cast %22 : vector<8xf32> to vector<8x1xf32>
    %24 = vector.broadcast %23 : vector<8x1xf32> to vector<8x8xf32>
    %25 = arith.subf %21, %24 : vector<8x8xf32>
    %26 = math.exp %25 : vector<8x8xf32>
    %cst_14 = arith.constant dense<0.000000e+00> : vector<8xf32>
    %27 = vector.multi_reduction <add>, %26, %cst_14 [1] : vector<8x8xf32> to vector<8xf32>
    %28 = vector.shape_cast %27 : vector<8xf32> to vector<8x1xf32>
    %29 = tpu.reciprocal %28 {approx = true} : vector<8x1xf32> -> vector<8x1xf32>
    %30 = vector.broadcast %29 : vector<8x1xf32> to vector<8x8xf32>
    %31 = arith.mulf %26, %30 : vector<8x8xf32>
    %32 = arith.truncf %31 : vector<8x8xf32> to vector<8x8xbf16>
    %cst_15 = arith.constant dense<0.000000e+00> : vector<8x8xf32>
    %33 = tpu.matmul %32, %18, %cst_15 {dimension_numbers = #tpu.dot_dimension_numbers<[1], [0], [0], [1], [0, 0, 1, 1], [], []>} : vector<8x8xbf16>, vector<8x8xbf16>, vector<8x8xf32> -> vector<8x8xf32>
    %34 = arith.truncf %33 : vector<8x8xf32> to vector<8x8xbf16>
    %35 = vector.extract_strided_slice %14 {offsets = [0, 0], sizes = [8, 32], strides = [1, 1]} : vector<32x32xbf16> to vector<8x32xbf16>
    %cst_16 = arith.constant dense<0.000000e+00> : vector<8x32xf32>
    %36 = tpu.matmul %34, %35, %cst_16 {dimension_numbers = #tpu.dot_dimension_numbers<[1], [0], [0], [1], [0, 0, 1, 1], [], []>} : vector<8x8xbf16>, vector<8x32xbf16>, vector<8x32xf32> -> vector<8x32xf32>
    %37 = arith.addf %15, %36 : vector<8x32xf32>
    %38 = vector.extract_strided_slice %9 {offsets = [0, 8], sizes = [8, 8], strides = [1, 1]} : vector<8x32xbf16> to vector<8x8xbf16>
    %39 = vector.extract_strided_slice %10 {offsets = [0, 8], sizes = [8, 8], strides = [1, 1]} : vector<8x32xbf16> to vector<8x8xbf16>
    %40 = vector.extract_strided_slice %11 {offsets = [0, 8], sizes = [8, 8], strides = [1, 1]} : vector<8x32xbf16> to vector<8x8xbf16>
    %cst_17 = arith.constant dense<0.000000e+00> : vector<8x8xf32>
    %41 = tpu.matmul %38, %39, %cst_17 {dimension_numbers = #tpu.dot_dimension_numbers<[1], [1], [0], [0], [0, 0, 1, 0], [], []>} : vector<8x8xbf16>, vector<8x8xbf16>, vector<8x8xf32> -> vector<8x8xf32>
    %42 = vector.broadcast %13 : vector<1x8xf32> to vector<8x8xf32>
    %43 = arith.addf %41, %42 : vector<8x8xf32>
    %cst_18 = arith.constant dense<0xFF800000> : vector<8xf32>
    %44 = vector.multi_reduction <maximumf>, %43, %cst_18 [1] : vector<8x8xf32> to vector<8xf32>
    %45 = vector.shape_cast %44 : vector<8xf32> to vector<8x1xf32>
    %46 = vector.broadcast %45 : vector<8x1xf32> to vector<8x8xf32>
    %47 = arith.subf %43, %46 : vector<8x8xf32>
    %48 = math.exp %47 : vector<8x8xf32>
    %cst_19 = arith.constant dense<0.000000e+00> : vector<8xf32>
    %49 = vector.multi_reduction <add>, %48, %cst_19 [1] : vector<8x8xf32> to vector<8xf32>
    %50 = vector.shape_cast %49 : vector<8xf32> to vector<8x1xf32>
    %51 = tpu.reciprocal %50 {approx = true} : vector<8x1xf32> -> vector<8x1xf32>
    %52 = vector.broadcast %51 : vector<8x1xf32> to vector<8x8xf32>
    %53 = arith.mulf %48, %52 : vector<8x8xf32>
    %54 = arith.truncf %53 : vector<8x8xf32> to vector<8x8xbf16>
    %cst_20 = arith.constant dense<0.000000e+00> : vector<8x8xf32>
    %55 = tpu.matmul %54, %40, %cst_20 {dimension_numbers = #tpu.dot_dimension_numbers<[1], [0], [0], [1], [0, 0, 1, 1], [], []>} : vector<8x8xbf16>, vector<8x8xbf16>, vector<8x8xf32> -> vector<8x8xf32>
    %56 = arith.truncf %55 : vector<8x8xf32> to vector<8x8xbf16>
    %57 = vector.extract_strided_slice %14 {offsets = [8, 0], sizes = [8, 32], strides = [1, 1]} : vector<32x32xbf16> to vector<8x32xbf16>
    %cst_21 = arith.constant dense<0.000000e+00> : vector<8x32xf32>
    %58 = tpu.matmul %56, %57, %cst_21 {dimension_numbers = #tpu.dot_dimension_numbers<[1], [0], [0], [1], [0, 0, 1, 1], [], []>} : vector<8x8xbf16>, vector<8x32xbf16>, vector<8x32xf32> -> vector<8x32xf32>
    %59 = arith.addf %37, %58 : vector<8x32xf32>
    %60 = vector.extract_strided_slice %9 {offsets = [0, 16], sizes = [8, 8], strides = [1, 1]} : vector<8x32xbf16> to vector<8x8xbf16>
    %61 = vector.extract_strided_slice %10 {offsets = [0, 16], sizes = [8, 8], strides = [1, 1]} : vector<8x32xbf16> to vector<8x8xbf16>
    %62 = vector.extract_strided_slice %11 {offsets = [0, 16], sizes = [8, 8], strides = [1, 1]} : vector<8x32xbf16> to vector<8x8xbf16>
    %cst_22 = arith.constant dense<0.000000e+00> : vector<8x8xf32>
    %63 = tpu.matmul %60, %61, %cst_22 {dimension_numbers = #tpu.dot_dimension_numbers<[1], [1], [0], [0], [0, 0, 1, 0], [], []>} : vector<8x8xbf16>, vector<8x8xbf16>, vector<8x8xf32> -> vector<8x8xf32>
    %64 = vector.broadcast %13 : vector<1x8xf32> to vector<8x8xf32>
    %65 = arith.addf %63, %64 : vector<8x8xf32>
    %cst_23 = arith.constant dense<0xFF800000> : vector<8xf32>
    %66 = vector.multi_reduction <maximumf>, %65, %cst_23 [1] : vector<8x8xf32> to vector<8xf32>
    %67 = vector.shape_cast %66 : vector<8xf32> to vector<8x1xf32>
    %68 = vector.broadcast %67 : vector<8x1xf32> to vector<8x8xf32>
    %69 = arith.subf %65, %68 : vector<8x8xf32>
    %70 = math.exp %69 : vector<8x8xf32>
    %cst_24 = arith.constant dense<0.000000e+00> : vector<8xf32>
    %71 = vector.multi_reduction <add>, %70, %cst_24 [1] : vector<8x8xf32> to vector<8xf32>
    %72 = vector.shape_cast %71 : vector<8xf32> to vector<8x1xf32>
    %73 = tpu.reciprocal %72 {approx = true} : vector<8x1xf32> -> vector<8x1xf32>
    %74 = vector.broadcast %73 : vector<8x1xf32> to vector<8x8xf32>
    %75 = arith.mulf %70, %74 : vector<8x8xf32>
    %76 = arith.truncf %75 : vector<8x8xf32> to vector<8x8xbf16>
    %cst_25 = arith.constant dense<0.000000e+00> : vector<8x8xf32>
    %77 = tpu.matmul %76, %62, %cst_25 {dimension_numbers = #tpu.dot_dimension_numbers<[1], [0], [0], [1], [0, 0, 1, 1], [], []>} : vector<8x8xbf16>, vector<8x8xbf16>, vector<8x8xf32> -> vector<8x8xf32>
    %78 = arith.truncf %77 : vector<8x8xf32> to vector<8x8xbf16>
    %79 = vector.extract_strided_slice %14 {offsets = [16, 0], sizes = [8, 32], strides = [1, 1]} : vector<32x32xbf16> to vector<8x32xbf16>
    %cst_26 = arith.constant dense<0.000000e+00> : vector<8x32xf32>
    %80 = tpu.matmul %78, %79, %cst_26 {dimension_numbers = #tpu.dot_dimension_numbers<[1], [0], [0], [1], [0, 0, 1, 1], [], []>} : vector<8x8xbf16>, vector<8x32xbf16>, vector<8x32xf32> -> vector<8x32xf32>
    %81 = arith.addf %59, %80 : vector<8x32xf32>
    %82 = vector.extract_strided_slice %9 {offsets = [0, 24], sizes = [8, 8], strides = [1, 1]} : vector<8x32xbf16> to vector<8x8xbf16>
    %83 = vector.extract_strided_slice %10 {offsets = [0, 24], sizes = [8, 8], strides = [1, 1]} : vector<8x32xbf16> to vector<8x8xbf16>
    %84 = vector.extract_strided_slice %11 {offsets = [0, 24], sizes = [8, 8], strides = [1, 1]} : vector<8x32xbf16> to vector<8x8xbf16>
    %cst_27 = arith.constant dense<0.000000e+00> : vector<8x8xf32>
    %85 = tpu.matmul %82, %83, %cst_27 {dimension_numbers = #tpu.dot_dimension_numbers<[1], [1], [0], [0], [0, 0, 1, 0], [], []>} : vector<8x8xbf16>, vector<8x8xbf16>, vector<8x8xf32> -> vector<8x8xf32>
    %86 = vector.broadcast %13 : vector<1x8xf32> to vector<8x8xf32>
    %87 = arith.addf %85, %86 : vector<8x8xf32>
    %cst_28 = arith.constant dense<0xFF800000> : vector<8xf32>
    %88 = vector.multi_reduction <maximumf>, %87, %cst_28 [1] : vector<8x8xf32> to vector<8xf32>
    %89 = vector.shape_cast %88 : vector<8xf32> to vector<8x1xf32>
    %90 = vector.broadcast %89 : vector<8x1xf32> to vector<8x8xf32>
    %91 = arith.subf %87, %90 : vector<8x8xf32>
    %92 = math.exp %91 : vector<8x8xf32>
    %cst_29 = arith.constant dense<0.000000e+00> : vector<8xf32>
    %93 = vector.multi_reduction <add>, %92, %cst_29 [1] : vector<8x8xf32> to vector<8xf32>
    %94 = vector.shape_cast %93 : vector<8xf32> to vector<8x1xf32>
    %95 = tpu.reciprocal %94 {approx = true} : vector<8x1xf32> -> vector<8x1xf32>
    %96 = vector.broadcast %95 : vector<8x1xf32> to vector<8x8xf32>
    %97 = arith.mulf %92, %96 : vector<8x8xf32>
    %98 = arith.truncf %97 : vector<8x8xf32> to vector<8x8xbf16>
    %cst_30 = arith.constant dense<0.000000e+00> : vector<8x8xf32>
    %99 = tpu.matmul %98, %84, %cst_30 {dimension_numbers = #tpu.dot_dimension_numbers<[1], [0], [0], [1], [0, 0, 1, 1], [], []>} : vector<8x8xbf16>, vector<8x8xbf16>, vector<8x8xf32> -> vector<8x8xf32>
    %100 = arith.truncf %99 : vector<8x8xf32> to vector<8x8xbf16>
    %101 = vector.extract_strided_slice %14 {offsets = [24, 0], sizes = [8, 32], strides = [1, 1]} : vector<32x32xbf16> to vector<8x32xbf16>
    %cst_31 = arith.constant dense<0.000000e+00> : vector<8x32xf32>
    %102 = tpu.matmul %100, %101, %cst_31 {dimension_numbers = #tpu.dot_dimension_numbers<[1], [0], [0], [1], [0, 0, 1, 1], [], []>} : vector<8x8xbf16>, vector<8x32xbf16>, vector<8x32xf32> -> vector<8x32xf32>
    %103 = arith.addf %81, %102 : vector<8x32xf32>
    %c0_32 = arith.constant 0 : index
    %c0_33 = arith.constant 0 : index
    %104 = vector.load %arg5[%c0_32, %c0_33] : memref<1x32xbf16, #tpu.memory_space<vmem>>, vector<1x32xbf16>
    %105 = arith.extf %104 : vector<1x32xbf16> to vector<1x32xf32>
    %106 = vector.broadcast %105 : vector<1x32xf32> to vector<8x32xf32>
    %107 = arith.addf %103, %106 : vector<8x32xf32>
    %108 = arith.truncf %107 : vector<8x32xf32> to vector<8x32xbf16>
    %c0_34 = arith.constant 0 : index
    %c0_35 = arith.constant 0 : index
    %c0_36 = arith.constant 0 : index
    %109 = vector.load %arg7[%c0_34, %c0_35, %c0_36] : memref<1x8x32xbf16, #tpu.memory_space<vmem>>, vector<1x8x32xbf16>
    %110 = vector.shape_cast %109 : vector<1x8x32xbf16> to vector<8x32xbf16>
    %111 = vector.shape_cast %108 : vector<8x32xbf16> to vector<1x8x32xbf16>
    tpu.vector_store %arg7[%c0_34, %c0_35, %c0_36], %111 {strides = array<i32>} : memref<1x8x32xbf16, #tpu.memory_space<vmem>>, vector<1x8x32xbf16>,
    return
  }
  func.func @transform_0(%arg0: i32) -> (i32, i32, i32) {
    %c0_i32 = arith.constant 0 : i32
    %c0_i32_0 = arith.constant 0 : i32
    %c0_i32_1 = arith.constant 0 : i32
    return %arg0, %c0_i32, %c0_i32_0 : i32, i32, i32
  }
  func.func @transform_1(%arg0: i32) -> (i32, i32) {
    %c0_i32 = arith.constant 0 : i32
    %c0_i32_0 = arith.constant 0 : i32
    %c0_i32_1 = arith.constant 0 : i32
    return %c0_i32, %c0_i32_0 : i32, i32
  }
  func.func @transform_2(%arg0: i32) -> (i32, i32) {
    %c0_i32 = arith.constant 0 : i32
    %c0_i32_0 = arith.constant 0 : i32
    %c0_i32_1 = arith.constant 0 : i32
    return %c0_i32, %c0_i32_0 : i32, i32
  }
  func.func @transform_3(%arg0: i32) -> (i32, i32) {
    %c0_i32 = arith.constant 0 : i32
    %c0_i32_0 = arith.constant 0 : i32
    %c0_i32_1 = arith.constant 0 : i32
    return %c0_i32, %c0_i32_0 : i32, i32
  }
  func.func @transform_4(%arg0: i32) -> (i32, i32) {
    %c0_i32 = arith.constant 0 : i32
    %c0_i32_0 = arith.constant 0 : i32
    %c0_i32_1 = arith.constant 0 : i32
    return %c0_i32, %c0_i32_0 : i32, i32
  }
  func.func @transform_5(%arg0: i32) -> (i32, i32, i32) {
    %c0_i32 = arith.constant 0 : i32
    %c0_i32_0 = arith.constant 0 : i32
    %c0_i32_1 = arith.constant 0 : i32
    return %arg0, %c0_i32, %c0_i32_0 : i32, i32, i32
  }
  func.func @transform_6(%arg0: i32) -> (i32, i32, i32) {
    %c0_i32 = arith.constant 0 : i32
    %c0_i32_0 = arith.constant 0 : i32
    %c0_i32_1 = arith.constant 0 : i32
    return %arg0, %c0_i32, %c0_i32_0 : i32, i32, i32
  }
}

module attributes {stable_mosaic.version = 11 : i64} {
  func.func @_fused_attn_kernel(%arg0: i32, %arg1: memref<1x8x32xbf16, #tpu.memory_space<vmem>>, %arg2: memref<8x32xbf16, #tpu.memory_space<vmem>>, %arg3: memref<32x32xbf16, #tpu.memory_space<vmem>>, %arg4: memref<1x32xbf16, #tpu.memory_space<vmem>>, %arg5: memref<32x64xbf16, #tpu.memory_space<vmem>>, %arg6: memref<1x64xbf16, #tpu.memory_space<vmem>>, %arg7: memref<32x32xbf16, #tpu.memory_space<vmem>>, %arg8: memref<1x32xbf16, #tpu.memory_space<vmem>>, %arg9: memref<1x1x8xf32, #tpu.memory_space<vmem>>, %arg10: memref<1x8x32xbf16, #tpu.memory_space<vmem>>) attributes {dimension_semantics = [#tpu.dimension_semantics<parallel>], iteration_bounds = array<i64: 2>, scalar_prefetch = 0 : i64, scratch_operands = 0 : i64, tpu.core_type = #tpu.core_type<tc>, window_params = [{transform_indices = @transform_0, window_bounds = array<i64: 1, 8, 32>}, {pipeline_mode = #tpu.pipeline_mode<synchronous>, transform_indices = @transform_1, window_bounds = array<i64: 8, 32>}, {pipeline_mode = #tpu.pipeline_mode<synchronous>, transform_indices = @transform_2, window_bounds = array<i64: 32, 32>}, {pipeline_mode = #tpu.pipeline_mode<synchronous>, transform_indices = @transform_3, window_bounds = array<i64: 1, 32>}, {pipeline_mode = #tpu.pipeline_mode<synchronous>, transform_indices = @transform_4, window_bounds = array<i64: 32, 64>}, {pipeline_mode = #tpu.pipeline_mode<synchronous>, transform_indices = @transform_5, window_bounds = array<i64: 1, 64>}, {pipeline_mode = #tpu.pipeline_mode<synchronous>, transform_indices = @transform_6, window_bounds = array<i64: 32, 32>}, {pipeline_mode = #tpu.pipeline_mode<synchronous>, transform_indices = @transform_7, window_bounds = array<i64: 1, 32>}, {transform_indices = @transform_8, window_bounds = array<i64: 1, 1, 8>}, {transform_indices = @transform_9, window_bounds = array<i64: 1, 8, 32>}]} {
    %c0 = arith.constant 0 : index
    %c0_0 = arith.constant 0 : index
    %c0_1 = arith.constant 0 : index
    %0 = vector.load %arg1[%c0, %c0_0, %c0_1] : memref<1x8x32xbf16, #tpu.memory_space<vmem>>, vector<1x8x32xbf16>
    %1 = vector.shape_cast %0 : vector<1x8x32xbf16> to vector<8x32xbf16>
    %c0_2 = arith.constant 0 : index
    %c0_3 = arith.constant 0 : index
    %2 = vector.load %arg3[%c0_2, %c0_3] : memref<32x32xbf16, #tpu.memory_space<vmem>>, vector<32x32xbf16>
    %cst = arith.constant dense<0.000000e+00> : vector<8x32xf32>
    %3 = tpu.matmul %1, %2, %cst {dimension_numbers = #tpu.dot_dimension_numbers<[1], [0], [0], [1], [0, 0, 1, 1], [], []>} : vector<8x32xbf16>, vector<32x32xbf16>, vector<8x32xf32> -> vector<8x32xf32>
    %c0_4 = arith.constant 0 : index
    %c0_5 = arith.constant 0 : index
    %4 = vector.load %arg4[%c0_4, %c0_5] : memref<1x32xbf16, #tpu.memory_space<vmem>>, vector<1x32xbf16>
    %5 = arith.extf %4 : vector<1x32xbf16> to vector<1x32xf32>
    %6 = vector.broadcast %5 : vector<1x32xf32> to vector<8x32xf32>
    %7 = arith.addf %3, %6 : vector<8x32xf32>
    %8 = arith.truncf %7 : vector<8x32xf32> to vector<8x32xbf16>
    %c0_6 = arith.constant 0 : index
    %c0_7 = arith.constant 0 : index
    %9 = vector.load %arg2[%c0_6, %c0_7] : memref<8x32xbf16, #tpu.memory_space<vmem>>, vector<8x32xbf16>
    %c0_8 = arith.constant 0 : index
    %c0_9 = arith.constant 0 : index
    %10 = vector.load %arg5[%c0_8, %c0_9] : memref<32x64xbf16, #tpu.memory_space<vmem>>, vector<32x64xbf16>
    %cst_10 = arith.constant dense<0.000000e+00> : vector<8x64xf32>
    %11 = tpu.matmul %9, %10, %cst_10 {dimension_numbers = #tpu.dot_dimension_numbers<[1], [0], [0], [1], [0, 0, 1, 1], [], []>} : vector<8x32xbf16>, vector<32x64xbf16>, vector<8x64xf32> -> vector<8x64xf32>
    %c0_11 = arith.constant 0 : index
    %c0_12 = arith.constant 0 : index
    %12 = vector.load %arg6[%c0_11, %c0_12] : memref<1x64xbf16, #tpu.memory_space<vmem>>, vector<1x64xbf16>
    %13 = arith.extf %12 : vector<1x64xbf16> to vector<1x64xf32>
    %14 = vector.broadcast %13 : vector<1x64xf32> to vector<8x64xf32>
    %15 = arith.addf %11, %14 : vector<8x64xf32>
    %16 = arith.truncf %15 : vector<8x64xf32> to vector<8x64xbf16>
    %17 = vector.extract_strided_slice %16 {offsets = [0, 0], sizes = [8, 32], strides = [1, 1]} : vector<8x64xbf16> to vector<8x32xbf16>
    %18 = vector.extract_strided_slice %16 {offsets = [0, 32], sizes = [8, 32], strides = [1, 1]} : vector<8x64xbf16> to vector<8x32xbf16>
    %c0_13 = arith.constant 0 : index
    %c0_14 = arith.constant 0 : index
    %c0_15 = arith.constant 0 : index
    %19 = vector.load %arg9[%c0_13, %c0_14, %c0_15] : memref<1x1x8xf32, #tpu.memory_space<vmem>>, vector<1x1x8xf32>
    %20 = vector.shape_cast %19 : vector<1x1x8xf32> to vector<1x8xf32>
    %c0_16 = arith.constant 0 : index
    %c0_17 = arith.constant 0 : index
    %21 = vector.load %arg7[%c0_16, %c0_17] : memref<32x32xbf16, #tpu.memory_space<vmem>>, vector<32x32xbf16>
    %cst_18 = arith.constant 0.000000e+00 : f32
    %22 = vector.broadcast %cst_18 : f32 to vector<8x32xf32>
    %23 = vector.extract_strided_slice %8 {offsets = [0, 0], sizes = [8, 8], strides = [1, 1]} : vector<8x32xbf16> to vector<8x8xbf16>
    %24 = vector.extract_strided_slice %17 {offsets = [0, 0], sizes = [8, 8], strides = [1, 1]} : vector<8x32xbf16> to vector<8x8xbf16>
    %25 = vector.extract_strided_slice %18 {offsets = [0, 0], sizes = [8, 8], strides = [1, 1]} : vector<8x32xbf16> to vector<8x8xbf16>
    %cst_19 = arith.constant dense<0.000000e+00> : vector<8x8xf32>
    %26 = tpu.matmul %23, %24, %cst_19 {dimension_numbers = #tpu.dot_dimension_numbers<[1], [1], [0], [0], [0, 0, 1, 0], [], []>} : vector<8x8xbf16>, vector<8x8xbf16>, vector<8x8xf32> -> vector<8x8xf32>
    %27 = vector.broadcast %20 : vector<1x8xf32> to vector<8x8xf32>
    %28 = arith.addf %26, %27 : vector<8x8xf32>
    %cst_20 = arith.constant dense<0xFF800000> : vector<8xf32>
    %29 = vector.multi_reduction <maximumf>, %28, %cst_20 [1] : vector<8x8xf32> to vector<8xf32>
    %30 = vector.shape_cast %29 : vector<8xf32> to vector<8x1xf32>
    %31 = vector.broadcast %30 : vector<8x1xf32> to vector<8x8xf32>
    %32 = arith.subf %28, %31 : vector<8x8xf32>
    %33 = math.exp %32 : vector<8x8xf32>
    %cst_21 = arith.constant dense<0.000000e+00> : vector<8xf32>
    %34 = vector.multi_reduction <add>, %33, %cst_21 [1] : vector<8x8xf32> to vector<8xf32>
    %35 = vector.shape_cast %34 : vector<8xf32> to vector<8x1xf32>
    %36 = tpu.reciprocal %35 {approx = true} : vector<8x1xf32> -> vector<8x1xf32>
    %37 = vector.broadcast %36 : vector<8x1xf32> to vector<8x8xf32>
    %38 = arith.mulf %33, %37 : vector<8x8xf32>
    %39 = arith.truncf %38 : vector<8x8xf32> to vector<8x8xbf16>
    %cst_22 = arith.constant dense<0.000000e+00> : vector<8x8xf32>
    %40 = tpu.matmul %39, %25, %cst_22 {dimension_numbers = #tpu.dot_dimension_numbers<[1], [0], [0], [1], [0, 0, 1, 1], [], []>} : vector<8x8xbf16>, vector<8x8xbf16>, vector<8x8xf32> -> vector<8x8xf32>
    %41 = arith.truncf %40 : vector<8x8xf32> to vector<8x8xbf16>
    %42 = vector.extract_strided_slice %21 {offsets = [0, 0], sizes = [8, 32], strides = [1, 1]} : vector<32x32xbf16> to vector<8x32xbf16>
    %cst_23 = arith.constant dense<0.000000e+00> : vector<8x32xf32>
    %43 = tpu.matmul %41, %42, %cst_23 {dimension_numbers = #tpu.dot_dimension_numbers<[1], [0], [0], [1], [0, 0, 1, 1], [], []>} : vector<8x8xbf16>, vector<8x32xbf16>, vector<8x32xf32> -> vector<8x32xf32>
    %44 = arith.addf %22, %43 : vector<8x32xf32>
    %45 = vector.extract_strided_slice %8 {offsets = [0, 8], sizes = [8, 8], strides = [1, 1]} : vector<8x32xbf16> to vector<8x8xbf16>
    %46 = vector.extract_strided_slice %17 {offsets = [0, 8], sizes = [8, 8], strides = [1, 1]} : vector<8x32xbf16> to vector<8x8xbf16>
    %47 = vector.extract_strided_slice %18 {offsets = [0, 8], sizes = [8, 8], strides = [1, 1]} : vector<8x32xbf16> to vector<8x8xbf16>
    %cst_24 = arith.constant dense<0.000000e+00> : vector<8x8xf32>
    %48 = tpu.matmul %45, %46, %cst_24 {dimension_numbers = #tpu.dot_dimension_numbers<[1], [1], [0], [0], [0, 0, 1, 0], [], []>} : vector<8x8xbf16>, vector<8x8xbf16>, vector<8x8xf32> -> vector<8x8xf32>
    %49 = vector.broadcast %20 : vector<1x8xf32> to vector<8x8xf32>
    %50 = arith.addf %48, %49 : vector<8x8xf32>
    %cst_25 = arith.constant dense<0xFF800000> : vector<8xf32>
    %51 = vector.multi_reduction <maximumf>, %50, %cst_25 [1] : vector<8x8xf32> to vector<8xf32>
    %52 = vector.shape_cast %51 : vector<8xf32> to vector<8x1xf32>
    %53 = vector.broadcast %52 : vector<8x1xf32> to vector<8x8xf32>
    %54 = arith.subf %50, %53 : vector<8x8xf32>
    %55 = math.exp %54 : vector<8x8xf32>
    %cst_26 = arith.constant dense<0.000000e+00> : vector<8xf32>
    %56 = vector.multi_reduction <add>, %55, %cst_26 [1] : vector<8x8xf32> to vector<8xf32>
    %57 = vector.shape_cast %56 : vector<8xf32> to vector<8x1xf32>
    %58 = tpu.reciprocal %57 {approx = true} : vector<8x1xf32> -> vector<8x1xf32>
    %59 = vector.broadcast %58 : vector<8x1xf32> to vector<8x8xf32>
    %60 = arith.mulf %55, %59 : vector<8x8xf32>
    %61 = arith.truncf %60 : vector<8x8xf32> to vector<8x8xbf16>
    %cst_27 = arith.constant dense<0.000000e+00> : vector<8x8xf32>
    %62 = tpu.matmul %61, %47, %cst_27 {dimension_numbers = #tpu.dot_dimension_numbers<[1], [0], [0], [1], [0, 0, 1, 1], [], []>} : vector<8x8xbf16>, vector<8x8xbf16>, vector<8x8xf32> -> vector<8x8xf32>
    %63 = arith.truncf %62 : vector<8x8xf32> to vector<8x8xbf16>
    %64 = vector.extract_strided_slice %21 {offsets = [8, 0], sizes = [8, 32], strides = [1, 1]} : vector<32x32xbf16> to vector<8x32xbf16>
    %cst_28 = arith.constant dense<0.000000e+00> : vector<8x32xf32>
    %65 = tpu.matmul %63, %64, %cst_28 {dimension_numbers = #tpu.dot_dimension_numbers<[1], [0], [0], [1], [0, 0, 1, 1], [], []>} : vector<8x8xbf16>, vector<8x32xbf16>, vector<8x32xf32> -> vector<8x32xf32>
    %66 = arith.addf %44, %65 : vector<8x32xf32>
    %67 = vector.extract_strided_slice %8 {offsets = [0, 16], sizes = [8, 8], strides = [1, 1]} : vector<8x32xbf16> to vector<8x8xbf16>
    %68 = vector.extract_strided_slice %17 {offsets = [0, 16], sizes = [8, 8], strides = [1, 1]} : vector<8x32xbf16> to vector<8x8xbf16>
    %69 = vector.extract_strided_slice %18 {offsets = [0, 16], sizes = [8, 8], strides = [1, 1]} : vector<8x32xbf16> to vector<8x8xbf16>
    %cst_29 = arith.constant dense<0.000000e+00> : vector<8x8xf32>
    %70 = tpu.matmul %67, %68, %cst_29 {dimension_numbers = #tpu.dot_dimension_numbers<[1], [1], [0], [0], [0, 0, 1, 0], [], []>} : vector<8x8xbf16>, vector<8x8xbf16>, vector<8x8xf32> -> vector<8x8xf32>
    %71 = vector.broadcast %20 : vector<1x8xf32> to vector<8x8xf32>
    %72 = arith.addf %70, %71 : vector<8x8xf32>
    %cst_30 = arith.constant dense<0xFF800000> : vector<8xf32>
    %73 = vector.multi_reduction <maximumf>, %72, %cst_30 [1] : vector<8x8xf32> to vector<8xf32>
    %74 = vector.shape_cast %73 : vector<8xf32> to vector<8x1xf32>
    %75 = vector.broadcast %74 : vector<8x1xf32> to vector<8x8xf32>
    %76 = arith.subf %72, %75 : vector<8x8xf32>
    %77 = math.exp %76 : vector<8x8xf32>
    %cst_31 = arith.constant dense<0.000000e+00> : vector<8xf32>
    %78 = vector.multi_reduction <add>, %77, %cst_31 [1] : vector<8x8xf32> to vector<8xf32>
    %79 = vector.shape_cast %78 : vector<8xf32> to vector<8x1xf32>
    %80 = tpu.reciprocal %79 {approx = true} : vector<8x1xf32> -> vector<8x1xf32>
    %81 = vector.broadcast %80 : vector<8x1xf32> to vector<8x8xf32>
    %82 = arith.mulf %77, %81 : vector<8x8xf32>
    %83 = arith.truncf %82 : vector<8x8xf32> to vector<8x8xbf16>
    %cst_32 = arith.constant dense<0.000000e+00> : vector<8x8xf32>
    %84 = tpu.matmul %83, %69, %cst_32 {dimension_numbers = #tpu.dot_dimension_numbers<[1], [0], [0], [1], [0, 0, 1, 1], [], []>} : vector<8x8xbf16>, vector<8x8xbf16>, vector<8x8xf32> -> vector<8x8xf32>
    %85 = arith.truncf %84 : vector<8x8xf32> to vector<8x8xbf16>
    %86 = vector.extract_strided_slice %21 {offsets = [16, 0], sizes = [8, 32], strides = [1, 1]} : vector<32x32xbf16> to vector<8x32xbf16>
    %cst_33 = arith.constant dense<0.000000e+00> : vector<8x32xf32>
    %87 = tpu.matmul %85, %86, %cst_33 {dimension_numbers = #tpu.dot_dimension_numbers<[1], [0], [0], [1], [0, 0, 1, 1], [], []>} : vector<8x8xbf16>, vector<8x32xbf16>, vector<8x32xf32> -> vector<8x32xf32>
    %88 = arith.addf %66, %87 : vector<8x32xf32>
    %89 = vector.extract_strided_slice %8 {offsets = [0, 24], sizes = [8, 8], strides = [1, 1]} : vector<8x32xbf16> to vector<8x8xbf16>
    %90 = vector.extract_strided_slice %17 {offsets = [0, 24], sizes = [8, 8], strides = [1, 1]} : vector<8x32xbf16> to vector<8x8xbf16>
    %91 = vector.extract_strided_slice %18 {offsets = [0, 24], sizes = [8, 8], strides = [1, 1]} : vector<8x32xbf16> to vector<8x8xbf16>
    %cst_34 = arith.constant dense<0.000000e+00> : vector<8x8xf32>
    %92 = tpu.matmul %89, %90, %cst_34 {dimension_numbers = #tpu.dot_dimension_numbers<[1], [1], [0], [0], [0, 0, 1, 0], [], []>} : vector<8x8xbf16>, vector<8x8xbf16>, vector<8x8xf32> -> vector<8x8xf32>
    %93 = vector.broadcast %20 : vector<1x8xf32> to vector<8x8xf32>
    %94 = arith.addf %92, %93 : vector<8x8xf32>
    %cst_35 = arith.constant dense<0xFF800000> : vector<8xf32>
    %95 = vector.multi_reduction <maximumf>, %94, %cst_35 [1] : vector<8x8xf32> to vector<8xf32>
    %96 = vector.shape_cast %95 : vector<8xf32> to vector<8x1xf32>
    %97 = vector.broadcast %96 : vector<8x1xf32> to vector<8x8xf32>
    %98 = arith.subf %94, %97 : vector<8x8xf32>
    %99 = math.exp %98 : vector<8x8xf32>
    %cst_36 = arith.constant dense<0.000000e+00> : vector<8xf32>
    %100 = vector.multi_reduction <add>, %99, %cst_36 [1] : vector<8x8xf32> to vector<8xf32>
    %101 = vector.shape_cast %100 : vector<8xf32> to vector<8x1xf32>
    %102 = tpu.reciprocal %101 {approx = true} : vector<8x1xf32> -> vector<8x1xf32>
    %103 = vector.broadcast %102 : vector<8x1xf32> to vector<8x8xf32>
    %104 = arith.mulf %99, %103 : vector<8x8xf32>
    %105 = arith.truncf %104 : vector<8x8xf32> to vector<8x8xbf16>
    %cst_37 = arith.constant dense<0.000000e+00> : vector<8x8xf32>
    %106 = tpu.matmul %105, %91, %cst_37 {dimension_numbers = #tpu.dot_dimension_numbers<[1], [0], [0], [1], [0, 0, 1, 1], [], []>} : vector<8x8xbf16>, vector<8x8xbf16>, vector<8x8xf32> -> vector<8x8xf32>
    %107 = arith.truncf %106 : vector<8x8xf32> to vector<8x8xbf16>
    %108 = vector.extract_strided_slice %21 {offsets = [24, 0], sizes = [8, 32], strides = [1, 1]} : vector<32x32xbf16> to vector<8x32xbf16>
    %cst_38 = arith.constant dense<0.000000e+00> : vector<8x32xf32>
    %109 = tpu.matmul %107, %108, %cst_38 {dimension_numbers = #tpu.dot_dimension_numbers<[1], [0], [0], [1], [0, 0, 1, 1], [], []>} : vector<8x8xbf16>, vector<8x32xbf16>, vector<8x32xf32> -> vector<8x32xf32>
    %110 = arith.addf %88, %109 : vector<8x32xf32>
    %c0_39 = arith.constant 0 : index
    %c0_40 = arith.constant 0 : index
    %111 = vector.load %arg8[%c0_39, %c0_40] : memref<1x32xbf16, #tpu.memory_space<vmem>>, vector<1x32xbf16>
    %112 = arith.extf %111 : vector<1x32xbf16> to vector<1x32xf32>
    %113 = vector.broadcast %112 : vector<1x32xf32> to vector<8x32xf32>
    %114 = arith.addf %110, %113 : vector<8x32xf32>
    %115 = arith.truncf %114 : vector<8x32xf32> to vector<8x32xbf16>
    %c0_41 = arith.constant 0 : index
    %c0_42 = arith.constant 0 : index
    %c0_43 = arith.constant 0 : index
    %116 = vector.load %arg10[%c0_41, %c0_42, %c0_43] : memref<1x8x32xbf16, #tpu.memory_space<vmem>>, vector<1x8x32xbf16>
    %117 = vector.shape_cast %116 : vector<1x8x32xbf16> to vector<8x32xbf16>
    %118 = vector.shape_cast %115 : vector<8x32xbf16> to vector<1x8x32xbf16>
    tpu.vector_store %arg10[%c0_41, %c0_42, %c0_43], %118 {strides = array<i32>} : memref<1x8x32xbf16, #tpu.memory_space<vmem>>, vector<1x8x32xbf16>,
    return
  }
  func.func @transform_0(%arg0: i32) -> (i32, i32, i32) {
    %c0_i32 = arith.constant 0 : i32
    %c0_i32_0 = arith.constant 0 : i32
    %c0_i32_1 = arith.constant 0 : i32
    return %arg0, %c0_i32, %c0_i32_0 : i32, i32, i32
  }
  func.func @transform_1(%arg0: i32) -> (i32, i32) {
    %c0_i32 = arith.constant 0 : i32
    %c0_i32_0 = arith.constant 0 : i32
    %c0_i32_1 = arith.constant 0 : i32
    return %c0_i32, %c0_i32_0 : i32, i32
  }
  func.func @transform_2(%arg0: i32) -> (i32, i32) {
    %c0_i32 = arith.constant 0 : i32
    %c0_i32_0 = arith.constant 0 : i32
    %c0_i32_1 = arith.constant 0 : i32
    return %c0_i32, %c0_i32_0 : i32, i32
  }
  func.func @transform_3(%arg0: i32) -> (i32, i32) {
    %c0_i32 = arith.constant 0 : i32
    %c0_i32_0 = arith.constant 0 : i32
    %c0_i32_1 = arith.constant 0 : i32
    return %c0_i32, %c0_i32_0 : i32, i32
  }
  func.func @transform_4(%arg0: i32) -> (i32, i32) {
    %c0_i32 = arith.constant 0 : i32
    %c0_i32_0 = arith.constant 0 : i32
    %c0_i32_1 = arith.constant 0 : i32
    return %c0_i32, %c0_i32_0 : i32, i32
  }
  func.func @transform_5(%arg0: i32) -> (i32, i32) {
    %c0_i32 = arith.constant 0 : i32
    %c0_i32_0 = arith.constant 0 : i32
    %c0_i32_1 = arith.constant 0 : i32
    return %c0_i32, %c0_i32_0 : i32, i32
  }
  func.func @transform_6(%arg0: i32) -> (i32, i32) {
    %c0_i32 = arith.constant 0 : i32
    %c0_i32_0 = arith.constant 0 : i32
    %c0_i32_1 = arith.constant 0 : i32
    return %c0_i32, %c0_i32_0 : i32, i32
  }
  func.func @transform_7(%arg0: i32) -> (i32, i32) {
    %c0_i32 = arith.constant 0 : i32
    %c0_i32_0 = arith.constant 0 : i32
    %c0_i32_1 = arith.constant 0 : i32
    return %c0_i32, %c0_i32_0 : i32, i32
  }
  func.func @transform_8(%arg0: i32) -> (i32, i32, i32) {
    %c0_i32 = arith.constant 0 : i32
    %c0_i32_0 = arith.constant 0 : i32
    %c0_i32_1 = arith.constant 0 : i32
    return %arg0, %c0_i32, %c0_i32_0 : i32, i32, i32
  }
  func.func @transform_9(%arg0: i32) -> (i32, i32, i32) {
    %c0_i32 = arith.constant 0 : i32
    %c0_i32_0 = arith.constant 0 : i32
    %c0_i32_1 = arith.constant 0 : i32
    return %arg0, %c0_i32, %c0_i32_0 : i32, i32, i32
  }
}

module attributes {stable_mosaic.version = 11 : i64} {
  func.func @_fused_attn_kernel(%arg0: i32, %arg1: memref<1x8x32xbf16, #tpu.memory_space<vmem>>, %arg2: memref<1x8x32xbf16, #tpu.memory_space<vmem>>, %arg3: memref<32x32xbf16, #tpu.memory_space<vmem>>, %arg4: memref<1x32xbf16, #tpu.memory_space<vmem>>, %arg5: memref<32x64xbf16, #tpu.memory_space<vmem>>, %arg6: memref<1x64xbf16, #tpu.memory_space<vmem>>, %arg7: memref<32x32xbf16, #tpu.memory_space<vmem>>, %arg8: memref<1x32xbf16, #tpu.memory_space<vmem>>, %arg9: memref<1x8x32xbf16, #tpu.memory_space<vmem>>) attributes {dimension_semantics = [#tpu.dimension_semantics<parallel>], iteration_bounds = array<i64: 2>, scalar_prefetch = 0 : i64, scratch_operands = 0 : i64, tpu.core_type = #tpu.core_type<tc>, window_params = [{transform_indices = @transform_0, window_bounds = array<i64: 1, 8, 32>}, {transform_indices = @transform_1, window_bounds = array<i64: 1, 8, 32>}, {pipeline_mode = #tpu.pipeline_mode<synchronous>, transform_indices = @transform_2, window_bounds = array<i64: 32, 32>}, {pipeline_mode = #tpu.pipeline_mode<synchronous>, transform_indices = @transform_3, window_bounds = array<i64: 1, 32>}, {pipeline_mode = #tpu.pipeline_mode<synchronous>, transform_indices = @transform_4, window_bounds = array<i64: 32, 64>}, {pipeline_mode = #tpu.pipeline_mode<synchronous>, transform_indices = @transform_5, window_bounds = array<i64: 1, 64>}, {pipeline_mode = #tpu.pipeline_mode<synchronous>, transform_indices = @transform_6, window_bounds = array<i64: 32, 32>}, {pipeline_mode = #tpu.pipeline_mode<synchronous>, transform_indices = @transform_7, window_bounds = array<i64: 1, 32>}, {transform_indices = @transform_8, window_bounds = array<i64: 1, 8, 32>}]} {
    %c0 = arith.constant 0 : index
    %c0_0 = arith.constant 0 : index
    %c0_1 = arith.constant 0 : index
    %0 = vector.load %arg1[%c0, %c0_0, %c0_1] : memref<1x8x32xbf16, #tpu.memory_space<vmem>>, vector<1x8x32xbf16>
    %1 = vector.shape_cast %0 : vector<1x8x32xbf16> to vector<8x32xbf16>
    %c0_2 = arith.constant 0 : index
    %c0_3 = arith.constant 0 : index
    %2 = vector.load %arg3[%c0_2, %c0_3] : memref<32x32xbf16, #tpu.memory_space<vmem>>, vector<32x32xbf16>
    %cst = arith.constant dense<0.000000e+00> : vector<8x32xf32>
    %3 = tpu.matmul %1, %2, %cst {dimension_numbers = #tpu.dot_dimension_numbers<[1], [0], [0], [1], [0, 0, 1, 1], [], []>} : vector<8x32xbf16>, vector<32x32xbf16>, vector<8x32xf32> -> vector<8x32xf32>
    %c0_4 = arith.constant 0 : index
    %c0_5 = arith.constant 0 : index
    %4 = vector.load %arg4[%c0_4, %c0_5] : memref<1x32xbf16, #tpu.memory_space<vmem>>, vector<1x32xbf16>
    %5 = arith.extf %4 : vector<1x32xbf16> to vector<1x32xf32>
    %6 = vector.broadcast %5 : vector<1x32xf32> to vector<8x32xf32>
    %7 = arith.addf %3, %6 : vector<8x32xf32>
    %8 = arith.truncf %7 : vector<8x32xf32> to vector<8x32xbf16>
    %c0_6 = arith.constant 0 : index
    %c0_7 = arith.constant 0 : index
    %c0_8 = arith.constant 0 : index
    %9 = vector.load %arg2[%c0_6, %c0_7, %c0_8] : memref<1x8x32xbf16, #tpu.memory_space<vmem>>, vector<1x8x32xbf16>
    %10 = vector.shape_cast %9 : vector<1x8x32xbf16> to vector<8x32xbf16>
    %c0_9 = arith.constant 0 : index
    %c0_10 = arith.constant 0 : index
    %11 = vector.load %arg5[%c0_9, %c0_10] : memref<32x64xbf16, #tpu.memory_space<vmem>>, vector<32x64xbf16>
    %cst_11 = arith.constant dense<0.000000e+00> : vector<8x64xf32>
    %12 = tpu.matmul %10, %11, %cst_11 {dimension_numbers = #tpu.dot_dimension_numbers<[1], [0], [0], [1], [0, 0, 1, 1], [], []>} : vector<8x32xbf16>, vector<32x64xbf16>, vector<8x64xf32> -> vector<8x64xf32>
    %c0_12 = arith.constant 0 : index
    %c0_13 = arith.constant 0 : index
    %13 = vector.load %arg6[%c0_12, %c0_13] : memref<1x64xbf16, #tpu.memory_space<vmem>>, vector<1x64xbf16>
    %14 = arith.extf %13 : vector<1x64xbf16> to vector<1x64xf32>
    %15 = vector.broadcast %14 : vector<1x64xf32> to vector<8x64xf32>
    %16 = arith.addf %12, %15 : vector<8x64xf32>
    %17 = arith.truncf %16 : vector<8x64xf32> to vector<8x64xbf16>
    %18 = vector.extract_strided_slice %17 {offsets = [0, 0], sizes = [8, 32], strides = [1, 1]} : vector<8x64xbf16> to vector<8x32xbf16>
    %19 = vector.extract_strided_slice %17 {offsets = [0, 32], sizes = [8, 32], strides = [1, 1]} : vector<8x64xbf16> to vector<8x32xbf16>
    %c0_14 = arith.constant 0 : index
    %c0_15 = arith.constant 0 : index
    %20 = vector.load %arg7[%c0_14, %c0_15] : memref<32x32xbf16, #tpu.memory_space<vmem>>, vector<32x32xbf16>
    %cst_16 = arith.constant 0.000000e+00 : f32
    %21 = vector.broadcast %cst_16 : f32 to vector<8x32xf32>
    %22 = vector.extract_strided_slice %8 {offsets = [0, 0], sizes = [8, 8], strides = [1, 1]} : vector<8x32xbf16> to vector<8x8xbf16>
    %23 = vector.extract_strided_slice %18 {offsets = [0, 0], sizes = [8, 8], strides = [1, 1]} : vector<8x32xbf16> to vector<8x8xbf16>
    %24 = vector.extract_strided_slice %19 {offsets = [0, 0], sizes = [8, 8], strides = [1, 1]} : vector<8x32xbf16> to vector<8x8xbf16>
    %cst_17 = arith.constant dense<0.000000e+00> : vector<8x8xf32>
    %25 = tpu.matmul %22, %23, %cst_17 {dimension_numbers = #tpu.dot_dimension_numbers<[1], [1], [0], [0], [0, 0, 1, 0], [], []>} : vector<8x8xbf16>, vector<8x8xbf16>, vector<8x8xf32> -> vector<8x8xf32>
    %cst_18 = arith.constant dense<0xFF800000> : vector<8xf32>
    %26 = vector.multi_reduction <maximumf>, %25, %cst_18 [1] : vector<8x8xf32> to vector<8xf32>
    %27 = vector.shape_cast %26 : vector<8xf32> to vector<8x1xf32>
    %28 = vector.broadcast %27 : vector<8x1xf32> to vector<8x8xf32>
    %29 = arith.subf %25, %28 : vector<8x8xf32>
    %30 = math.exp %29 : vector<8x8xf32>
    %cst_19 = arith.constant dense<0.000000e+00> : vector<8xf32>
    %31 = vector.multi_reduction <add>, %30, %cst_19 [1] : vector<8x8xf32> to vector<8xf32>
    %32 = vector.shape_cast %31 : vector<8xf32> to vector<8x1xf32>
    %33 = tpu.reciprocal %32 {approx = true} : vector<8x1xf32> -> vector<8x1xf32>
    %34 = vector.broadcast %33 : vector<8x1xf32> to vector<8x8xf32>
    %35 = arith.mulf %30, %34 : vector<8x8xf32>
    %36 = arith.truncf %35 : vector<8x8xf32> to vector<8x8xbf16>
    %cst_20 = arith.constant dense<0.000000e+00> : vector<8x8xf32>
    %37 = tpu.matmul %36, %24, %cst_20 {dimension_numbers = #tpu.dot_dimension_numbers<[1], [0], [0], [1], [0, 0, 1, 1], [], []>} : vector<8x8xbf16>, vector<8x8xbf16>, vector<8x8xf32> -> vector<8x8xf32>
    %38 = arith.truncf %37 : vector<8x8xf32> to vector<8x8xbf16>
    %39 = vector.extract_strided_slice %20 {offsets = [0, 0], sizes = [8, 32], strides = [1, 1]} : vector<32x32xbf16> to vector<8x32xbf16>
    %cst_21 = arith.constant dense<0.000000e+00> : vector<8x32xf32>
    %40 = tpu.matmul %38, %39, %cst_21 {dimension_numbers = #tpu.dot_dimension_numbers<[1], [0], [0], [1], [0, 0, 1, 1], [], []>} : vector<8x8xbf16>, vector<8x32xbf16>, vector<8x32xf32> -> vector<8x32xf32>
    %41 = arith.addf %21, %40 : vector<8x32xf32>
    %42 = vector.extract_strided_slice %8 {offsets = [0, 8], sizes = [8, 8], strides = [1, 1]} : vector<8x32xbf16> to vector<8x8xbf16>
    %43 = vector.extract_strided_slice %18 {offsets = [0, 8], sizes = [8, 8], strides = [1, 1]} : vector<8x32xbf16> to vector<8x8xbf16>
    %44 = vector.extract_strided_slice %19 {offsets = [0, 8], sizes = [8, 8], strides = [1, 1]} : vector<8x32xbf16> to vector<8x8xbf16>
    %cst_22 = arith.constant dense<0.000000e+00> : vector<8x8xf32>
    %45 = tpu.matmul %42, %43, %cst_22 {dimension_numbers = #tpu.dot_dimension_numbers<[1], [1], [0], [0], [0, 0, 1, 0], [], []>} : vector<8x8xbf16>, vector<8x8xbf16>, vector<8x8xf32> -> vector<8x8xf32>
    %cst_23 = arith.constant dense<0xFF800000> : vector<8xf32>
    %46 = vector.multi_reduction <maximumf>, %45, %cst_23 [1] : vector<8x8xf32> to vector<8xf32>
    %47 = vector.shape_cast %46 : vector<8xf32> to vector<8x1xf32>
    %48 = vector.broadcast %47 : vector<8x1xf32> to vector<8x8xf32>
    %49 = arith.subf %45, %48 : vector<8x8xf32>
    %50 = math.exp %49 : vector<8x8xf32>
    %cst_24 = arith.constant dense<0.000000e+00> : vector<8xf32>
    %51 = vector.multi_reduction <add>, %50, %cst_24 [1] : vector<8x8xf32> to vector<8xf32>
    %52 = vector.shape_cast %51 : vector<8xf32> to vector<8x1xf32>
    %53 = tpu.reciprocal %52 {approx = true} : vector<8x1xf32> -> vector<8x1xf32>
    %54 = vector.broadcast %53 : vector<8x1xf32> to vector<8x8xf32>
    %55 = arith.mulf %50, %54 : vector<8x8xf32>
    %56 = arith.truncf %55 : vector<8x8xf32> to vector<8x8xbf16>
    %cst_25 = arith.constant dense<0.000000e+00> : vector<8x8xf32>
    %57 = tpu.matmul %56, %44, %cst_25 {dimension_numbers = #tpu.dot_dimension_numbers<[1], [0], [0], [1], [0, 0, 1, 1], [], []>} : vector<8x8xbf16>, vector<8x8xbf16>, vector<8x8xf32> -> vector<8x8xf32>
    %58 = arith.truncf %57 : vector<8x8xf32> to vector<8x8xbf16>
    %59 = vector.extract_strided_slice %20 {offsets = [8, 0], sizes = [8, 32], strides = [1, 1]} : vector<32x32xbf16> to vector<8x32xbf16>
    %cst_26 = arith.constant dense<0.000000e+00> : vector<8x32xf32>
    %60 = tpu.matmul %58, %59, %cst_26 {dimension_numbers = #tpu.dot_dimension_numbers<[1], [0], [0], [1], [0, 0, 1, 1], [], []>} : vector<8x8xbf16>, vector<8x32xbf16>, vector<8x32xf32> -> vector<8x32xf32>
    %61 = arith.addf %41, %60 : vector<8x32xf32>
    %62 = vector.extract_strided_slice %8 {offsets = [0, 16], sizes = [8, 8], strides = [1, 1]} : vector<8x32xbf16> to vector<8x8xbf16>
    %63 = vector.extract_strided_slice %18 {offsets = [0, 16], sizes = [8, 8], strides = [1, 1]} : vector<8x32xbf16> to vector<8x8xbf16>
    %64 = vector.extract_strided_slice %19 {offsets = [0, 16], sizes = [8, 8], strides = [1, 1]} : vector<8x32xbf16> to vector<8x8xbf16>
    %cst_27 = arith.constant dense<0.000000e+00> : vector<8x8xf32>
    %65 = tpu.matmul %62, %63, %cst_27 {dimension_numbers = #tpu.dot_dimension_numbers<[1], [1], [0], [0], [0, 0, 1, 0], [], []>} : vector<8x8xbf16>, vector<8x8xbf16>, vector<8x8xf32> -> vector<8x8xf32>
    %cst_28 = arith.constant dense<0xFF800000> : vector<8xf32>
    %66 = vector.multi_reduction <maximumf>, %65, %cst_28 [1] : vector<8x8xf32> to vector<8xf32>
    %67 = vector.shape_cast %66 : vector<8xf32> to vector<8x1xf32>
    %68 = vector.broadcast %67 : vector<8x1xf32> to vector<8x8xf32>
    %69 = arith.subf %65, %68 : vector<8x8xf32>
    %70 = math.exp %69 : vector<8x8xf32>
    %cst_29 = arith.constant dense<0.000000e+00> : vector<8xf32>
    %71 = vector.multi_reduction <add>, %70, %cst_29 [1] : vector<8x8xf32> to vector<8xf32>
    %72 = vector.shape_cast %71 : vector<8xf32> to vector<8x1xf32>
    %73 = tpu.reciprocal %72 {approx = true} : vector<8x1xf32> -> vector<8x1xf32>
    %74 = vector.broadcast %73 : vector<8x1xf32> to vector<8x8xf32>
    %75 = arith.mulf %70, %74 : vector<8x8xf32>
    %76 = arith.truncf %75 : vector<8x8xf32> to vector<8x8xbf16>
    %cst_30 = arith.constant dense<0.000000e+00> : vector<8x8xf32>
    %77 = tpu.matmul %76, %64, %cst_30 {dimension_numbers = #tpu.dot_dimension_numbers<[1], [0], [0], [1], [0, 0, 1, 1], [], []>} : vector<8x8xbf16>, vector<8x8xbf16>, vector<8x8xf32> -> vector<8x8xf32>
    %78 = arith.truncf %77 : vector<8x8xf32> to vector<8x8xbf16>
    %79 = vector.extract_strided_slice %20 {offsets = [16, 0], sizes = [8, 32], strides = [1, 1]} : vector<32x32xbf16> to vector<8x32xbf16>
    %cst_31 = arith.constant dense<0.000000e+00> : vector<8x32xf32>
    %80 = tpu.matmul %78, %79, %cst_31 {dimension_numbers = #tpu.dot_dimension_numbers<[1], [0], [0], [1], [0, 0, 1, 1], [], []>} : vector<8x8xbf16>, vector<8x32xbf16>, vector<8x32xf32> -> vector<8x32xf32>
    %81 = arith.addf %61, %80 : vector<8x32xf32>
    %82 = vector.extract_strided_slice %8 {offsets = [0, 24], sizes = [8, 8], strides = [1, 1]} : vector<8x32xbf16> to vector<8x8xbf16>
    %83 = vector.extract_strided_slice %18 {offsets = [0, 24], sizes = [8, 8], strides = [1, 1]} : vector<8x32xbf16> to vector<8x8xbf16>
    %84 = vector.extract_strided_slice %19 {offsets = [0, 24], sizes = [8, 8], strides = [1, 1]} : vector<8x32xbf16> to vector<8x8xbf16>
    %cst_32 = arith.constant dense<0.000000e+00> : vector<8x8xf32>
    %85 = tpu.matmul %82, %83, %cst_32 {dimension_numbers = #tpu.dot_dimension_numbers<[1], [1], [0], [0], [0, 0, 1, 0], [], []>} : vector<8x8xbf16>, vector<8x8xbf16>, vector<8x8xf32> -> vector<8x8xf32>
    %cst_33 = arith.constant dense<0xFF800000> : vector<8xf32>
    %86 = vector.multi_reduction <maximumf>, %85, %cst_33 [1] : vector<8x8xf32> to vector<8xf32>
    %87 = vector.shape_cast %86 : vector<8xf32> to vector<8x1xf32>
    %88 = vector.broadcast %87 : vector<8x1xf32> to vector<8x8xf32>
    %89 = arith.subf %85, %88 : vector<8x8xf32>
    %90 = math.exp %89 : vector<8x8xf32>
    %cst_34 = arith.constant dense<0.000000e+00> : vector<8xf32>
    %91 = vector.multi_reduction <add>, %90, %cst_34 [1] : vector<8x8xf32> to vector<8xf32>
    %92 = vector.shape_cast %91 : vector<8xf32> to vector<8x1xf32>
    %93 = tpu.reciprocal %92 {approx = true} : vector<8x1xf32> -> vector<8x1xf32>
    %94 = vector.broadcast %93 : vector<8x1xf32> to vector<8x8xf32>
    %95 = arith.mulf %90, %94 : vector<8x8xf32>
    %96 = arith.truncf %95 : vector<8x8xf32> to vector<8x8xbf16>
    %cst_35 = arith.constant dense<0.000000e+00> : vector<8x8xf32>
    %97 = tpu.matmul %96, %84, %cst_35 {dimension_numbers = #tpu.dot_dimension_numbers<[1], [0], [0], [1], [0, 0, 1, 1], [], []>} : vector<8x8xbf16>, vector<8x8xbf16>, vector<8x8xf32> -> vector<8x8xf32>
    %98 = arith.truncf %97 : vector<8x8xf32> to vector<8x8xbf16>
    %99 = vector.extract_strided_slice %20 {offsets = [24, 0], sizes = [8, 32], strides = [1, 1]} : vector<32x32xbf16> to vector<8x32xbf16>
    %cst_36 = arith.constant dense<0.000000e+00> : vector<8x32xf32>
    %100 = tpu.matmul %98, %99, %cst_36 {dimension_numbers = #tpu.dot_dimension_numbers<[1], [0], [0], [1], [0, 0, 1, 1], [], []>} : vector<8x8xbf16>, vector<8x32xbf16>, vector<8x32xf32> -> vector<8x32xf32>
    %101 = arith.addf %81, %100 : vector<8x32xf32>
    %c0_37 = arith.constant 0 : index
    %c0_38 = arith.constant 0 : index
    %102 = vector.load %arg8[%c0_37, %c0_38] : memref<1x32xbf16, #tpu.memory_space<vmem>>, vector<1x32xbf16>
    %103 = arith.extf %102 : vector<1x32xbf16> to vector<1x32xf32>
    %104 = vector.broadcast %103 : vector<1x32xf32> to vector<8x32xf32>
    %105 = arith.addf %101, %104 : vector<8x32xf32>
    %106 = arith.truncf %105 : vector<8x32xf32> to vector<8x32xbf16>
    %c0_39 = arith.constant 0 : index
    %c0_40 = arith.constant 0 : index
    %c0_41 = arith.constant 0 : index
    %107 = vector.load %arg9[%c0_39, %c0_40, %c0_41] : memref<1x8x32xbf16, #tpu.memory_space<vmem>>, vector<1x8x32xbf16>
    %108 = vector.shape_cast %107 : vector<1x8x32xbf16> to vector<8x32xbf16>
    %109 = vector.shape_cast %106 : vector<8x32xbf16> to vector<1x8x32xbf16>
    tpu.vector_store %arg9[%c0_39, %c0_40, %c0_41], %109 {strides = array<i32>} : memref<1x8x32xbf16, #tpu.memory_space<vmem>>, vector<1x8x32xbf16>,
    return
  }
  func.func @transform_0(%arg0: i32) -> (i32, i32, i32) {
    %c0_i32 = arith.constant 0 : i32
    %c0_i32_0 = arith.constant 0 : i32
    %c0_i32_1 = arith.constant 0 : i32
    return %arg0, %c0_i32, %c0_i32_0 : i32, i32, i32
  }
  func.func @transform_1(%arg0: i32) -> (i32, i32, i32) {
    %c0_i32 = arith.constant 0 : i32
    %c0_i32_0 = arith.constant 0 : i32
    %c0_i32_1 = arith.constant 0 : i32
    return %arg0, %c0_i32, %c0_i32_0 : i32, i32, i32
  }
  func.func @transform_2(%arg0: i32) -> (i32, i32) {
    %c0_i32 = arith.constant 0 : i32
    %c0_i32_0 = arith.constant 0 : i32
    %c0_i32_1 = arith.constant 0 : i32
    return %c0_i32, %c0_i32_0 : i32, i32
  }
  func.func @transform_3(%arg0: i32) -> (i32, i32) {
    %c0_i32 = arith.constant 0 : i32
    %c0_i32_0 = arith.constant 0 : i32
    %c0_i32_1 = arith.constant 0 : i32
    return %c0_i32, %c0_i32_0 : i32, i32
  }
  func.func @transform_4(%arg0: i32) -> (i32, i32) {
    %c0_i32 = arith.constant 0 : i32
    %c0_i32_0 = arith.constant 0 : i32
    %c0_i32_1 = arith.constant 0 : i32
    return %c0_i32, %c0_i32_0 : i32, i32
  }
  func.func @transform_5(%arg0: i32) -> (i32, i32) {
    %c0_i32 = arith.constant 0 : i32
    %c0_i32_0 = arith.constant 0 : i32
    %c0_i32_1 = arith.constant 0 : i32
    return %c0_i32, %c0_i32_0 : i32, i32
  }
  func.func @transform_6(%arg0: i32) -> (i32, i32) {
    %c0_i32 = arith.constant 0 : i32
    %c0_i32_0 = arith.constant 0 : i32
    %c0_i32_1 = arith.constant 0 : i32
    return %c0_i32, %c0_i32_0 : i32, i32
  }
  func.func @transform_7(%arg0: i32) -> (i32, i32) {
    %c0_i32 = arith.constant 0 : i32
    %c0_i32_0 = arith.constant 0 : i32
    %c0_i32_1 = arith.constant 0 : i32
    return %c0_i32, %c0_i32_0 : i32, i32
  }
  func.func @transform_8(%arg0: i32) -> (i32, i32, i32) {
    %c0_i32 = arith.constant 0 : i32
    %c0_i32_0 = arith.constant 0 : i32
    %c0_i32_1 = arith.constant 0 : i32
    return %arg0, %c0_i32, %c0_i32_0 : i32, i32, i32
  }
}

module attributes {stable_mosaic.version = 11 : i64} {
  func.func @_ffn_kernel(%arg0: i32, %arg1: i32, %arg2: memref<16x32xbf16, #tpu.memory_space<vmem>>, %arg3: memref<32x128xbf16, #tpu.memory_space<vmem>>, %arg4: memref<1x128xbf16, #tpu.memory_space<vmem>>, %arg5: memref<128x32xbf16, #tpu.memory_space<vmem>>, %arg6: memref<1x32xbf16, #tpu.memory_space<vmem>>, %arg7: memref<16x32xbf16, #tpu.memory_space<vmem>>, %arg8: memref<16x32xf32, #tpu.memory_space<vmem>>) attributes {dimension_semantics = [#tpu.dimension_semantics<parallel>, #tpu.dimension_semantics<arbitrary>], iteration_bounds = array<i64: 1, 1>, scalar_prefetch = 0 : i64, scratch_operands = 1 : i64, tpu.core_type = #tpu.core_type<tc>, window_params = [{transform_indices = @transform_0, window_bounds = array<i64: 16, 32>}, {transform_indices = @transform_1, window_bounds = array<i64: 32, 128>}, {transform_indices = @transform_2, window_bounds = array<i64: 1, 128>}, {transform_indices = @transform_3, window_bounds = array<i64: 128, 32>}, {pipeline_mode = #tpu.pipeline_mode<synchronous>, transform_indices = @transform_4, window_bounds = array<i64: 1, 32>}, {transform_indices = @transform_5, window_bounds = array<i64: 16, 32>}]} {
    %c0_i32 = arith.constant 0 : i32
    %0 = arith.cmpi eq, %arg1, %c0_i32 : i32
    %1 = arith.extui %0 : i1 to i32
    %c0_i32_0 = arith.constant 0 : i32
    %2 = arith.cmpi ne, %1, %c0_i32_0 : i32
    scf.if %2 {
      %cst_16 = arith.constant 0.000000e+00 : f32
      %21 = vector.broadcast %cst_16 : f32 to vector<16x32xf32>
      %c0_17 = arith.constant 0 : index
      %c0_18 = arith.constant 0 : index
      %22 = vector.load %arg8[%c0_17, %c0_18] : memref<16x32xf32, #tpu.memory_space<vmem>>, vector<16x32xf32>
      tpu.vector_store %arg8[%c0_17, %c0_18], %21 {strides = array<i32>} : memref<16x32xf32, #tpu.memory_space<vmem>>, vector<16x32xf32>,
    } else {
    }
    %c0 = arith.constant 0 : index
    %c0_1 = arith.constant 0 : index
    %3 = vector.load %arg2[%c0, %c0_1] : memref<16x32xbf16, #tpu.memory_space<vmem>>, vector<16x32xbf16>
    %c0_2 = arith.constant 0 : index
    %c0_3 = arith.constant 0 : index
    %4 = vector.load %arg3[%c0_2, %c0_3] : memref<32x128xbf16, #tpu.memory_space<vmem>>, vector<32x128xbf16>
    %cst = arith.constant dense<0.000000e+00> : vector<16x128xf32>
    %5 = tpu.matmul %3, %4, %cst {dimension_numbers = #tpu.dot_dimension_numbers<[1], [0], [0], [1], [0, 0, 1, 1], [], []>} : vector<16x32xbf16>, vector<32x128xbf16>, vector<16x128xf32> -> vector<16x128xf32>
    %c0_4 = arith.constant 0 : index
    %c0_5 = arith.constant 0 : index
    %6 = vector.load %arg4[%c0_4, %c0_5] : memref<1x128xbf16, #tpu.memory_space<vmem>>, vector<1x128xbf16>
    %7 = arith.extf %6 : vector<1x128xbf16> to vector<1x128xf32>
    %8 = vector.broadcast %7 : vector<1x128xf32> to vector<16x128xf32>
    %9 = arith.addf %5, %8 : vector<16x128xf32>
    %cst_6 = arith.constant 0.000000e+00 : f32
    %10 = vector.broadcast %cst_6 : f32 to vector<16x128xf32>
    %11 = arith.maximumf %9, %10 : vector<16x128xf32>
    %c0_7 = arith.constant 0 : index
    %c0_8 = arith.constant 0 : index
    %12 = vector.load %arg8[%c0_7, %c0_8] : memref<16x32xf32, #tpu.memory_space<vmem>>, vector<16x32xf32>
    %13 = arith.truncf %11 : vector<16x128xf32> to vector<16x128xbf16>
    %c0_9 = arith.constant 0 : index
    %c0_10 = arith.constant 0 : index
    %14 = vector.load %arg5[%c0_9, %c0_10] : memref<128x32xbf16, #tpu.memory_space<vmem>>, vector<128x32xbf16>
    %cst_11 = arith.constant dense<0.000000e+00> : vector<16x32xf32>
    %15 = tpu.matmul %13, %14, %cst_11 {dimension_numbers = #tpu.dot_dimension_numbers<[1], [0], [0], [1], [0, 0, 1, 1], [], []>} : vector<16x128xbf16>, vector<128x32xbf16>, vector<16x32xf32> -> vector<16x32xf32>
    %16 = arith.addf %12, %15 : vector<16x32xf32>
    %c0_12 = arith.constant 0 : index
    %c0_13 = arith.constant 0 : index
    %17 = vector.load %arg8[%c0_12, %c0_13] : memref<16x32xf32, #tpu.memory_space<vmem>>, vector<16x32xf32>
    tpu.vector_store %arg8[%c0_12, %c0_13], %16 {strides = array<i32>} : memref<16x32xf32, #tpu.memory_space<vmem>>, vector<16x32xf32>,
    %c0_i32_14 = arith.constant 0 : i32
    %18 = arith.cmpi eq, %arg1, %c0_i32_14 : i32
    %19 = arith.extui %18 : i1 to i32
    %c0_i32_15 = arith.constant 0 : i32
    %20 = arith.cmpi ne, %19, %c0_i32_15 : i32
    scf.if %20 {
      %c0_16 = arith.constant 0 : index
      %c0_17 = arith.constant 0 : index
      %21 = vector.load %arg8[%c0_16, %c0_17] : memref<16x32xf32, #tpu.memory_space<vmem>>, vector<16x32xf32>
      %c0_18 = arith.constant 0 : index
      %c0_19 = arith.constant 0 : index
      %22 = vector.load %arg6[%c0_18, %c0_19] : memref<1x32xbf16, #tpu.memory_space<vmem>>, vector<1x32xbf16>
      %23 = arith.extf %22 : vector<1x32xbf16> to vector<1x32xf32>
      %24 = vector.broadcast %23 : vector<1x32xf32> to vector<16x32xf32>
      %25 = arith.addf %21, %24 : vector<16x32xf32>
      %26 = arith.truncf %25 : vector<16x32xf32> to vector<16x32xbf16>
      %c0_20 = arith.constant 0 : index
      %c0_21 = arith.constant 0 : index
      %27 = vector.load %arg7[%c0_20, %c0_21] : memref<16x32xbf16, #tpu.memory_space<vmem>>, vector<16x32xbf16>
      tpu.vector_store %arg7[%c0_20, %c0_21], %26 {strides = array<i32>} : memref<16x32xbf16, #tpu.memory_space<vmem>>, vector<16x32xbf16>,
    } else {
    }
    return
  }
  func.func @transform_0(%arg0: i32, %arg1: i32) -> (i32, i32) {
    %c0_i32 = arith.constant 0 : i32
    %c0_i32_0 = arith.constant 0 : i32
    return %arg0, %c0_i32 : i32, i32
  }
  func.func @transform_1(%arg0: i32, %arg1: i32) -> (i32, i32) {
    %c0_i32 = arith.constant 0 : i32
    %c0_i32_0 = arith.constant 0 : i32
    return %c0_i32, %arg1 : i32, i32
  }
  func.func @transform_2(%arg0: i32, %arg1: i32) -> (i32, i32) {
    %c0_i32 = arith.constant 0 : i32
    %c0_i32_0 = arith.constant 0 : i32
    return %c0_i32, %arg1 : i32, i32
  }
  func.func @transform_3(%arg0: i32, %arg1: i32) -> (i32, i32) {
    %c0_i32 = arith.constant 0 : i32
    %c0_i32_0 = arith.constant 0 : i32
    return %arg1, %c0_i32 : i32, i32
  }
  func.func @transform_4(%arg0: i32, %arg1: i32) -> (i32, i32) {
    %c0_i32 = arith.constant 0 : i32
    %c0_i32_0 = arith.constant 0 : i32
    %c0_i32_1 = arith.constant 0 : i32
    return %c0_i32, %c0_i32_0 : i32, i32
  }
  func.func @transform_5(%arg0: i32, %arg1: i32) -> (i32, i32) {
    %c0_i32 = arith.constant 0 : i32
    %c0_i32_0 = arith.constant 0 : i32
    return %arg0, %c0_i32 : i32, i32
  }
}

</mosaic_0001>

<llo_original>
// kernel: nat_decoder.8
$region0: #{nat_decoder.8}
  #allocation0 [shape = 'u32[]', space=smem, size = 0x4, offset = 0x4, fixed_abs, tag = 'smem constant byte address 0x4 - core index']
  #allocation1 [shape = 'u32[144,128]{1,0:T(1,128)}', space=vmem, size = 0x12000, scoped, tag = 'internal scratch']
  %s0 = inlined_call_operand.vmem [shape: bf16[2,8,32], index: 0, kind: input, shape index: {}]
  %s1 = inlined_call_operand.vmem [shape: bf16[32,96], index: 1, kind: input, shape index: {}]
  %s2 = inlined_call_operand.vmem [shape: bf16[1,96], index: 2, kind: input, shape index: {}]
  %s3 = inlined_call_operand.vmem [shape: bf16[32,32], index: 3, kind: input, shape index: {}]
  %s4 = inlined_call_operand.vmem [shape: bf16[1,32], index: 4, kind: input, shape index: {}]
  %s5 = inlined_call_operand.vmem [shape: f32[2,1,8], index: 5, kind: input, shape index: {}]
  %s6 = inlined_call_operand.vmem [shape: bf16[2,8,32], index: 6, kind: output, shape index: {}]
  %s7 = sld [smem:[#allocation0]]
  $region57: #{nat_decoder.8} parent=0
    _
  %s9 = ssub.s32 1, %s7
  %s10 = scalar_select 0, %s9, %s7
  loop: start=0, step=1, limit=4
  $region2: #{nat_decoder.8} parent=0 // loop_pre_header
    _
  $region3: #{nat_decoder.8} parent=0 // loop_header
    %s12 = sphi 0, %s16
    %p13 = scmp.ge.s32.totalorder %s12, 4
    %s22 = sphi 0, %s24
    %s25 = sphi 0, %s22
    %s26 = sphi 0, %s25
    %s42 = sphi 0, %s26
    %s46 = sphi 0, %s46
    %s48 = sphi 0, %s46
    %s49 = sphi 0, %s48
    %s63 = sphi 0, %s49
    %s67 = sphi 0, %s67
    %s69 = sphi 0, %s67
    %s70 = sphi 0, %s69
    %s84 = sphi 0, %s70
    %s88 = sphi 0, %s88
    %s90 = sphi 0, %s88
    %s91 = sphi 0, %s90
    %s105 = sphi 0, %s91
    %s109 = sphi 0, %s109
    %s111 = sphi 0, %s109
    %s112 = sphi 0, %s111
    %s126 = sphi 0, %s112
    %s132 = sphi 0, %s134
    %s135 = sphi 0, %s132
    %s136 = sphi 0, %s135
    %s152 = sphi 0, %s136
    %s158 = sphi 0, %s160
    %s161 = sphi 0, %s158
    %s162 = sphi 0, %s161
    %s178 = sphi 0, %s162
  $region4: #{nat_decoder.8} parent=0 // loop_header_branch
    %15 = sbr.rel (%p13) target = $region8
  $region5: #{nat_decoder.8} parent=0 // loop_body
    %s17 = ssub.s32 %s12, 1
    %s18 = ssub.s32 %s12, 2
    %s19 = sadd.s32 %s12, 1
    %s20 = ssub.s32 %s12, %s19
    %p21 = scmp.eq.s32.totalorder %s20, 0
    %s23 = sadd.s32 %s22, 1
    %s24 = scalar_select %p21, %s22, %s23
    %p27 = pneg %p21
    %p28 = scmp.eq.s32.totalorder %s12, 1
    %p29 = por %p27, %p28
    %p30 = scmp.ne.s32.totalorder %s22, %s25
    %p31 = scmp.eq.s32.totalorder %s12, 0
    %p32 = por %p30, %p31
    %p33 = scmp.ne.s32.totalorder %s22, %s25
    %p34 = scmp.eq.s32.totalorder %s17, 1
    %p35 = por %p33, %p34
    %p36 = scmp.ne.s32.totalorder %s25, %s26
    %p37 = scmp.eq.s32.totalorder %s17, 0
    %p38 = por %p36, %p37
    %p39 = scmp.ne.s32.totalorder %s25, %s26
    %p40 = scmp.eq.s32.totalorder %s18, 1
    %p41 = por %p39, %p40
    %p43 = scmp.ne.s32.totalorder %s26, %s42
    %p44 = scmp.eq.s32.totalorder %s18, 0
    %p45 = por %p43, %p44
    %s47 = sadd.s32 %s46, 1
    %p50 = scmp.eq.s32.totalorder %s12, 1
    %p51 = scmp.ne.s32.totalorder %s46, %s48
    %p52 = scmp.eq.s32.totalorder %s12, 0
    %p53 = por %p51, %p52
    %p54 = scmp.ne.s32.totalorder %s46, %s48
    %p55 = scmp.eq.s32.totalorder %s17, 1
    %p56 = por %p54, %p55
    %p57 = scmp.ne.s32.totalorder %s48, %s49
    %p58 = scmp.eq.s32.totalorder %s17, 0
    %p59 = por %p57, %p58
    %p60 = scmp.ne.s32.totalorder %s48, %s49
    %p61 = scmp.eq.s32.totalorder %s18, 1
    %p62 = por %p60, %p61
    %p64 = scmp.ne.s32.totalorder %s49, %s63
    %p65 = scmp.eq.s32.totalorder %s18, 0
    %p66 = por %p64, %p65
    %s68 = sadd.s32 %s67, 1
    %p71 = scmp.eq.s32.totalorder %s12, 1
    %p72 = scmp.ne.s32.totalorder %s67, %s69
    %p73 = scmp.eq.s32.totalorder %s12, 0
    %p74 = por %p72, %p73
    %p75 = scmp.ne.s32.totalorder %s67, %s69
    %p76 = scmp.eq.s32.totalorder %s17, 1
    %p77 = por %p75, %p76
    %p78 = scmp.ne.s32.totalorder %s69, %s70
    %p79 = scmp.eq.s32.totalorder %s17, 0
    %p80 = por %p78, %p79
    %p81 = scmp.ne.s32.totalorder %s69, %s70
    %p82 = scmp.eq.s32.totalorder %s18, 1
    %p83 = por %p81, %p82
    %p85 = scmp.ne.s32.totalorder %s70, %s84
    %p86 = scmp.eq.s32.totalorder %s18, 0
    %p87 = por %p85, %p86
    %s89 = sadd.s32 %s88, 1
    %p92 = scmp.eq.s32.totalorder %s12, 1
    %p93 = scmp.ne.s32.totalorder %s88, %s90
    %p94 = scmp.eq.s32.totalorder %s12, 0
    %p95 = por %p93, %p94
    %p96 = scmp.ne.s32.totalorder %s88, %s90
    %p97 = scmp.eq.s32.totalorder %s17, 1
    %p98 = por %p96, %p97
    %p99 = scmp.ne.s32.totalorder %s90, %s91
    %p100 = scmp.eq.s32.totalorder %s17, 0
    %p101 = por %p99, %p100
    %p102 = scmp.ne.s32.totalorder %s90, %s91
    %p103 = scmp.eq.s32.totalorder %s18, 1
    %p104 = por %p102, %p103
    %p106 = scmp.ne.s32.totalorder %s91, %s105
    %p107 = scmp.eq.s32.totalorder %s18, 0
    %p108 = por %p106, %p107
    %s110 = sadd.s32 %s109, 1
    %p113 = scmp.eq.s32.totalorder %s12, 1
    %p114 = scmp.ne.s32.totalorder %s109, %s111
    %p115 = scmp.eq.s32.totalorder %s12, 0
    %p116 = por %p114, %p115
    %p117 = scmp.ne.s32.totalorder %s109, %s111
    %p118 = scmp.eq.s32.totalorder %s17, 1
    %p119 = por %p117, %p118
    %p120 = scmp.ne.s32.totalorder %s111, %s112
    %p121 = scmp.eq.s32.totalorder %s17, 0
    %p122 = por %p120, %p121
    %p123 = scmp.ne.s32.totalorder %s111, %s112
    %p124 = scmp.eq.s32.totalorder %s18, 1
    %p125 = por %p123, %p124
    %p127 = scmp.ne.s32.totalorder %s112, %s126
    %p128 = scmp.eq.s32.totalorder %s18, 0
    %p129 = por %p127, %p128
    %s130 = ssub.s32 %s12, %s19
    %p131 = scmp.eq.s32.totalorder %s130, 0
    %s133 = sadd.s32 %s132, 1
    %s134 = scalar_select %p131, %s132, %s133
    %p137 = pneg %p131
    %p138 = scmp.eq.s32.totalorder %s12, 1
    %p139 = por %p137, %p138
    %p140 = scmp.ne.s32.totalorder %s132, %s135
    %p141 = scmp.eq.s32.totalorder %s12, 0
    %p142 = por %p140, %p141
    %p143 = scmp.ne.s32.totalorder %s132, %s135
    %p144 = scmp.eq.s32.totalorder %s17, 1
    %p145 = por %p143, %p144
    %p146 = scmp.ne.s32.totalorder %s135, %s136
    %p147 = scmp.eq.s32.totalorder %s17, 0
    %p148 = por %p146, %p147
    %p149 = scmp.ne.s32.totalorder %s135, %s136
    %p150 = scmp.eq.s32.totalorder %s18, 1
    %p151 = por %p149, %p150
    %p153 = scmp.ne.s32.totalorder %s136, %s152
    %p154 = scmp.eq.s32.totalorder %s18, 0
    %p155 = por %p153, %p154
    %s156 = ssub.s32 %s12, %s19
    %p157 = scmp.eq.s32.totalorder %s156, 0
    %s159 = sadd.s32 %s158, 1
    %s160 = scalar_select %p157, %s158, %s159
    %p163 = pneg %p157
    %p164 = scmp.eq.s32.totalorder %s12, 1
    %p165 = por %p163, %p164
    %p166 = scmp.ne.s32.totalorder %s158, %s161
    %p167 = scmp.eq.s32.totalorder %s12, 0
    %p168 = por %p166, %p167
    %p169 = scmp.ne.s32.totalorder %s158, %s161
    %p170 = scmp.eq.s32.totalorder %s17, 1
    %p171 = por %p169, %p170
    %p172 = scmp.ne.s32.totalorder %s161, %s162
    %p173 = scmp.eq.s32.totalorder %s17, 0
    %p174 = por %p172, %p173
    %p175 = scmp.ne.s32.totalorder %s161, %s162
    %p176 = scmp.eq.s32.totalorder %s18, 1
    %p177 = por %p175, %p176
    %p179 = scmp.ne.s32.totalorder %s162, %s178
    %p180 = scmp.eq.s32.totalorder %s18, 0
    %p181 = por %p179, %p180
    %p182 = scmp.le.s32.totalorder 1, %s12
    %p183 = scmp.lt.s32.totalorder %s12, 3
    %p184 = pnand %p182, %p183
    %p185 = pneg %p184
    // Predicated region
    $region9: #{nat_decoder.8} parent=5 // pred_check
      _
    $region10: #{nat_decoder.8} parent=5 // pred_check_branch
      %187 = sbr.rel (%p184) target = $region12
    $region11: #{nat_decoder.8} parent=5 // pred_region
      %s188 = ssub.s32 %s12, 1
      // Predicated region
      $region13: #{nat_decoder.8} parent=11 // pred_check
        %p189 = pneg %p59
      $region14: #{nat_decoder.8} parent=11 // pred_check_branch
        %191 = sbr.rel (%p189) target = $region16
      $region15: #{nat_decoder.8} parent=11 // pred_region
        _
      $region16: #{nat_decoder.8} parent=11 // pred_fallthru
        _
      // Predicated region
      $region17: #{nat_decoder.8} parent=11 // pred_check
        %p192 = pneg %p80
      $region18: #{nat_decoder.8} parent=11 // pred_check_branch
        %194 = sbr.rel (%p192) target = $region20
      $region19: #{nat_decoder.8} parent=11 // pred_region
        _
      $region20: #{nat_decoder.8} parent=11 // pred_fallthru
        _
      // Predicated region
      $region21: #{nat_decoder.8} parent=11 // pred_check
        %p195 = pneg %p101
      $region22: #{nat_decoder.8} parent=11 // pred_check_branch
        %197 = sbr.rel (%p195) target = $region24
      $region23: #{nat_decoder.8} parent=11 // pred_region
        _
      $region24: #{nat_decoder.8} parent=11 // pred_fallthru
        _
      // Predicated region
      $region25: #{nat_decoder.8} parent=11 // pred_check
        %p198 = pneg %p122
      $region26: #{nat_decoder.8} parent=11 // pred_check_branch
        %200 = sbr.rel (%p198) target = $region28
      $region27: #{nat_decoder.8} parent=11 // pred_region
        _
      $region28: #{nat_decoder.8} parent=11 // pred_fallthru
        _
    $region12: #{nat_decoder.8} parent=5 // pred_fallthru
      _
    %p201 = scmp.lt.s32.totalorder %s12, 2
    // Predicated region
    $region29: #{nat_decoder.8} parent=5 // pred_check
      %p202 = pneg %p201
    $region30: #{nat_decoder.8} parent=5 // pred_check_branch
      %204 = sbr.rel (%p202) target = $region32
    $region31: #{nat_decoder.8} parent=5 // pred_region
      // Predicated region
      $region33: #{nat_decoder.8} parent=31 // pred_check
        %p205 = pneg %p32
      $region34: #{nat_decoder.8} parent=31 // pred_check_branch
        %207 = sbr.rel (%p205) target = $region36
      $region35: #{nat_decoder.8} parent=31 // pred_region
        %p208 = scmp.lt.s32.totalorder %s12, 1
        %s209 = scalar_select %p208, %s12, 1
        %s210 = smul.addr %s209, 4
        %s211 = scalar_lea.vmem %s0, %s210
      $region36: #{nat_decoder.8} parent=31 // pred_fallthru
        _
      // Predicated region
      $region37: #{nat_decoder.8} parent=31 // pred_check
        %p212 = pneg %p142
      $region38: #{nat_decoder.8} parent=31 // pred_check_branch
        %214 = sbr.rel (%p212) target = $region40
      $region39: #{nat_decoder.8} parent=31 // pred_region
        %p215 = scmp.lt.s32.totalorder %s12, 1
        %s216 = scalar_select %p215, %s12, 1
        %s217 = scalar_lea.vmem %s5, %s216
      $region40: #{nat_decoder.8} parent=31 // pred_fallthru
        _
    $region32: #{nat_decoder.8} parent=5 // pred_fallthru
      _
    %p218 = scmp.le.s32.totalorder 1, %s12
    %p219 = scmp.lt.s32.totalorder %s12, 3
    %p220 = pnand %p218, %p219
    %p221 = pneg %p220
    // Predicated region
    $region41: #{nat_decoder.8} parent=5 // pred_check
      _
    $region42: #{nat_decoder.8} parent=5 // pred_check_branch
      %223 = sbr.rel (%p220) target = $region44
    $region43: #{nat_decoder.8} parent=5 // pred_region
      %s224 = ssub.s32 %s12, 1
      %p225 = scmp.lt.s32.totalorder %s17, 1
      %s226 = scalar_select %p225, %s17, 1
      %s227 = smul.addr %s226, 4
      %s228 = scalar_lea.vmem %s0, %s227
      %p229 = pneg %p38
      %p230 = pneg %p35
      %p231 = pneg %p59
      %p232 = pneg %p56
      %p233 = pneg %p80
      %p234 = pneg %p77
      %p235 = pneg %p101
      %p236 = pneg %p98
      %p237 = pneg %p122
      %p238 = pneg %p119
      %p239 = scmp.lt.s32.totalorder %s17, 1
      %s240 = scalar_select %p239, %s17, 1
      %s241 = scalar_lea.vmem %s5, %s240
      %p242 = pneg %p148
      %p243 = pneg %p145
      %p244 = pneg %p174
      %p245 = pneg %p171
      %p246 = scmp.lt.s32.totalorder %s17, 1
      %s247 = scalar_select %p246, %s17, 1
      %s248 = smul.addr %s247, 4
      %s249 = scalar_lea.vmem %s6, %s248
      %p250 = scmp.lt.s32.totalorder %s17, 1
      %s251 = scalar_select %p250, %s17, 1
      %s252 = smul.addr %s251, 4
      %s253 = scalar_lea.vmem %s0, %s252
      %p254 = scmp.lt.s32.totalorder %s17, 1
      %s255 = scalar_select %p254, %s17, 1
      %s256 = scalar_lea.vmem %s5, %s255
      %p257 = scmp.lt.s32.totalorder %s17, 1
      %s258 = scalar_select %p257, %s17, 1
      %s259 = smul.addr %s258, 4
      %s260 = scalar_lea.vmem %s6, %s259
      %v262 = vld [vmem:[%s253] sm:$0xf]
      %v263 = vld [vmem:[%s1] sm:$0xf]
      %v264 = vld [vmem:[%s1 + $0x4] sm:$0xf]
      %v265 = vld [vmem:[%s1 + $0x8] sm:$0xf]
      %v266 = vld [vmem:[%s1 + $0xc] sm:$0xf]
      %v267 = vld [vmem:[%s2] sm:$0x1]
      %v268 = vunpack.c.l.bf16 %v267
      %v269 = vlaneseq
      %v270 = vshrl.u32 %v269, 7
      %v271 = vsub.s32 0, %v270
      %v272 = vrot.slane %v268, %v271
      %v277 = vunpack.c.l.b16 %v263
      %v278 = vunpack.c.l.b16 %v264
      %v279 = vunpack.c.l.b16 %v265
      %v280 = vunpack.c.l.b16 %v266
      %v281 = vpack.c.b16 %v278, %v277
      %v282 = vpack.c.b16 %v280, %v279
      %vm285 = vcmask 261120
      %v287 = vsel %vm285, %v262, 0
      %289 = vmatprep.subr.bf16.mxu0 0
      %290 = vmatpush1.bf16.msra.mxu0 %v281
      %291 = vmatprep.subr.bf16.mxu0 0
      %292 = vmatpush1.bf16.msra.mxu0 %v282
      %293 = vmatprep.subr.bf16.mxu0 0
      %294 = vmatpush1.bf16.msra.mxu0 0
      %295 = vmatprep.subr.bf16.mxu0 0
      %296 = vmatpush1.bf16.msra.mxu0 0
      %297 = vmatprep.subr.bf16.mxu0 0
      %298 = vmatpush1.bf16.msra.mxu0 0
      %299 = vmatprep.subr.bf16.mxu0 0
      %300 = vmatpush1.bf16.msra.mxu0 0
      %301 = vmatprep.subr.bf16.mxu0 0
      %302 = vmatpush1.bf16.msra.mxu0 0
      %303 = vmatprep.subr.bf16.mxu0 0
      %304 = vmatpush1.bf16.msra.mxu0 0
      %305 = vmatprep.subr.bf16.mxu0 0
      %306 = vmatpush1.bf16.msra.mxu0 0
      %307 = vmatprep.subr.bf16.mxu0 0
      %308 = vmatpush1.bf16.msra.mxu0 0
      %309 = vmatprep.subr.bf16.mxu0 0
      %310 = vmatpush1.bf16.msra.mxu0 0
      %311 = vmatprep.subr.bf16.mxu0 0
      %312 = vmatpush1.bf16.msra.mxu0 0
      %313 = vmatprep.subr.bf16.mxu0 0
      %314 = vmatpush1.bf16.msra.mxu0 0
      %315 = vmatprep.subr.bf16.mxu0 0
      %316 = vmatpush1.bf16.msra.mxu0 0
      %317 = vmatprep.subr.bf16.mxu0 0
      %318 = vmatpush1.bf16.msra.mxu0 0
      %319 = vmatprep.subr.bf16.mxu0 0
      %320 = vmatpush1.bf16.msra.mxu0 0
      %321 = vmatprep.mubr.bf16.mxu0 0
      %322 = vmatmul.mubr.bf16.gmra.mrb[0].mxu0 %v287
      %v323 = vpop.f32.mrb[0].mxu0
      %v324 = vadd.f32 %v272, %v323
      %v325 = vpop.f32.mrb[0].mxu0
      %v326 = vpop.f32.mrb[0].mxu0
      %v327 = vpop.f32.mrb[0].mxu0
      %328 = vdwg.mxu0
      %v329 = vpack.c.bf16 %v324, %v324
      %v330 = vld [vmem:[%s256] sm:$0x1]
      %v331 = vld [vmem:[%s3] sm:$0xf]
      %v332 = vld [vmem:[%s3 + $0x4] sm:$0xf]
      %v333 = vld [vmem:[%s3 + $0x8] sm:$0xf]
      %v334 = vld [vmem:[%s3 + $0xc] sm:$0xf]
      %v336 = vlaneseq
      %v337 = vshrl.u32 %v336, 7
      %v338 = vsub.s32 0, %v337
      %v339 = vrot.slane %v330, %v338
      %342 = vrot.lane.b32.xlu0 %v329, 96
      %v343 = vpop.permute.xlu0 %342
      %vm344 = vcmask 64512
      %v346 = vsel %vm344, %v329, 0
      %v349 = vsel %vm344, %v343, 0
      %351 = vmatprep.subr.bf16.mxu0 0
      %352 = vmatpush1.bf16.xpose.msra.mxu0 %v349
      %353 = vmatprep.subr.bf16.mxu0 0
      %354 = vmatpush1.bf16.xpose.msra.mxu0 0
      %355 = vmatprep.subr.bf16.mxu0 0
      %356 = vmatpush1.bf16.xpose.msra.mxu0 0
      %357 = vmatprep.subr.bf16.mxu0 0
      %358 = vmatpush1.bf16.xpose.msra.mxu0 0
      %359 = vmatprep.subr.bf16.mxu0 0
      %360 = vmatpush1.bf16.xpose.msra.mxu0 0
      %361 = vmatprep.subr.bf16.mxu0 0
      %362 = vmatpush1.bf16.xpose.msra.mxu0 0
      %363 = vmatprep.subr.bf16.mxu0 0
      %364 = vmatpush1.bf16.xpose.msra.mxu0 0
      %365 = vmatprep.subr.bf16.mxu0 0
      %366 = vmatpush1.bf16.xpose.msra.mxu0 0
      %367 = vmatprep.subr.bf16.mxu0 0
      %368 = vmatpush1.bf16.xpose.msra.mxu0 0
      %369 = vmatprep.subr.bf16.mxu0 0
      %370 = vmatpush1.bf16.xpose.msra.mxu0 0
      %371 = vmatprep.subr.bf16.mxu0 0
      %372 = vmatpush1.bf16.xpose.msra.mxu0 0
      %373 = vmatprep.subr.bf16.mxu0 0
      %374 = vmatpush1.bf16.xpose.msra.mxu0 0
      %375 = vmatprep.subr.bf16.mxu0 0
      %376 = vmatpush1.bf16.xpose.msra.mxu0 0
      %377 = vmatprep.subr.bf16.mxu0 0
      %378 = vmatpush1.bf16.xpose.msra.mxu0 0
      %379 = vmatprep.subr.bf16.mxu0 0
      %380 = vmatpush1.bf16.xpose.msra.mxu0 0
      %381 = vmatprep.subr.bf16.mxu0 0
      %382 = vmatpush1.bf16.xpose.msra.mxu0 0
      %383 = vmatprep.mubr.bf16.mxu0 0
      %384 = vmatmul.mubr.bf16.gmra.mrb[0].mxu0 %v346
      %v385 = vpop.f32.mrb[0].mxu0
      %v386 = vadd.f32 %v339, %v385
      %v387 = vpop.f32.mrb[0].mxu0
      %v388 = vpop.f32.mrb[0].mxu0
      %v389 = vpop.f32.mrb[0].mxu0
      %390 = vdwg.mxu0
      %v391 = vsel %vm344, %v386, -inf
      %392 = vmax.xlane.f32.xlu0 %v391
      %v393 = vpop.xlane.xlu0 %392
      %v394 = vsub.f32 %v386, %v393
      %v395 = vmul.f32 %v394, 1.442695
      %v396 = vpow.pop %v395
      %v397 = vsel %vm344, %v396, 0.0
      %398 = vadd.xlane.f32.xlu0 %v397
      %v399 = vpop.xlane.xlu0 %398
      %v400 = vrcp.pop %v399
      %v401 = vmul.f32 %v396, %v400
      %v402 = vpack.c.bf16 %v401, %v401
      %403 = vrot.lane.b32.xlu0 %v329, 64
      %v404 = vpop.permute.xlu0 %403
      %v406 = vsel %vm344, %v402, 0
      %vm408 = vcmask 1043456
      %v410 = vsel %vm408, %v404, 0
      %412 = vmatprep.subr.bf16.mxu0 0
      %413 = vmatpush1.bf16.msra.mxu0 %v410
      %414 = vmatprep.subr.bf16.mxu0 0
      %415 = vmatpush1.bf16.msra.mxu0 0
      %416 = vmatprep.subr.bf16.mxu0 0
      %417 = vmatpush1.bf16.msra.mxu0 0
      %418 = vmatprep.subr.bf16.mxu0 0
      %419 = vmatpush1.bf16.msra.mxu0 0
      %420 = vmatprep.subr.bf16.mxu0 0
      %421 = vmatpush1.bf16.msra.mxu0 0
      %422 = vmatprep.subr.bf16.mxu0 0
      %423 = vmatpush1.bf16.msra.mxu0 0
      %424 = vmatprep.subr.bf16.mxu0 0
      %425 = vmatpush1.bf16.msra.mxu0 0
      %426 = vmatprep.subr.bf16.mxu0 0
      %427 = vmatpush1.bf16.msra.mxu0 0
      %428 = vmatprep.subr.bf16.mxu0 0
      %429 = vmatpush1.bf16.msra.mxu0 0
      %430 = vmatprep.subr.bf16.mxu0 0
      %431 = vmatpush1.bf16.msra.mxu0 0
      %432 = vmatprep.subr.bf16.mxu0 0
      %433 = vmatpush1.bf16.msra.mxu0 0
      %434 = vmatprep.subr.bf16.mxu0 0
      %435 = vmatpush1.bf16.msra.mxu0 0
      %436 = vmatprep.subr.bf16.mxu0 0
      %437 = vmatpush1.bf16.msra.mxu0 0
      %438 = vmatprep.subr.bf16.mxu0 0
      %439 = vmatpush1.bf16.msra.mxu0 0
      %440 = vmatprep.subr.bf16.mxu0 0
      %441 = vmatpush1.bf16.msra.mxu0 0
      %442 = vmatprep.subr.bf16.mxu0 0
      %443 = vmatpush1.bf16.msra.mxu0 0
      %444 = vmatprep.mubr.bf16.mxu0 0
      %445 = vmatmul.mubr.bf16.gmra.mrb[0].mxu0 %v406
      %v446 = vpop.f32.mrb[0].mxu0
      %v447 = vadd.f32 0.0, %v446
      %v448 = vpop.f32.mrb[0].mxu0
      %v449 = vpop.f32.mrb[0].mxu0
      %v450 = vpop.f32.mrb[0].mxu0
      %451 = vdwg.mxu0
      %v452 = vpack.c.bf16 %v447, %v447
      %453 = vrot.lane.b32.xlu0 %v329, 120
      %v454 = vpop.permute.xlu0 %453
      %455 = vrot.lane.b32.xlu0 %v329, 88
      %v456 = vpop.permute.xlu0 %455
      %v458 = vsel %vm344, %v454, 0
      %v461 = vsel %vm344, %v456, 0
      %463 = vmatprep.subr.bf16.mxu0 0
      %464 = vmatpush1.bf16.xpose.msra.mxu0 %v461
      %465 = vmatprep.subr.bf16.mxu0 0
      %466 = vmatpush1.bf16.xpose.msra.mxu0 0
      %467 = vmatprep.subr.bf16.mxu0 0
      %468 = vmatpush1.bf16.xpose.msra.mxu0 0
      %469 = vmatprep.subr.bf16.mxu0 0
      %470 = vmatpush1.bf16.xpose.msra.mxu0 0
      %471 = vmatprep.subr.bf16.mxu0 0
      %472 = vmatpush1.bf16.xpose.msra.mxu0 0
      %473 = vmatprep.subr.bf16.mxu0 0
      %474 = vmatpush1.bf16.xpose.msra.mxu0 0
      %475 = vmatprep.subr.bf16.mxu0 0
      %476 = vmatpush1.bf16.xpose.msra.mxu0 0
      %477 = vmatprep.subr.bf16.mxu0 0
      %478 = vmatpush1.bf16.xpose.msra.mxu0 0
      %479 = vmatprep.subr.bf16.mxu0 0
      %480 = vmatpush1.bf16.xpose.msra.mxu0 0
      %481 = vmatprep.subr.bf16.mxu0 0
      %482 = vmatpush1.bf16.xpose.msra.mxu0 0
      %483 = vmatprep.subr.bf16.mxu0 0
      %484 = vmatpush1.bf16.xpose.msra.mxu0 0
      %485 = vmatprep.subr.bf16.mxu0 0
      %486 = vmatpush1.bf16.xpose.msra.mxu0 0
      %487 = vmatprep.subr.bf16.mxu0 0
      %488 = vmatpush1.bf16.xpose.msra.mxu0 0
      %489 = vmatprep.subr.bf16.mxu0 0
      %490 = vmatpush1.bf16.xpose.msra.mxu0 0
      %491 = vmatprep.subr.bf16.mxu0 0
      %492 = vmatpush1.bf16.xpose.msra.mxu0 0
      %493 = vmatprep.subr.bf16.mxu0 0
      %494 = vmatpush1.bf16.xpose.msra.mxu0 0
      %495 = vmatprep.mubr.bf16.mxu0 0
      %496 = vmatmul.mubr.bf16.gmra.mrb[0].mxu0 %v458
      %v497 = vpop.f32.mrb[0].mxu0
      %v498 = vadd.f32 %v339, %v497
      %v499 = vpop.f32.mrb[0].mxu0
      %v500 = vpop.f32.mrb[0].mxu0
      %v501 = vpop.f32.mrb[0].mxu0
      %502 = vdwg.mxu0
      %v503 = vsel %vm344, %v498, -inf
      %504 = vmax.xlane.f32.xlu0 %v503
      %v505 = vpop.xlane.xlu0 %504
      %v506 = vsub.f32 %v498, %v505
      %v507 = vmul.f32 %v506, 1.442695
      %v508 = vpow.pop %v507
      %v509 = vsel %vm344, %v508, 0.0
      %510 = vadd.xlane.f32.xlu0 %v509
      %v511 = vpop.xlane.xlu0 %510
      %v512 = vrcp.pop %v511
      %v513 = vmul.f32 %v508, %v512
      %v514 = vpack.c.bf16 %v513, %v513
      %515 = vrot.lane.b32.xlu0 %v329, 56
      %v516 = vpop.permute.xlu0 %515
      %v518 = vsel %vm344, %v514, 0
      %v521 = vsel %vm408, %v516, 0
      %523 = vmatprep.subr.bf16.mxu0 0
      %524 = vmatpush1.bf16.msra.mxu0 %v521
      %525 = vmatprep.subr.bf16.mxu0 0
      %526 = vmatpush1.bf16.msra.mxu0 0
      %527 = vmatprep.subr.bf16.mxu0 0
      %528 = vmatpush1.bf16.msra.mxu0 0
      %529 = vmatprep.subr.bf16.mxu0 0
      %530 = vmatpush1.bf16.msra.mxu0 0
      %531 = vmatprep.subr.bf16.mxu0 0
      %532 = vmatpush1.bf16.msra.mxu0 0
      %533 = vmatprep.subr.bf16.mxu0 0
      %534 = vmatpush1.bf16.msra.mxu0 0
      %535 = vmatprep.subr.bf16.mxu0 0
      %536 = vmatpush1.bf16.msra.mxu0 0
      %537 = vmatprep.subr.bf16.mxu0 0
      %538 = vmatpush1.bf16.msra.mxu0 0
      %539 = vmatprep.subr.bf16.mxu0 0
      %540 = vmatpush1.bf16.msra.mxu0 0
      %541 = vmatprep.subr.bf16.mxu0 0
      %542 = vmatpush1.bf16.msra.mxu0 0
      %543 = vmatprep.subr.bf16.mxu0 0
      %544 = vmatpush1.bf16.msra.mxu0 0
      %545 = vmatprep.subr.bf16.mxu0 0
      %546 = vmatpush1.bf16.msra.mxu0 0
      %547 = vmatprep.subr.bf16.mxu0 0
      %548 = vmatpush1.bf16.msra.mxu0 0
      %549 = vmatprep.subr.bf16.mxu0 0
      %550 = vmatpush1.bf16.msra.mxu0 0
      %551 = vmatprep.subr.bf16.mxu0 0
      %552 = vmatpush1.bf16.msra.mxu0 0
      %553 = vmatprep.subr.bf16.mxu0 0
      %554 = vmatpush1.bf16.msra.mxu0 0
      %555 = vmatprep.mubr.bf16.mxu0 0
      %556 = vmatmul.mubr.bf16.gmra.mrb[0].mxu0 %v518
      %v557 = vpop.f32.mrb[0].mxu0
      %v558 = vadd.f32 0.0, %v557
      %v559 = vpop.f32.mrb[0].mxu0
      %v560 = vpop.f32.mrb[0].mxu0
      %v561 = vpop.f32.mrb[0].mxu0
      %562 = vdwg.mxu0
      %v563 = vpack.c.bf16 %v558, %v558
      %v565 = vsel %vm344, %v563, 0
      %v568 = vsel %vm408, %v332, 0
      %570 = vmatprep.subr.bf16.mxu0 0
      %571 = vmatpush1.bf16.msra.mxu0 %v568
      %572 = vmatprep.subr.bf16.mxu0 0
      %573 = vmatpush1.bf16.msra.mxu0 0
      %574 = vmatprep.subr.bf16.mxu0 0
      %575 = vmatpush1.bf16.msra.mxu0 0
      %576 = vmatprep.subr.bf16.mxu0 0
      %577 = vmatpush1.bf16.msra.mxu0 0
      %578 = vmatprep.subr.bf16.mxu0 0
      %579 = vmatpush1.bf16.msra.mxu0 0
      %580 = vmatprep.subr.bf16.mxu0 0
      %581 = vmatpush1.bf16.msra.mxu0 0
      %582 = vmatprep.subr.bf16.mxu0 0
      %583 = vmatpush1.bf16.msra.mxu0 0
      %584 = vmatprep.subr.bf16.mxu0 0
      %585 = vmatpush1.bf16.msra.mxu0 0
      %586 = vmatprep.subr.bf16.mxu0 0
      %587 = vmatpush1.bf16.msra.mxu0 0
      %588 = vmatprep.subr.bf16.mxu0 0
      %589 = vmatpush1.bf16.msra.mxu0 0
      %590 = vmatprep.subr.bf16.mxu0 0
      %591 = vmatpush1.bf16.msra.mxu0 0
      %592 = vmatprep.subr.bf16.mxu0 0
      %593 = vmatpush1.bf16.msra.mxu0 0
      %594 = vmatprep.subr.bf16.mxu0 0
      %595 = vmatpush1.bf16.msra.mxu0 0
      %596 = vmatprep.subr.bf16.mxu0 0
      %597 = vmatpush1.bf16.msra.mxu0 0
      %598 = vmatprep.subr.bf16.mxu0 0
      %599 = vmatpush1.bf16.msra.mxu0 0
      %600 = vmatprep.subr.bf16.mxu0 0
      %601 = vmatpush1.bf16.msra.mxu0 0
      %602 = vmatprep.mubr.bf16.mxu0 0
      %603 = vmatmul.mubr.bf16.gmra.mrb[0].mxu0 %v565
      %v604 = vpop.f32.mrb[0].mxu0
      %v605 = vadd.f32 0.0, %v604
      %v606 = vpop.f32.mrb[0].mxu0
      %v607 = vpop.f32.mrb[0].mxu0
      %v608 = vpop.f32.mrb[0].mxu0
      %609 = vdwg.mxu0
      %v611 = vsel %vm344, %v452, 0
      %v614 = vsel %vm408, %v331, 0
      %616 = vmatprep.subr.bf16.mxu0 0
      %617 = vmatpush1.bf16.msra.mxu0 %v614
      %618 = vmatprep.subr.bf16.mxu0 0
      %619 = vmatpush1.bf16.msra.mxu0 0
      %620 = vmatprep.subr.bf16.mxu0 0
      %621 = vmatpush1.bf16.msra.mxu0 0
      %622 = vmatprep.subr.bf16.mxu0 0
      %623 = vmatpush1.bf16.msra.mxu0 0
      %624 = vmatprep.subr.bf16.mxu0 0
      %625 = vmatpush1.bf16.msra.mxu0 0
      %626 = vmatprep.subr.bf16.mxu0 0
      %627 = vmatpush1.bf16.msra.mxu0 0
      %628 = vmatprep.subr.bf16.mxu0 0
      %629 = vmatpush1.bf16.msra.mxu0 0
      %630 = vmatprep.subr.bf16.mxu0 0
      %631 = vmatpush1.bf16.msra.mxu0 0
      %632 = vmatprep.subr.bf16.mxu0 0
      %633 = vmatpush1.bf16.msra.mxu0 0
      %634 = vmatprep.subr.bf16.mxu0 0
      %635 = vmatpush1.bf16.msra.mxu0 0
      %636 = vmatprep.subr.bf16.mxu0 0
      %637 = vmatpush1.bf16.msra.mxu0 0
      %638 = vmatprep.subr.bf16.mxu0 0
      %639 = vmatpush1.bf16.msra.mxu0 0
      %640 = vmatprep.subr.bf16.mxu0 0
      %641 = vmatpush1.bf16.msra.mxu0 0
      %642 = vmatprep.subr.bf16.mxu0 0
      %643 = vmatpush1.bf16.msra.mxu0 0
      %644 = vmatprep.subr.bf16.mxu0 0
      %645 = vmatpush1.bf16.msra.mxu0 0
      %646 = vmatprep.subr.bf16.mxu0 0
      %647 = vmatpush1.bf16.msra.mxu0 0
      %648 = vmatprep.mubr.bf16.mxu0 0
      %649 = vmatmul.mubr.bf16.gmra.mrb[0].mxu0 %v611
      %v650 = vpop.f32.mrb[0].mxu0
      %v651 = vadd.f32 %v605, %v650
      %v652 = vpop.f32.mrb[0].mxu0
      %v653 = vpop.f32.mrb[0].mxu0
      %v654 = vpop.f32.mrb[0].mxu0
      %655 = vdwg.mxu0
      %656 = vrot.lane.b32.xlu0 %v329, 112
      %v657 = vpop.permute.xlu0 %656
      %658 = vrot.lane.b32.xlu0 %v329, 80
      %v659 = vpop.permute.xlu0 %658
      %v661 = vsel %vm344, %v657, 0
      %v664 = vsel %vm344, %v659, 0
      %666 = vmatprep.subr.bf16.mxu0 0
      %667 = vmatpush1.bf16.xpose.msra.mxu0 %v664
      %668 = vmatprep.subr.bf16.mxu0 0
      %669 = vmatpush1.bf16.xpose.msra.mxu0 0
      %670 = vmatprep.subr.bf16.mxu0 0
      %671 = vmatpush1.bf16.xpose.msra.mxu0 0
      %672 = vmatprep.subr.bf16.mxu0 0
      %673 = vmatpush1.bf16.xpose.msra.mxu0 0
      %674 = vmatprep.subr.bf16.mxu0 0
      %675 = vmatpush1.bf16.xpose.msra.mxu0 0
      %676 = vmatprep.subr.bf16.mxu0 0
      %677 = vmatpush1.bf16.xpose.msra.mxu0 0
      %678 = vmatprep.subr.bf16.mxu0 0
      %679 = vmatpush1.bf16.xpose.msra.mxu0 0
      %680 = vmatprep.subr.bf16.mxu0 0
      %681 = vmatpush1.bf16.xpose.msra.mxu0 0
      %682 = vmatprep.subr.bf16.mxu0 0
      %683 = vmatpush1.bf16.xpose.msra.mxu0 0
      %684 = vmatprep.subr.bf16.mxu0 0
      %685 = vmatpush1.bf16.xpose.msra.mxu0 0
      %686 = vmatprep.subr.bf16.mxu0 0
      %687 = vmatpush1.bf16.xpose.msra.mxu0 0
      %688 = vmatprep.subr.bf16.mxu0 0
      %689 = vmatpush1.bf16.xpose.msra.mxu0 0
      %690 = vmatprep.subr.bf16.mxu0 0
      %691 = vmatpush1.bf16.xpose.msra.mxu0 0
      %692 = vmatprep.subr.bf16.mxu0 0
      %693 = vmatpush1.bf16.xpose.msra.mxu0 0
      %694 = vmatprep.subr.bf16.mxu0 0
      %695 = vmatpush1.bf16.xpose.msra.mxu0 0
      %696 = vmatprep.subr.bf16.mxu0 0
      %697 = vmatpush1.bf16.xpose.msra.mxu0 0
      %698 = vmatprep.mubr.bf16.mxu0 0
      %699 = vmatmul.mubr.bf16.gmra.mrb[0].mxu0 %v661
      %v700 = vpop.f32.mrb[0].mxu0
      %v701 = vadd.f32 %v339, %v700
      %v702 = vpop.f32.mrb[0].mxu0
      %v703 = vpop.f32.mrb[0].mxu0
      %v704 = vpop.f32.mrb[0].mxu0
      %705 = vdwg.mxu0
      %v706 = vsel %vm344, %v701, -inf
      %707 = vmax.xlane.f32.xlu0 %v706
      %v708 = vpop.xlane.xlu0 %707
      %v709 = vsub.f32 %v701, %v708
      %v710 = vmul.f32 %v709, 1.442695
      %v711 = vpow.pop %v710
      %v712 = vsel %vm344, %v711, 0.0
      %713 = vadd.xlane.f32.xlu0 %v712
      %v714 = vpop.xlane.xlu0 %713
      %v715 = vrcp.pop %v714
      %v716 = vmul.f32 %v711, %v715
      %v717 = vpack.c.bf16 %v716, %v716
      %718 = vrot.lane.b32.xlu0 %v329, 48
      %v719 = vpop.permute.xlu0 %718
      %v721 = vsel %vm344, %v717, 0
      %v724 = vsel %vm408, %v719, 0
      %726 = vmatprep.subr.bf16.mxu0 0
      %727 = vmatpush1.bf16.msra.mxu0 %v724
      %728 = vmatprep.subr.bf16.mxu0 0
      %729 = vmatpush1.bf16.msra.mxu0 0
      %730 = vmatprep.subr.bf16.mxu0 0
      %731 = vmatpush1.bf16.msra.mxu0 0
      %732 = vmatprep.subr.bf16.mxu0 0
      %733 = vmatpush1.bf16.msra.mxu0 0
      %734 = vmatprep.subr.bf16.mxu0 0
      %735 = vmatpush1.bf16.msra.mxu0 0
      %736 = vmatprep.subr.bf16.mxu0 0
      %737 = vmatpush1.bf16.msra.mxu0 0
      %738 = vmatprep.subr.bf16.mxu0 0
      %739 = vmatpush1.bf16.msra.mxu0 0
      %740 = vmatprep.subr.bf16.mxu0 0
      %741 = vmatpush1.bf16.msra.mxu0 0
      %742 = vmatprep.subr.bf16.mxu0 0
      %743 = vmatpush1.bf16.msra.mxu0 0
      %744 = vmatprep.subr.bf16.mxu0 0
      %745 = vmatpush1.bf16.msra.mxu0 0
      %746 = vmatprep.subr.bf16.mxu0 0
      %747 = vmatpush1.bf16.msra.mxu0 0
      %748 = vmatprep.subr.bf16.mxu0 0
      %749 = vmatpush1.bf16.msra.mxu0 0
      %750 = vmatprep.subr.bf16.mxu0 0
      %751 = vmatpush1.bf16.msra.mxu0 0
      %752 = vmatprep.subr.bf16.mxu0 0
      %753 = vmatpush1.bf16.msra.mxu0 0
      %754 = vmatprep.subr.bf16.mxu0 0
      %755 = vmatpush1.bf16.msra.mxu0 0
      %756 = vmatprep.subr.bf16.mxu0 0
      %757 = vmatpush1.bf16.msra.mxu0 0
      %758 = vmatprep.mubr.bf16.mxu0 0
      %759 = vmatmul.mubr.bf16.gmra.mrb[0].mxu0 %v721
      %v760 = vpop.f32.mrb[0].mxu0
      %v761 = vadd.f32 0.0, %v760
      %v762 = vpop.f32.mrb[0].mxu0
      %v763 = vpop.f32.mrb[0].mxu0
      %v764 = vpop.f32.mrb[0].mxu0
      %765 = vdwg.mxu0
      %v766 = vpack.c.bf16 %v761, %v761
      %v768 = vsel %vm344, %v766, 0
      %v771 = vsel %vm408, %v333, 0
      %773 = vmatprep.subr.bf16.mxu0 0
      %774 = vmatpush1.bf16.msra.mxu0 %v771
      %775 = vmatprep.subr.bf16.mxu0 0
      %776 = vmatpush1.bf16.msra.mxu0 0
      %777 = vmatprep.subr.bf16.mxu0 0
      %778 = vmatpush1.bf16.msra.mxu0 0
      %779 = vmatprep.subr.bf16.mxu0 0
      %780 = vmatpush1.bf16.msra.mxu0 0
      %781 = vmatprep.subr.bf16.mxu0 0
      %782 = vmatpush1.bf16.msra.mxu0 0
      %783 = vmatprep.subr.bf16.mxu0 0
      %784 = vmatpush1.bf16.msra.mxu0 0
      %785 = vmatprep.subr.bf16.mxu0 0
      %786 = vmatpush1.bf16.msra.mxu0 0
      %787 = vmatprep.subr.bf16.mxu0 0
      %788 = vmatpush1.bf16.msra.mxu0 0
      %789 = vmatprep.subr.bf16.mxu0 0
      %790 = vmatpush1.bf16.msra.mxu0 0
      %791 = vmatprep.subr.bf16.mxu0 0
      %792 = vmatpush1.bf16.msra.mxu0 0
      %793 = vmatprep.subr.bf16.mxu0 0
      %794 = vmatpush1.bf16.msra.mxu0 0
      %795 = vmatprep.subr.bf16.mxu0 0
      %796 = vmatpush1.bf16.msra.mxu0 0
      %797 = vmatprep.subr.bf16.mxu0 0
      %798 = vmatpush1.bf16.msra.mxu0 0
      %799 = vmatprep.subr.bf16.mxu0 0
      %800 = vmatpush1.bf16.msra.mxu0 0
      %801 = vmatprep.subr.bf16.mxu0 0
      %802 = vmatpush1.bf16.msra.mxu0 0
      %803 = vmatprep.subr.bf16.mxu0 0
      %804 = vmatpush1.bf16.msra.mxu0 0
      %805 = vmatprep.mubr.bf16.mxu0 0
      %806 = vmatmul.mubr.bf16.gmra.mrb[0].mxu0 %v768
      %v807 = vpop.f32.mrb[0].mxu0
      %v808 = vadd.f32 0.0, %v807
      %v809 = vpop.f32.mrb[0].mxu0
      %v810 = vpop.f32.mrb[0].mxu0
      %v811 = vpop.f32.mrb[0].mxu0
      %812 = vdwg.mxu0
      %v813 = vadd.f32 %v651, %v808
      %814 = vrot.lane.b32.xlu0 %v329, 104
      %v815 = vpop.permute.xlu0 %814
      %816 = vrot.lane.b32.xlu0 %v329, 72
      %v817 = vpop.permute.xlu0 %816
      %v819 = vsel %vm344, %v815, 0
      %v822 = vsel %vm344, %v817, 0
      %824 = vmatprep.subr.bf16.mxu0 0
      %825 = vmatpush1.bf16.xpose.msra.mxu0 %v822
      %826 = vmatprep.subr.bf16.mxu0 0
      %827 = vmatpush1.bf16.xpose.msra.mxu0 0
      %828 = vmatprep.subr.bf16.mxu0 0
      %829 = vmatpush1.bf16.xpose.msra.mxu0 0
      %830 = vmatprep.subr.bf16.mxu0 0
      %831 = vmatpush1.bf16.xpose.msra.mxu0 0
      %832 = vmatprep.subr.bf16.mxu0 0
      %833 = vmatpush1.bf16.xpose.msra.mxu0 0
      %834 = vmatprep.subr.bf16.mxu0 0
      %835 = vmatpush1.bf16.xpose.msra.mxu0 0
      %836 = vmatprep.subr.bf16.mxu0 0
      %837 = vmatpush1.bf16.xpose.msra.mxu0 0
      %838 = vmatprep.subr.bf16.mxu0 0
      %839 = vmatpush1.bf16.xpose.msra.mxu0 0
      %840 = vmatprep.subr.bf16.mxu0 0
      %841 = vmatpush1.bf16.xpose.msra.mxu0 0
      %842 = vmatprep.subr.bf16.mxu0 0
      %843 = vmatpush1.bf16.xpose.msra.mxu0 0
      %844 = vmatprep.subr.bf16.mxu0 0
      %845 = vmatpush1.bf16.xpose.msra.mxu0 0
      %846 = vmatprep.subr.bf16.mxu0 0
      %847 = vmatpush1.bf16.xpose.msra.mxu0 0
      %848 = vmatprep.subr.bf16.mxu0 0
      %849 = vmatpush1.bf16.xpose.msra.mxu0 0
      %850 = vmatprep.subr.bf16.mxu0 0
      %851 = vmatpush1.bf16.xpose.msra.mxu0 0
      %852 = vmatprep.subr.bf16.mxu0 0
      %853 = vmatpush1.bf16.xpose.msra.mxu0 0
      %854 = vmatprep.subr.bf16.mxu0 0
      %855 = vmatpush1.bf16.xpose.msra.mxu0 0
      %856 = vmatprep.mubr.bf16.mxu0 0
      %857 = vmatmul.mubr.bf16.gmra.mrb[0].mxu0 %v819
      %v858 = vpop.f32.mrb[0].mxu0
      %v859 = vadd.f32 %v339, %v858
      %v860 = vpop.f32.mrb[0].mxu0
      %v861 = vpop.f32.mrb[0].mxu0
      %v862 = vpop.f32.mrb[0].mxu0
      %863 = vdwg.mxu0
      %v864 = vsel %vm344, %v859, -inf
      %865 = vmax.xlane.f32.xlu0 %v864
      %v866 = vpop.xlane.xlu0 %865
      %v867 = vsub.f32 %v859, %v866
      %v868 = vmul.f32 %v867, 1.442695
      %v869 = vpow.pop %v868
      %v870 = vsel %vm344, %v869, 0.0
      %871 = vadd.xlane.f32.xlu0 %v870
      %v872 = vpop.xlane.xlu0 %871
      %v873 = vrcp.pop %v872
      %v874 = vmul.f32 %v869, %v873
      %v875 = vpack.c.bf16 %v874, %v874
      %876 = vrot.lane.b32.xlu0 %v329, 40
      %v877 = vpop.permute.xlu0 %876
      %v879 = vsel %vm344, %v875, 0
      %v882 = vsel %vm408, %v877, 0
      %884 = vmatprep.subr.bf16.mxu0 0
      %885 = vmatpush1.bf16.msra.mxu0 %v882
      %886 = vmatprep.subr.bf16.mxu0 0
      %887 = vmatpush1.bf16.msra.mxu0 0
      %888 = vmatprep.subr.bf16.mxu0 0
      %889 = vmatpush1.bf16.msra.mxu0 0
      %890 = vmatprep.subr.bf16.mxu0 0
      %891 = vmatpush1.bf16.msra.mxu0 0
      %892 = vmatprep.subr.bf16.mxu0 0
      %893 = vmatpush1.bf16.msra.mxu0 0
      %894 = vmatprep.subr.bf16.mxu0 0
      %895 = vmatpush1.bf16.msra.mxu0 0
      %896 = vmatprep.subr.bf16.mxu0 0
      %897 = vmatpush1.bf16.msra.mxu0 0
      %898 = vmatprep.subr.bf16.mxu0 0
      %899 = vmatpush1.bf16.msra.mxu0 0
      %900 = vmatprep.subr.bf16.mxu0 0
      %901 = vmatpush1.bf16.msra.mxu0 0
      %902 = vmatprep.subr.bf16.mxu0 0
      %903 = vmatpush1.bf16.msra.mxu0 0
      %904 = vmatprep.subr.bf16.mxu0 0
      %905 = vmatpush1.bf16.msra.mxu0 0
      %906 = vmatprep.subr.bf16.mxu0 0
      %907 = vmatpush1.bf16.msra.mxu0 0
      %908 = vmatprep.subr.bf16.mxu0 0
      %909 = vmatpush1.bf16.msra.mxu0 0
      %910 = vmatprep.subr.bf16.mxu0 0
      %911 = vmatpush1.bf16.msra.mxu0 0
      %912 = vmatprep.subr.bf16.mxu0 0
      %913 = vmatpush1.bf16.msra.mxu0 0
      %914 = vmatprep.subr.bf16.mxu0 0
      %915 = vmatpush1.bf16.msra.mxu0 0
      %916 = vmatprep.mubr.bf16.mxu0 0
      %917 = vmatmul.mubr.bf16.gmra.mrb[0].mxu0 %v879
      %v918 = vpop.f32.mrb[0].mxu0
      %v919 = vadd.f32 0.0, %v918
      %v920 = vpop.f32.mrb[0].mxu0
      %v921 = vpop.f32.mrb[0].mxu0
      %v922 = vpop.f32.mrb[0].mxu0
      %923 = vdwg.mxu0
      %v924 = vpack.c.bf16 %v919, %v919
      %v926 = vsel %vm344, %v924, 0
      %v929 = vsel %vm408, %v334, 0
      %931 = vmatprep.subr.bf16.mxu0 0
      %932 = vmatpush1.bf16.msra.mxu0 %v929
      %933 = vmatprep.subr.bf16.mxu0 0
      %934 = vmatpush1.bf16.msra.mxu0 0
      %935 = vmatprep.subr.bf16.mxu0 0
      %936 = vmatpush1.bf16.msra.mxu0 0
      %937 = vmatprep.subr.bf16.mxu0 0
      %938 = vmatpush1.bf16.msra.mxu0 0
      %939 = vmatprep.subr.bf16.mxu0 0
      %940 = vmatpush1.bf16.msra.mxu0 0
      %941 = vmatprep.subr.bf16.mxu0 0
      %942 = vmatpush1.bf16.msra.mxu0 0
      %943 = vmatprep.subr.bf16.mxu0 0
      %944 = vmatpush1.bf16.msra.mxu0 0
      %945 = vmatprep.subr.bf16.mxu0 0
      %946 = vmatpush1.bf16.msra.mxu0 0
      %947 = vmatprep.subr.bf16.mxu0 0
      %948 = vmatpush1.bf16.msra.mxu0 0
      %949 = vmatprep.subr.bf16.mxu0 0
      %950 = vmatpush1.bf16.msra.mxu0 0
      %951 = vmatprep.subr.bf16.mxu0 0
      %952 = vmatpush1.bf16.msra.mxu0 0
      %953 = vmatprep.subr.bf16.mxu0 0
      %954 = vmatpush1.bf16.msra.mxu0 0
      %955 = vmatprep.subr.bf16.mxu0 0
      %956 = vmatpush1.bf16.msra.mxu0 0
      %957 = vmatprep.subr.bf16.mxu0 0
      %958 = vmatpush1.bf16.msra.mxu0 0
      %959 = vmatprep.subr.bf16.mxu0 0
      %960 = vmatpush1.bf16.msra.mxu0 0
      %961 = vmatprep.subr.bf16.mxu0 0
      %962 = vmatpush1.bf16.msra.mxu0 0
      %963 = vmatprep.mubr.bf16.mxu0 0
      %964 = vmatmul.mubr.bf16.gmra.mrb[0].mxu0 %v926
      %v965 = vpop.f32.mrb[0].mxu0
      %v966 = vadd.f32 0.0, %v965
      %v967 = vpop.f32.mrb[0].mxu0
      %v968 = vpop.f32.mrb[0].mxu0
      %v969 = vpop.f32.mrb[0].mxu0
      %970 = vdwg.mxu0
      %v971 = vadd.f32 %v813, %v966
      %v972 = vld [vmem:[%s4] sm:$0x1]
      %v973 = vunpack.c.l.bf16 %v972
      %v974 = vlaneseq
      %v975 = vshrl.u32 %v974, 7
      %v976 = vsub.s32 0, %v975
      %v977 = vrot.slane %v973, %v976
      %v978 = vadd.f32 %v971, %v977
      %v979 = vpack.c.bf16 %v978, %v978
      %vm980 = vcmask 257024
      %981 = vst.msk [vmem:[%s260] sm:$0xf] %vm980, %v979
      %p982 = scmp.lt.s32.totalorder %s17, 1
      %s983 = scalar_select %p982, %s17, 1
      %s984 = smul.addr %s983, 4
      %s985 = scalar_lea.vmem %s6, %s984
      // Predicated region
      $region45: #{nat_decoder.8} parent=43 // pred_check
        %p986 = pneg %p171
      $region46: #{nat_decoder.8} parent=43 // pred_check_branch
        %988 = sbr.rel (%p986) target = $region48
      $region47: #{nat_decoder.8} parent=43 // pred_region
        _
      $region48: #{nat_decoder.8} parent=43 // pred_fallthru
        _
    $region44: #{nat_decoder.8} parent=5 // pred_fallthru
      _
    %p989 = scmp.le.s32.totalorder 2, %s12
    // Predicated region
    $region49: #{nat_decoder.8} parent=5 // pred_check
      %p990 = pneg %p989
    $region50: #{nat_decoder.8} parent=5 // pred_check_branch
      %992 = sbr.rel (%p990) target = $region52
    $region51: #{nat_decoder.8} parent=5 // pred_region
      %s993 = ssub.s32 %s12, 2
      // Predicated region
      $region53: #{nat_decoder.8} parent=51 // pred_check
        %p994 = pneg %p177
      $region54: #{nat_decoder.8} parent=51 // pred_check_branch
        %996 = sbr.rel (%p994) target = $region56
      $region55: #{nat_decoder.8} parent=51 // pred_region
        %p997 = scmp.lt.s32.totalorder %s18, 1
        %s998 = scalar_select %p997, %s18, 1
        %s999 = smul.addr %s998, 4
        %s1000 = scalar_lea.vmem %s6, %s999
      $region56: #{nat_decoder.8} parent=51 // pred_fallthru
        _
    $region52: #{nat_decoder.8} parent=5 // pred_fallthru
      _
  $region6: #{nat_decoder.8} parent=0 // loop_footer
    %s16 = sadd.s32 1, %s12
  $region7: #{nat_decoder.8} parent=0 // loop_footer_branch
    %11 = sbr.rel target = $region3
  $region8: #{nat_decoder.8} parent=0 // loop_exit
    _

// kernel: nat_decoder.11
$region0: #{nat_decoder.11}
  #allocation0 [shape = 'u32[]', space=smem, size = 0x4, offset = 0x4, fixed_abs, tag = 'smem constant byte address 0x4 - core index']
  #allocation1 [shape = 'u32[144,128]{1,0:T(1,128)}', space=vmem, size = 0x12000, scoped, tag = 'internal scratch']
  #allocation2 [shape = 'f32[16,32]{1,0:T(8,128)}', space=vmem, size = 0x2000, scoped, tag = 'scratch operand']
  %s0 = inlined_call_operand.vmem [shape: bf16[16,32], index: 0, kind: input, shape index: {}]
  %s1 = inlined_call_operand.vmem [shape: bf16[32,128], index: 1, kind: input, shape index: {}]
  %s2 = inlined_call_operand.vmem [shape: bf16[1,128], index: 2, kind: input, shape index: {}]
  %s3 = inlined_call_operand.vmem [shape: bf16[128,32], index: 3, kind: input, shape index: {}]
  %s4 = inlined_call_operand.vmem [shape: bf16[1,32], index: 4, kind: input, shape index: {}]
  %s5 = inlined_call_operand.vmem [shape: bf16[16,32], index: 5, kind: output, shape index: {}]
  %s6 = sld [smem:[#allocation0]]
  $region38: #{nat_decoder.11} parent=0
    _
  %s8 = ssub.s32 1, %s6
  %s9 = scalar_select 0, %s8, %s6
  // Predicated region
  $region2: #{nat_decoder.11} parent=0 // pred_check
    _
  $region3: #{nat_decoder.11} parent=0 // pred_check_branch
    %11 = sbr.rel (0) target = $region5
  $region4: #{nat_decoder.11} parent=0 // pred_region
    _
  $region5: #{nat_decoder.11} parent=0 // pred_fallthru
    _
  // Predicated region
  $region6: #{nat_decoder.11} parent=0 // pred_check
    _
  $region7: #{nat_decoder.11} parent=0 // pred_check_branch
    %13 = sbr.rel (0) target = $region9
  $region8: #{nat_decoder.11} parent=0 // pred_region
    _
  $region9: #{nat_decoder.11} parent=0 // pred_fallthru
    _
  // Predicated region
  $region10: #{nat_decoder.11} parent=0 // pred_check
    _
  $region11: #{nat_decoder.11} parent=0 // pred_check_branch
    %15 = sbr.rel (0) target = $region13
  $region12: #{nat_decoder.11} parent=0 // pred_region
    _
  $region13: #{nat_decoder.11} parent=0 // pred_fallthru
    _
  // Predicated region
  $region14: #{nat_decoder.11} parent=0 // pred_check
    _
  $region15: #{nat_decoder.11} parent=0 // pred_check_branch
    %17 = sbr.rel (0) target = $region17
  $region16: #{nat_decoder.11} parent=0 // pred_region
    _
  $region17: #{nat_decoder.11} parent=0 // pred_fallthru
    _
  // Predicated region
  $region18: #{nat_decoder.11} parent=0 // pred_check
    _
  $region19: #{nat_decoder.11} parent=0 // pred_check_branch
    %19 = sbr.rel (0) target = $region21
  $region20: #{nat_decoder.11} parent=0 // pred_region
    _
  $region21: #{nat_decoder.11} parent=0 // pred_fallthru
    _
  %p21 = scmp.eq.s32.totalorder 0, 0
  // Predicated region
  $region22: #{nat_decoder.11} parent=0 // pred_check
    %p22 = pneg %p21
  $region23: #{nat_decoder.11} parent=0 // pred_check_branch
    %24 = sbr.rel (%p22) target = $region25
  $region24: #{nat_decoder.11} parent=0 // pred_region
    %vm25 = vcmask 261120
    %26 = vst.msk [vmem:[#allocation2] sm:$0xff] %vm25, 0.0
    %27 = vst.msk [vmem:[#allocation2 + $0x8] sm:$0xff] %vm25, 0.0
  $region25: #{nat_decoder.11} parent=0 // pred_fallthru
    _
  %v28 = vld [vmem:[%s0] sm:$0xf]
  %v29 = vld [vmem:[%s0 + $0x4] sm:$0xf]
  %v30 = vld [vmem:[%s1] sm:$0xf]
  %v31 = vld [vmem:[%s1 + $0x4] sm:$0xf]
  %v32 = vld [vmem:[%s1 + $0x8] sm:$0xf]
  %v33 = vld [vmem:[%s1 + $0xc] sm:$0xf]
  %v34 = vld [vmem:[%s2] sm:$0x1]
  %v35 = vunpack.c.l.bf16 %v34
  %v36 = vlaneseq
  %v37 = vshrl.u32 %v36, 7
  %v38 = vsub.s32 0, %v37
  %v39 = vrot.slane %v35, %v38
  %v42 = vunpack.c.l.b16 %v28
  %v43 = vunpack.c.l.b16 %v29
  %v44 = vpack.c.b16 %v43, %v42
  %v49 = vunpack.c.l.b16 %v30
  %v50 = vunpack.c.l.b16 %v31
  %v51 = vunpack.c.l.b16 %v32
  %v52 = vunpack.c.l.b16 %v33
  %v53 = vpack.c.b16 %v50, %v49
  %v54 = vpack.c.b16 %v52, %v51
  %vm57 = vcmask 261120
  %v59 = vsel %vm57, %v44, 0
  %61 = vmatprep.subr.bf16.mxu0 0
  %62 = vmatpush1.bf16.msra.mxu0 %v53
  %63 = vmatprep.subr.bf16.mxu0 0
  %64 = vmatpush1.bf16.msra.mxu0 %v54
  %65 = vmatprep.subr.bf16.mxu0 0
  %66 = vmatpush1.bf16.msra.mxu0 0
  %67 = vmatprep.subr.bf16.mxu0 0
  %68 = vmatpush1.bf16.msra.mxu0 0
  %69 = vmatprep.subr.bf16.mxu0 0
  %70 = vmatpush1.bf16.msra.mxu0 0
  %71 = vmatprep.subr.bf16.mxu0 0
  %72 = vmatpush1.bf16.msra.mxu0 0
  %73 = vmatprep.subr.bf16.mxu0 0
  %74 = vmatpush1.bf16.msra.mxu0 0
  %75 = vmatprep.subr.bf16.mxu0 0
  %76 = vmatpush1.bf16.msra.mxu0 0
  %77 = vmatprep.subr.bf16.mxu0 0
  %78 = vmatpush1.bf16.msra.mxu0 0
  %79 = vmatprep.subr.bf16.mxu0 0
  %80 = vmatpush1.bf16.msra.mxu0 0
  %81 = vmatprep.subr.bf16.mxu0 0
  %82 = vmatpush1.bf16.msra.mxu0 0
  %83 = vmatprep.subr.bf16.mxu0 0
  %84 = vmatpush1.bf16.msra.mxu0 0
  %85 = vmatprep.subr.bf16.mxu0 0
  %86 = vmatpush1.bf16.msra.mxu0 0
  %87 = vmatprep.subr.bf16.mxu0 0
  %88 = vmatpush1.bf16.msra.mxu0 0
  %89 = vmatprep.subr.bf16.mxu0 0
  %90 = vmatpush1.bf16.msra.mxu0 0
  %91 = vmatprep.subr.bf16.mxu0 0
  %92 = vmatpush1.bf16.msra.mxu0 0
  %93 = vmatprep.mubr.bf16.mxu0 0
  %94 = vmatmul.mubr.bf16.gmra.mrb[0].mxu0 %v59
  %v95 = vpop.f32.mrb[0].mxu0
  %v96 = vadd.f32 %v39, %v95
  %v97 = vpop.f32.mrb[0].mxu0
  %v98 = vpop.f32.mrb[0].mxu0
  %v99 = vadd.f32 %v39, %v98
  %v100 = vpop.f32.mrb[0].mxu0
  %101 = vdwg.mxu0
  %v102 = vmax.f32 %v96, 0.0
  %v103 = vmax.f32 %v99, 0.0
  %v104 = vld [vmem:[#allocation2] sm:$0xff]
  %v105 = vld [vmem:[#allocation2 + $0x8] sm:$0xff]
  %v106 = vpack.c.bf16 %v103, %v102
  %v107 = vld [vmem:[%s3] sm:$0xf]
  %v108 = vld [vmem:[%s3 + $0x4] sm:$0xf]
  %v109 = vld [vmem:[%s3 + $0x8] sm:$0xf]
  %v110 = vld [vmem:[%s3 + $0xc] sm:$0xf]
  %v111 = vld [vmem:[%s3 + $0x10] sm:$0xf]
  %v112 = vld [vmem:[%s3 + $0x14] sm:$0xf]
  %v113 = vld [vmem:[%s3 + $0x18] sm:$0xf]
  %v114 = vld [vmem:[%s3 + $0x1c] sm:$0xf]
  %v115 = vld [vmem:[%s3 + $0x20] sm:$0xf]
  %v116 = vld [vmem:[%s3 + $0x24] sm:$0xf]
  %v117 = vld [vmem:[%s3 + $0x28] sm:$0xf]
  %v118 = vld [vmem:[%s3 + $0x2c] sm:$0xf]
  %v119 = vld [vmem:[%s3 + $0x30] sm:$0xf]
  %v120 = vld [vmem:[%s3 + $0x34] sm:$0xf]
  %v121 = vld [vmem:[%s3 + $0x38] sm:$0xf]
  %v122 = vld [vmem:[%s3 + $0x3c] sm:$0xf]
  %v139 = vunpack.c.l.b16 %v107
  %v140 = vunpack.c.l.b16 %v108
  %v141 = vunpack.c.l.b16 %v109
  %v142 = vunpack.c.l.b16 %v110
  %v143 = vunpack.c.l.b16 %v111
  %v144 = vunpack.c.l.b16 %v112
  %v145 = vunpack.c.l.b16 %v113
  %v146 = vunpack.c.l.b16 %v114
  %v147 = vunpack.c.l.b16 %v115
  %v148 = vunpack.c.l.b16 %v116
  %v149 = vunpack.c.l.b16 %v117
  %v150 = vunpack.c.l.b16 %v118
  %v151 = vunpack.c.l.b16 %v119
  %v152 = vunpack.c.l.b16 %v120
  %v153 = vunpack.c.l.b16 %v121
  %v154 = vunpack.c.l.b16 %v122
  %v155 = vpack.c.b16 %v140, %v139
  %v156 = vpack.c.b16 %v142, %v141
  %v157 = vpack.c.b16 %v144, %v143
  %v158 = vpack.c.b16 %v146, %v145
  %v159 = vpack.c.b16 %v148, %v147
  %v160 = vpack.c.b16 %v150, %v149
  %v161 = vpack.c.b16 %v152, %v151
  %v162 = vpack.c.b16 %v154, %v153
  %171 = vmatprep.subr.bf16.mxu0 0
  %172 = vmatpush1.bf16.msra.mxu0 %v155
  %173 = vmatprep.subr.bf16.mxu0 0
  %174 = vmatpush1.bf16.msra.mxu0 %v156
  %175 = vmatprep.subr.bf16.mxu0 0
  %176 = vmatpush1.bf16.msra.mxu0 %v157
  %177 = vmatprep.subr.bf16.mxu0 0
  %178 = vmatpush1.bf16.msra.mxu0 %v158
  %179 = vmatprep.subr.bf16.mxu0 0
  %180 = vmatpush1.bf16.msra.mxu0 %v159
  %181 = vmatprep.subr.bf16.mxu0 0
  %182 = vmatpush1.bf16.msra.mxu0 %v160
  %183 = vmatprep.subr.bf16.mxu0 0
  %184 = vmatpush1.bf16.msra.mxu0 %v161
  %185 = vmatprep.subr.bf16.mxu0 0
  %186 = vmatpush1.bf16.msra.mxu0 %v162
  %187 = vmatprep.subr.bf16.mxu0 0
  %188 = vmatpush1.bf16.msra.mxu0 0
  %189 = vmatprep.subr.bf16.mxu0 0
  %190 = vmatpush1.bf16.msra.mxu0 0
  %191 = vmatprep.subr.bf16.mxu0 0
  %192 = vmatpush1.bf16.msra.mxu0 0
  %193 = vmatprep.subr.bf16.mxu0 0
  %194 = vmatpush1.bf16.msra.mxu0 0
  %195 = vmatprep.subr.bf16.mxu0 0
  %196 = vmatpush1.bf16.msra.mxu0 0
  %197 = vmatprep.subr.bf16.mxu0 0
  %198 = vmatpush1.bf16.msra.mxu0 0
  %199 = vmatprep.subr.bf16.mxu0 0
  %200 = vmatpush1.bf16.msra.mxu0 0
  %201 = vmatprep.subr.bf16.mxu0 0
  %202 = vmatpush1.bf16.msra.mxu0 0
  %203 = vmatprep.mubr.bf16.mxu0 0
  %204 = vmatmul.mubr.bf16.gmra.mrb[0].mxu0 %v106
  %v205 = vpop.f32.mrb[0].mxu0
  %v206 = vadd.f32 0.0, %v205
  %v207 = vpop.f32.mrb[0].mxu0
  %v208 = vpop.f32.mrb[0].mxu0
  %v209 = vadd.f32 0.0, %v208
  %v210 = vpop.f32.mrb[0].mxu0
  %211 = vdwg.mxu0
  %v212 = vadd.f32 %v104, %v206
  %v213 = vadd.f32 %v105, %v209
  %214 = vst.msk [vmem:[#allocation2] sm:$0xff] %vm57, %v212
  %215 = vst.msk [vmem:[#allocation2 + $0x8] sm:$0xff] %vm57, %v213
  // Predicated region
  $region26: #{nat_decoder.11} parent=0 // pred_check
    %p216 = pneg %p21
  $region27: #{nat_decoder.11} parent=0 // pred_check_branch
    %218 = sbr.rel (%p216) target = $region29
  $region28: #{nat_decoder.11} parent=0 // pred_region
    %v219 = vld [vmem:[#allocation2] sm:$0xff]
    %v220 = vld [vmem:[#allocation2 + $0x8] sm:$0xff]
    %v221 = vld [vmem:[%s4] sm:$0x1]
    %v222 = vunpack.c.l.bf16 %v221
    %v223 = vlaneseq
    %v224 = vshrl.u32 %v223, 7
    %v225 = vsub.s32 0, %v224
    %v226 = vrot.slane %v222, %v225
    %v227 = vadd.f32 %v219, %v226
    %v228 = vadd.f32 %v220, %v226
    %v229 = vpack.c.bf16 %v228, %v227
    %v231 = vunpack.c.l.b16 %v229
    %v232 = vunpack.c.h.b16 %v229
    %v233 = vpack.c.b16 %v231, %v231
    %v234 = vpack.c.b16 %v232, %v232
    %vm237 = vcmask 257024
    %238 = vst.msk [vmem:[%s5] sm:$0xf] %vm237, %v233
    %239 = vst.msk [vmem:[%s5 + $0x4] sm:$0xf] %vm237, %v234
  $region29: #{nat_decoder.11} parent=0 // pred_fallthru
    _
  // Predicated region
  $region30: #{nat_decoder.11} parent=0 // pred_check
    _
  $region31: #{nat_decoder.11} parent=0 // pred_check_branch
    %241 = sbr.rel (0) target = $region33
  $region32: #{nat_decoder.11} parent=0 // pred_region
    _
  $region33: #{nat_decoder.11} parent=0 // pred_fallthru
    _
  // Predicated region
  $region34: #{nat_decoder.11} parent=0 // pred_check
    _
  $region35: #{nat_decoder.11} parent=0 // pred_check_branch
    %243 = sbr.rel (0) target = $region37
  $region36: #{nat_decoder.11} parent=0 // pred_region
    _
  $region37: #{nat_decoder.11} parent=0 // pred_fallthru
    _

// kernel: nat_decoder.10
$region0: #{nat_decoder.10}
  #allocation0 [shape = 'u32[]', space=smem, size = 0x4, offset = 0x4, fixed_abs, tag = 'smem constant byte address 0x4 - core index']
  #allocation1 [shape = 'u32[144,128]{1,0:T(1,128)}', space=vmem, size = 0x12000, scoped, tag = 'internal scratch']
  %s0 = inlined_call_operand.vmem [shape: bf16[2,8,32], index: 0, kind: input, shape index: {}]
  %s1 = inlined_call_operand.vmem [shape: bf16[2,8,32], index: 1, kind: input, shape index: {}]
  %s2 = inlined_call_operand.vmem [shape: bf16[32,32], index: 2, kind: input, shape index: {}]
  %s3 = inlined_call_operand.vmem [shape: bf16[1,32], index: 3, kind: input, shape index: {}]
  %s4 = inlined_call_operand.vmem [shape: bf16[32,64], index: 4, kind: input, shape index: {}]
  %s5 = inlined_call_operand.vmem [shape: bf16[1,64], index: 5, kind: input, shape index: {}]
  %s6 = inlined_call_operand.vmem [shape: bf16[32,32], index: 6, kind: input, shape index: {}]
  %s7 = inlined_call_operand.vmem [shape: bf16[1,32], index: 7, kind: input, shape index: {}]
  %s8 = inlined_call_operand.vmem [shape: bf16[2,8,32], index: 8, kind: output, shape index: {}]
  %s9 = sld [smem:[#allocation0]]
  $region65: #{nat_decoder.10} parent=0
    _
  %s11 = ssub.s32 1, %s9
  %s12 = scalar_select 0, %s11, %s9
  loop: start=0, step=1, limit=4
  $region2: #{nat_decoder.10} parent=0 // loop_pre_header
    _
  $region3: #{nat_decoder.10} parent=0 // loop_header
    %s14 = sphi 0, %s18
    %p15 = scmp.ge.s32.totalorder %s14, 4
    %s24 = sphi 0, %s26
    %s27 = sphi 0, %s24
    %s28 = sphi 0, %s27
    %s44 = sphi 0, %s28
    %s50 = sphi 0, %s52
    %s53 = sphi 0, %s50
    %s54 = sphi 0, %s53
    %s70 = sphi 0, %s54
    %s74 = sphi 0, %s74
    %s76 = sphi 0, %s74
    %s77 = sphi 0, %s76
    %s91 = sphi 0, %s77
    %s95 = sphi 0, %s95
    %s97 = sphi 0, %s95
    %s98 = sphi 0, %s97
    %s112 = sphi 0, %s98
    %s116 = sphi 0, %s116
    %s118 = sphi 0, %s116
    %s119 = sphi 0, %s118
    %s133 = sphi 0, %s119
    %s137 = sphi 0, %s137
    %s139 = sphi 0, %s137
    %s140 = sphi 0, %s139
    %s154 = sphi 0, %s140
    %s158 = sphi 0, %s158
    %s160 = sphi 0, %s158
    %s161 = sphi 0, %s160
    %s175 = sphi 0, %s161
    %s179 = sphi 0, %s179
    %s181 = sphi 0, %s179
    %s182 = sphi 0, %s181
    %s196 = sphi 0, %s182
    %s202 = sphi 0, %s204
    %s205 = sphi 0, %s202
    %s206 = sphi 0, %s205
    %s222 = sphi 0, %s206
  $region4: #{nat_decoder.10} parent=0 // loop_header_branch
    %17 = sbr.rel (%p15) target = $region8
  $region5: #{nat_decoder.10} parent=0 // loop_body
    %s19 = ssub.s32 %s14, 1
    %s20 = ssub.s32 %s14, 2
    %s21 = sadd.s32 %s14, 1
    %s22 = ssub.s32 %s14, %s21
    %p23 = scmp.eq.s32.totalorder %s22, 0
    %s25 = sadd.s32 %s24, 1
    %s26 = scalar_select %p23, %s24, %s25
    %p29 = pneg %p23
    %p30 = scmp.eq.s32.totalorder %s14, 1
    %p31 = por %p29, %p30
    %p32 = scmp.ne.s32.totalorder %s24, %s27
    %p33 = scmp.eq.s32.totalorder %s14, 0
    %p34 = por %p32, %p33
    %p35 = scmp.ne.s32.totalorder %s24, %s27
    %p36 = scmp.eq.s32.totalorder %s19, 1
    %p37 = por %p35, %p36
    %p38 = scmp.ne.s32.totalorder %s27, %s28
    %p39 = scmp.eq.s32.totalorder %s19, 0
    %p40 = por %p38, %p39
    %p41 = scmp.ne.s32.totalorder %s27, %s28
    %p42 = scmp.eq.s32.totalorder %s20, 1
    %p43 = por %p41, %p42
    %p45 = scmp.ne.s32.totalorder %s28, %s44
    %p46 = scmp.eq.s32.totalorder %s20, 0
    %p47 = por %p45, %p46
    %s48 = ssub.s32 %s14, %s21
    %p49 = scmp.eq.s32.totalorder %s48, 0
    %s51 = sadd.s32 %s50, 1
    %s52 = scalar_select %p49, %s50, %s51
    %p55 = pneg %p49
    %p56 = scmp.eq.s32.totalorder %s14, 1
    %p57 = por %p55, %p56
    %p58 = scmp.ne.s32.totalorder %s50, %s53
    %p59 = scmp.eq.s32.totalorder %s14, 0
    %p60 = por %p58, %p59
    %p61 = scmp.ne.s32.totalorder %s50, %s53
    %p62 = scmp.eq.s32.totalorder %s19, 1
    %p63 = por %p61, %p62
    %p64 = scmp.ne.s32.totalorder %s53, %s54
    %p65 = scmp.eq.s32.totalorder %s19, 0
    %p66 = por %p64, %p65
    %p67 = scmp.ne.s32.totalorder %s53, %s54
    %p68 = scmp.eq.s32.totalorder %s20, 1
    %p69 = por %p67, %p68
    %p71 = scmp.ne.s32.totalorder %s54, %s70
    %p72 = scmp.eq.s32.totalorder %s20, 0
    %p73 = por %p71, %p72
    %s75 = sadd.s32 %s74, 1
    %p78 = scmp.eq.s32.totalorder %s14, 1
    %p79 = scmp.ne.s32.totalorder %s74, %s76
    %p80 = scmp.eq.s32.totalorder %s14, 0
    %p81 = por %p79, %p80
    %p82 = scmp.ne.s32.totalorder %s74, %s76
    %p83 = scmp.eq.s32.totalorder %s19, 1
    %p84 = por %p82, %p83
    %p85 = scmp.ne.s32.totalorder %s76, %s77
    %p86 = scmp.eq.s32.totalorder %s19, 0
    %p87 = por %p85, %p86
    %p88 = scmp.ne.s32.totalorder %s76, %s77
    %p89 = scmp.eq.s32.totalorder %s20, 1
    %p90 = por %p88, %p89
    %p92 = scmp.ne.s32.totalorder %s77, %s91
    %p93 = scmp.eq.s32.totalorder %s20, 0
    %p94 = por %p92, %p93
    %s96 = sadd.s32 %s95, 1
    %p99 = scmp.eq.s32.totalorder %s14, 1
    %p100 = scmp.ne.s32.totalorder %s95, %s97
    %p101 = scmp.eq.s32.totalorder %s14, 0
    %p102 = por %p100, %p101
    %p103 = scmp.ne.s32.totalorder %s95, %s97
    %p104 = scmp.eq.s32.totalorder %s19, 1
    %p105 = por %p103, %p104
    %p106 = scmp.ne.s32.totalorder %s97, %s98
    %p107 = scmp.eq.s32.totalorder %s19, 0
    %p108 = por %p106, %p107
    %p109 = scmp.ne.s32.totalorder %s97, %s98
    %p110 = scmp.eq.s32.totalorder %s20, 1
    %p111 = por %p109, %p110
    %p113 = scmp.ne.s32.totalorder %s98, %s112
    %p114 = scmp.eq.s32.totalorder %s20, 0
    %p115 = por %p113, %p114
    %s117 = sadd.s32 %s116, 1
    %p120 = scmp.eq.s32.totalorder %s14, 1
    %p121 = scmp.ne.s32.totalorder %s116, %s118
    %p122 = scmp.eq.s32.totalorder %s14, 0
    %p123 = por %p121, %p122
    %p124 = scmp.ne.s32.totalorder %s116, %s118
    %p125 = scmp.eq.s32.totalorder %s19, 1
    %p126 = por %p124, %p125
    %p127 = scmp.ne.s32.totalorder %s118, %s119
    %p128 = scmp.eq.s32.totalorder %s19, 0
    %p129 = por %p127, %p128
    %p130 = scmp.ne.s32.totalorder %s118, %s119
    %p131 = scmp.eq.s32.totalorder %s20, 1
    %p132 = por %p130, %p131
    %p134 = scmp.ne.s32.totalorder %s119, %s133
    %p135 = scmp.eq.s32.totalorder %s20, 0
    %p136 = por %p134, %p135
    %s138 = sadd.s32 %s137, 1
    %p141 = scmp.eq.s32.totalorder %s14, 1
    %p142 = scmp.ne.s32.totalorder %s137, %s139
    %p143 = scmp.eq.s32.totalorder %s14, 0
    %p144 = por %p142, %p143
    %p145 = scmp.ne.s32.totalorder %s137, %s139
    %p146 = scmp.eq.s32.totalorder %s19, 1
    %p147 = por %p145, %p146
    %p148 = scmp.ne.s32.totalorder %s139, %s140
    %p149 = scmp.eq.s32.totalorder %s19, 0
    %p150 = por %p148, %p149
    %p151 = scmp.ne.s32.totalorder %s139, %s140
    %p152 = scmp.eq.s32.totalorder %s20, 1
    %p153 = por %p151, %p152
    %p155 = scmp.ne.s32.totalorder %s140, %s154
    %p156 = scmp.eq.s32.totalorder %s20, 0
    %p157 = por %p155, %p156
    %s159 = sadd.s32 %s158, 1
    %p162 = scmp.eq.s32.totalorder %s14, 1
    %p163 = scmp.ne.s32.totalorder %s158, %s160
    %p164 = scmp.eq.s32.totalorder %s14, 0
    %p165 = por %p163, %p164
    %p166 = scmp.ne.s32.totalorder %s158, %s160
    %p167 = scmp.eq.s32.totalorder %s19, 1
    %p168 = por %p166, %p167
    %p169 = scmp.ne.s32.totalorder %s160, %s161
    %p170 = scmp.eq.s32.totalorder %s19, 0
    %p171 = por %p169, %p170
    %p172 = scmp.ne.s32.totalorder %s160, %s161
    %p173 = scmp.eq.s32.totalorder %s20, 1
    %p174 = por %p172, %p173
    %p176 = scmp.ne.s32.totalorder %s161, %s175
    %p177 = scmp.eq.s32.totalorder %s20, 0
    %p178 = por %p176, %p177
    %s180 = sadd.s32 %s179, 1
    %p183 = scmp.eq.s32.totalorder %s14, 1
    %p184 = scmp.ne.s32.totalorder %s179, %s181
    %p185 = scmp.eq.s32.totalorder %s14, 0
    %p186 = por %p184, %p185
    %p187 = scmp.ne.s32.totalorder %s179, %s181
    %p188 = scmp.eq.s32.totalorder %s19, 1
    %p189 = por %p187, %p188
    %p190 = scmp.ne.s32.totalorder %s181, %s182
    %p191 = scmp.eq.s32.totalorder %s19, 0
    %p192 = por %p190, %p191
    %p193 = scmp.ne.s32.totalorder %s181, %s182
    %p194 = scmp.eq.s32.totalorder %s20, 1
    %p195 = por %p193, %p194
    %p197 = scmp.ne.s32.totalorder %s182, %s196
    %p198 = scmp.eq.s32.totalorder %s20, 0
    %p199 = por %p197, %p198
    %s200 = ssub.s32 %s14, %s21
    %p201 = scmp.eq.s32.totalorder %s200, 0
    %s203 = sadd.s32 %s202, 1
    %s204 = scalar_select %p201, %s202, %s203
    %p207 = pneg %p201
    %p208 = scmp.eq.s32.totalorder %s14, 1
    %p209 = por %p207, %p208
    %p210 = scmp.ne.s32.totalorder %s202, %s205
    %p211 = scmp.eq.s32.totalorder %s14, 0
    %p212 = por %p210, %p211
    %p213 = scmp.ne.s32.totalorder %s202, %s205
    %p214 = scmp.eq.s32.totalorder %s19, 1
    %p215 = por %p213, %p214
    %p216 = scmp.ne.s32.totalorder %s205, %s206
    %p217 = scmp.eq.s32.totalorder %s19, 0
    %p218 = por %p216, %p217
    %p219 = scmp.ne.s32.totalorder %s205, %s206
    %p220 = scmp.eq.s32.totalorder %s20, 1
    %p221 = por %p219, %p220
    %p223 = scmp.ne.s32.totalorder %s206, %s222
    %p224 = scmp.eq.s32.totalorder %s20, 0
    %p225 = por %p223, %p224
    %p226 = scmp.le.s32.totalorder 1, %s14
    %p227 = scmp.lt.s32.totalorder %s14, 3
    %p228 = pnand %p226, %p227
    %p229 = pneg %p228
    // Predicated region
    $region9: #{nat_decoder.10} parent=5 // pred_check
      _
    $region10: #{nat_decoder.10} parent=5 // pred_check_branch
      %231 = sbr.rel (%p228) target = $region12
    $region11: #{nat_decoder.10} parent=5 // pred_region
      %s232 = ssub.s32 %s14, 1
      // Predicated region
      $region13: #{nat_decoder.10} parent=11 // pred_check
        %p233 = pneg %p87
      $region14: #{nat_decoder.10} parent=11 // pred_check_branch
        %235 = sbr.rel (%p233) target = $region16
      $region15: #{nat_decoder.10} parent=11 // pred_region
        _
      $region16: #{nat_decoder.10} parent=11 // pred_fallthru
        _
      // Predicated region
      $region17: #{nat_decoder.10} parent=11 // pred_check
        %p236 = pneg %p108
      $region18: #{nat_decoder.10} parent=11 // pred_check_branch
        %238 = sbr.rel (%p236) target = $region20
      $region19: #{nat_decoder.10} parent=11 // pred_region
        _
      $region20: #{nat_decoder.10} parent=11 // pred_fallthru
        _
      // Predicated region
      $region21: #{nat_decoder.10} parent=11 // pred_check
        %p239 = pneg %p129
      $region22: #{nat_decoder.10} parent=11 // pred_check_branch
        %241 = sbr.rel (%p239) target = $region24
      $region23: #{nat_decoder.10} parent=11 // pred_region
        _
      $region24: #{nat_decoder.10} parent=11 // pred_fallthru
        _
      // Predicated region
      $region25: #{nat_decoder.10} parent=11 // pred_check
        %p242 = pneg %p150
      $region26: #{nat_decoder.10} parent=11 // pred_check_branch
        %244 = sbr.rel (%p242) target = $region28
      $region27: #{nat_decoder.10} parent=11 // pred_region
        _
      $region28: #{nat_decoder.10} parent=11 // pred_fallthru
        _
      // Predicated region
      $region29: #{nat_decoder.10} parent=11 // pred_check
        %p245 = pneg %p171
      $region30: #{nat_decoder.10} parent=11 // pred_check_branch
        %247 = sbr.rel (%p245) target = $region32
      $region31: #{nat_decoder.10} parent=11 // pred_region
        _
      $region32: #{nat_decoder.10} parent=11 // pred_fallthru
        _
      // Predicated region
      $region33: #{nat_decoder.10} parent=11 // pred_check
        %p248 = pneg %p192
      $region34: #{nat_decoder.10} parent=11 // pred_check_branch
        %250 = sbr.rel (%p248) target = $region36
      $region35: #{nat_decoder.10} parent=11 // pred_region
        _
      $region36: #{nat_decoder.10} parent=11 // pred_fallthru
        _
    $region12: #{nat_decoder.10} parent=5 // pred_fallthru
      _
    %p251 = scmp.lt.s32.totalorder %s14, 2
    // Predicated region
    $region37: #{nat_decoder.10} parent=5 // pred_check
      %p252 = pneg %p251
    $region38: #{nat_decoder.10} parent=5 // pred_check_branch
      %254 = sbr.rel (%p252) target = $region40
    $region39: #{nat_decoder.10} parent=5 // pred_region
      // Predicated region
      $region41: #{nat_decoder.10} parent=39 // pred_check
        %p255 = pneg %p34
      $region42: #{nat_decoder.10} parent=39 // pred_check_branch
        %257 = sbr.rel (%p255) target = $region44
      $region43: #{nat_decoder.10} parent=39 // pred_region
        %p258 = scmp.lt.s32.totalorder %s14, 1
        %s259 = scalar_select %p258, %s14, 1
        %s260 = smul.addr %s259, 4
        %s261 = scalar_lea.vmem %s0, %s260
      $region44: #{nat_decoder.10} parent=39 // pred_fallthru
        _
      // Predicated region
      $region45: #{nat_decoder.10} parent=39 // pred_check
        %p262 = pneg %p60
      $region46: #{nat_decoder.10} parent=39 // pred_check_branch
        %264 = sbr.rel (%p262) target = $region48
      $region47: #{nat_decoder.10} parent=39 // pred_region
        %p265 = scmp.lt.s32.totalorder %s14, 1
        %s266 = scalar_select %p265, %s14, 1
        %s267 = smul.addr %s266, 4
        %s268 = scalar_lea.vmem %s1, %s267
      $region48: #{nat_decoder.10} parent=39 // pred_fallthru
        _
    $region40: #{nat_decoder.10} parent=5 // pred_fallthru
      _
    %p269 = scmp.le.s32.totalorder 1, %s14
    %p270 = scmp.lt.s32.totalorder %s14, 3
    %p271 = pnand %p269, %p270
    %p272 = pneg %p271
    // Predicated region
    $region49: #{nat_decoder.10} parent=5 // pred_check
      _
    $region50: #{nat_decoder.10} parent=5 // pred_check_branch
      %274 = sbr.rel (%p271) target = $region52
    $region51: #{nat_decoder.10} parent=5 // pred_region
      %s275 = ssub.s32 %s14, 1
      %p276 = scmp.lt.s32.totalorder %s19, 1
      %s277 = scalar_select %p276, %s19, 1
      %s278 = smul.addr %s277, 4
      %s279 = scalar_lea.vmem %s0, %s278
      %p280 = pneg %p40
      %p281 = pneg %p37
      %p282 = scmp.lt.s32.totalorder %s19, 1
      %s283 = scalar_select %p282, %s19, 1
      %s284 = smul.addr %s283, 4
      %s285 = scalar_lea.vmem %s1, %s284
      %p286 = pneg %p66
      %p287 = pneg %p63
      %p288 = pneg %p87
      %p289 = pneg %p84
      %p290 = pneg %p108
      %p291 = pneg %p105
      %p292 = pneg %p129
      %p293 = pneg %p126
      %p294 = pneg %p150
      %p295 = pneg %p147
      %p296 = pneg %p171
      %p297 = pneg %p168
      %p298 = pneg %p192
      %p299 = pneg %p189
      %p300 = pneg %p218
      %p301 = pneg %p215
      %p302 = scmp.lt.s32.totalorder %s19, 1
      %s303 = scalar_select %p302, %s19, 1
      %s304 = smul.addr %s303, 4
      %s305 = scalar_lea.vmem %s8, %s304
      %p306 = scmp.lt.s32.totalorder %s19, 1
      %s307 = scalar_select %p306, %s19, 1
      %s308 = smul.addr %s307, 4
      %s309 = scalar_lea.vmem %s0, %s308
      %p310 = scmp.lt.s32.totalorder %s19, 1
      %s311 = scalar_select %p310, %s19, 1
      %s312 = smul.addr %s311, 4
      %s313 = scalar_lea.vmem %s1, %s312
      %p314 = scmp.lt.s32.totalorder %s19, 1
      %s315 = scalar_select %p314, %s19, 1
      %s316 = smul.addr %s315, 4
      %s317 = scalar_lea.vmem %s8, %s316
      %v319 = vld [vmem:[%s309] sm:$0xf]
      %v320 = vld [vmem:[%s2] sm:$0xf]
      %v321 = vld [vmem:[%s2 + $0x4] sm:$0xf]
      %v322 = vld [vmem:[%s2 + $0x8] sm:$0xf]
      %v323 = vld [vmem:[%s2 + $0xc] sm:$0xf]
      %v324 = vld [vmem:[%s3] sm:$0x1]
      %v325 = vunpack.c.l.bf16 %v324
      %v326 = vlaneseq
      %v327 = vshrl.u32 %v326, 7
      %v328 = vsub.s32 0, %v327
      %v329 = vrot.slane %v325, %v328
      %v334 = vunpack.c.l.b16 %v320
      %v335 = vunpack.c.l.b16 %v321
      %v336 = vunpack.c.l.b16 %v322
      %v337 = vunpack.c.l.b16 %v323
      %v338 = vpack.c.b16 %v335, %v334
      %v339 = vpack.c.b16 %v337, %v336
      %vm342 = vcmask 261120
      %v344 = vsel %vm342, %v319, 0
      %346 = vmatprep.subr.bf16.mxu0 0
      %347 = vmatpush1.bf16.msra.mxu0 %v338
      %348 = vmatprep.subr.bf16.mxu0 0
      %349 = vmatpush1.bf16.msra.mxu0 %v339
      %350 = vmatprep.subr.bf16.mxu0 0
      %351 = vmatpush1.bf16.msra.mxu0 0
      %352 = vmatprep.subr.bf16.mxu0 0
      %353 = vmatpush1.bf16.msra.mxu0 0
      %354 = vmatprep.subr.bf16.mxu0 0
      %355 = vmatpush1.bf16.msra.mxu0 0
      %356 = vmatprep.subr.bf16.mxu0 0
      %357 = vmatpush1.bf16.msra.mxu0 0
      %358 = vmatprep.subr.bf16.mxu0 0
      %359 = vmatpush1.bf16.msra.mxu0 0
      %360 = vmatprep.subr.bf16.mxu0 0
      %361 = vmatpush1.bf16.msra.mxu0 0
      %362 = vmatprep.subr.bf16.mxu0 0
      %363 = vmatpush1.bf16.msra.mxu0 0
      %364 = vmatprep.subr.bf16.mxu0 0
      %365 = vmatpush1.bf16.msra.mxu0 0
      %366 = vmatprep.subr.bf16.mxu0 0
      %367 = vmatpush1.bf16.msra.mxu0 0
      %368 = vmatprep.subr.bf16.mxu0 0
      %369 = vmatpush1.bf16.msra.mxu0 0
      %370 = vmatprep.subr.bf16.mxu0 0
      %371 = vmatpush1.bf16.msra.mxu0 0
      %372 = vmatprep.subr.bf16.mxu0 0
      %373 = vmatpush1.bf16.msra.mxu0 0
      %374 = vmatprep.subr.bf16.mxu0 0
      %375 = vmatpush1.bf16.msra.mxu0 0
      %376 = vmatprep.subr.bf16.mxu0 0
      %377 = vmatpush1.bf16.msra.mxu0 0
      %378 = vmatprep.mubr.bf16.mxu0 0
      %379 = vmatmul.mubr.bf16.gmra.mrb[0].mxu0 %v344
      %v380 = vpop.f32.mrb[0].mxu0
      %v381 = vadd.f32 %v329, %v380
      %v382 = vpop.f32.mrb[0].mxu0
      %v383 = vpop.f32.mrb[0].mxu0
      %v384 = vpop.f32.mrb[0].mxu0
      %385 = vdwg.mxu0
      %v386 = vpack.c.bf16 %v381, %v381
      %v387 = vld [vmem:[%s313] sm:$0xf]
      %v388 = vld [vmem:[%s4] sm:$0xf]
      %v389 = vld [vmem:[%s4 + $0x4] sm:$0xf]
      %v390 = vld [vmem:[%s4 + $0x8] sm:$0xf]
      %v391 = vld [vmem:[%s4 + $0xc] sm:$0xf]
      %v392 = vld [vmem:[%s5] sm:$0x1]
      %v393 = vunpack.c.l.bf16 %v392
      %v394 = vlaneseq
      %v395 = vshrl.u32 %v394, 7
      %v396 = vsub.s32 0, %v395
      %v397 = vrot.slane %v393, %v396
      %v402 = vunpack.c.l.b16 %v388
      %v403 = vunpack.c.l.b16 %v389
      %v404 = vunpack.c.l.b16 %v390
      %v405 = vunpack.c.l.b16 %v391
      %v406 = vpack.c.b16 %v403, %v402
      %v407 = vpack.c.b16 %v405, %v404
      %v411 = vsel %vm342, %v387, 0
      %413 = vmatprep.subr.bf16.mxu0 0
      %414 = vmatpush1.bf16.msra.mxu0 %v406
      %415 = vmatprep.subr.bf16.mxu0 0
      %416 = vmatpush1.bf16.msra.mxu0 %v407
      %417 = vmatprep.subr.bf16.mxu0 0
      %418 = vmatpush1.bf16.msra.mxu0 0
      %419 = vmatprep.subr.bf16.mxu0 0
      %420 = vmatpush1.bf16.msra.mxu0 0
      %421 = vmatprep.subr.bf16.mxu0 0
      %422 = vmatpush1.bf16.msra.mxu0 0
      %423 = vmatprep.subr.bf16.mxu0 0
      %424 = vmatpush1.bf16.msra.mxu0 0
      %425 = vmatprep.subr.bf16.mxu0 0
      %426 = vmatpush1.bf16.msra.mxu0 0
      %427 = vmatprep.subr.bf16.mxu0 0
      %428 = vmatpush1.bf16.msra.mxu0 0
      %429 = vmatprep.subr.bf16.mxu0 0
      %430 = vmatpush1.bf16.msra.mxu0 0
      %431 = vmatprep.subr.bf16.mxu0 0
      %432 = vmatpush1.bf16.msra.mxu0 0
      %433 = vmatprep.subr.bf16.mxu0 0
      %434 = vmatpush1.bf16.msra.mxu0 0
      %435 = vmatprep.subr.bf16.mxu0 0
      %436 = vmatpush1.bf16.msra.mxu0 0
      %437 = vmatprep.subr.bf16.mxu0 0
      %438 = vmatpush1.bf16.msra.mxu0 0
      %439 = vmatprep.subr.bf16.mxu0 0
      %440 = vmatpush1.bf16.msra.mxu0 0
      %441 = vmatprep.subr.bf16.mxu0 0
      %442 = vmatpush1.bf16.msra.mxu0 0
      %443 = vmatprep.subr.bf16.mxu0 0
      %444 = vmatpush1.bf16.msra.mxu0 0
      %445 = vmatprep.mubr.bf16.mxu0 0
      %446 = vmatmul.mubr.bf16.gmra.mrb[0].mxu0 %v411
      %v447 = vpop.f32.mrb[0].mxu0
      %v448 = vadd.f32 %v397, %v447
      %v449 = vpop.f32.mrb[0].mxu0
      %v450 = vpop.f32.mrb[0].mxu0
      %v451 = vpop.f32.mrb[0].mxu0
      %452 = vdwg.mxu0
      %v453 = vpack.c.bf16 %v448, %v448
      %v454 = vld [vmem:[%s6] sm:$0xf]
      %v455 = vld [vmem:[%s6 + $0x4] sm:$0xf]
      %v456 = vld [vmem:[%s6 + $0x8] sm:$0xf]
      %v457 = vld [vmem:[%s6 + $0xc] sm:$0xf]
      %vm458 = vcmask 64512
      %v460 = vsel %vm458, %v386, 0
      %v463 = vsel %vm458, %v453, 0
      %465 = vmatprep.subr.bf16.mxu0 0
      %466 = vmatpush1.bf16.xpose.msra.mxu0 %v463
      %467 = vmatprep.subr.bf16.mxu0 0
      %468 = vmatpush1.bf16.xpose.msra.mxu0 0
      %469 = vmatprep.subr.bf16.mxu0 0
      %470 = vmatpush1.bf16.xpose.msra.mxu0 0
      %471 = vmatprep.subr.bf16.mxu0 0
      %472 = vmatpush1.bf16.xpose.msra.mxu0 0
      %473 = vmatprep.subr.bf16.mxu0 0
      %474 = vmatpush1.bf16.xpose.msra.mxu0 0
      %475 = vmatprep.subr.bf16.mxu0 0
      %476 = vmatpush1.bf16.xpose.msra.mxu0 0
      %477 = vmatprep.subr.bf16.mxu0 0
      %478 = vmatpush1.bf16.xpose.msra.mxu0 0
      %479 = vmatprep.subr.bf16.mxu0 0
      %480 = vmatpush1.bf16.xpose.msra.mxu0 0
      %481 = vmatprep.subr.bf16.mxu0 0
      %482 = vmatpush1.bf16.xpose.msra.mxu0 0
      %483 = vmatprep.subr.bf16.mxu0 0
      %484 = vmatpush1.bf16.xpose.msra.mxu0 0
      %485 = vmatprep.subr.bf16.mxu0 0
      %486 = vmatpush1.bf16.xpose.msra.mxu0 0
      %487 = vmatprep.subr.bf16.mxu0 0
      %488 = vmatpush1.bf16.xpose.msra.mxu0 0
      %489 = vmatprep.subr.bf16.mxu0 0
      %490 = vmatpush1.bf16.xpose.msra.mxu0 0
      %491 = vmatprep.subr.bf16.mxu0 0
      %492 = vmatpush1.bf16.xpose.msra.mxu0 0
      %493 = vmatprep.subr.bf16.mxu0 0
      %494 = vmatpush1.bf16.xpose.msra.mxu0 0
      %495 = vmatprep.subr.bf16.mxu0 0
      %496 = vmatpush1.bf16.xpose.msra.mxu0 0
      %497 = vmatprep.mubr.bf16.mxu0 0
      %498 = vmatmul.mubr.bf16.gmra.mrb[0].mxu0 %v460
      %v499 = vpop.f32.mrb[0].mxu0
      %v500 = vadd.f32 0.0, %v499
      %v501 = vpop.f32.mrb[0].mxu0
      %v502 = vpop.f32.mrb[0].mxu0
      %v503 = vpop.f32.mrb[0].mxu0
      %504 = vdwg.mxu0
      %v505 = vsel %vm458, %v500, -inf
      %506 = vmax.xlane.f32.xlu0 %v505
      %v507 = vpop.xlane.xlu0 %506
      %v508 = vsub.f32 %v500, %v507
      %v509 = vmul.f32 %v508, 1.442695
      %v510 = vpow.pop %v509
      %v511 = vsel %vm458, %v510, 0.0
      %512 = vadd.xlane.f32.xlu0 %v511
      %v513 = vpop.xlane.xlu0 %512
      %v514 = vrcp.pop %v513
      %v515 = vmul.f32 %v510, %v514
      %v516 = vpack.c.bf16 %v515, %v515
      %518 = vrot.lane.b32.xlu0 %v453, 96
      %v519 = vpop.permute.xlu0 %518
      %v521 = vsel %vm458, %v516, 0
      %vm523 = vcmask 1043456
      %v525 = vsel %vm523, %v519, 0
      %527 = vmatprep.subr.bf16.mxu0 0
      %528 = vmatpush1.bf16.msra.mxu0 %v525
      %529 = vmatprep.subr.bf16.mxu0 0
      %530 = vmatpush1.bf16.msra.mxu0 0
      %531 = vmatprep.subr.bf16.mxu0 0
      %532 = vmatpush1.bf16.msra.mxu0 0
      %533 = vmatprep.subr.bf16.mxu0 0
      %534 = vmatpush1.bf16.msra.mxu0 0
      %535 = vmatprep.subr.bf16.mxu0 0
      %536 = vmatpush1.bf16.msra.mxu0 0
      %537 = vmatprep.subr.bf16.mxu0 0
      %538 = vmatpush1.bf16.msra.mxu0 0
      %539 = vmatprep.subr.bf16.mxu0 0
      %540 = vmatpush1.bf16.msra.mxu0 0
      %541 = vmatprep.subr.bf16.mxu0 0
      %542 = vmatpush1.bf16.msra.mxu0 0
      %543 = vmatprep.subr.bf16.mxu0 0
      %544 = vmatpush1.bf16.msra.mxu0 0
      %545 = vmatprep.subr.bf16.mxu0 0
      %546 = vmatpush1.bf16.msra.mxu0 0
      %547 = vmatprep.subr.bf16.mxu0 0
      %548 = vmatpush1.bf16.msra.mxu0 0
      %549 = vmatprep.subr.bf16.mxu0 0
      %550 = vmatpush1.bf16.msra.mxu0 0
      %551 = vmatprep.subr.bf16.mxu0 0
      %552 = vmatpush1.bf16.msra.mxu0 0
      %553 = vmatprep.subr.bf16.mxu0 0
      %554 = vmatpush1.bf16.msra.mxu0 0
      %555 = vmatprep.subr.bf16.mxu0 0
      %556 = vmatpush1.bf16.msra.mxu0 0
      %557 = vmatprep.subr.bf16.mxu0 0
      %558 = vmatpush1.bf16.msra.mxu0 0
      %559 = vmatprep.mubr.bf16.mxu0 0
      %560 = vmatmul.mubr.bf16.gmra.mrb[0].mxu0 %v521
      %v561 = vpop.f32.mrb[0].mxu0
      %v562 = vadd.f32 0.0, %v561
      %v563 = vpop.f32.mrb[0].mxu0
      %v564 = vpop.f32.mrb[0].mxu0
      %v565 = vpop.f32.mrb[0].mxu0
      %566 = vdwg.mxu0
      %v567 = vpack.c.bf16 %v562, %v562
      %569 = vrot.lane.b32.xlu0 %v386, 120
      %v570 = vpop.permute.xlu0 %569
      %571 = vrot.lane.b32.xlu0 %v453, 120
      %v572 = vpop.permute.xlu0 %571
      %v574 = vsel %vm458, %v570, 0
      %v577 = vsel %vm458, %v572, 0
      %579 = vmatprep.subr.bf16.mxu0 0
      %580 = vmatpush1.bf16.xpose.msra.mxu0 %v577
      %581 = vmatprep.subr.bf16.mxu0 0
      %582 = vmatpush1.bf16.xpose.msra.mxu0 0
      %583 = vmatprep.subr.bf16.mxu0 0
      %584 = vmatpush1.bf16.xpose.msra.mxu0 0
      %585 = vmatprep.subr.bf16.mxu0 0
      %586 = vmatpush1.bf16.xpose.msra.mxu0 0
      %587 = vmatprep.subr.bf16.mxu0 0
      %588 = vmatpush1.bf16.xpose.msra.mxu0 0
      %589 = vmatprep.subr.bf16.mxu0 0
      %590 = vmatpush1.bf16.xpose.msra.mxu0 0
      %591 = vmatprep.subr.bf16.mxu0 0
      %592 = vmatpush1.bf16.xpose.msra.mxu0 0
      %593 = vmatprep.subr.bf16.mxu0 0
      %594 = vmatpush1.bf16.xpose.msra.mxu0 0
      %595 = vmatprep.subr.bf16.mxu0 0
      %596 = vmatpush1.bf16.xpose.msra.mxu0 0
      %597 = vmatprep.subr.bf16.mxu0 0
      %598 = vmatpush1.bf16.xpose.msra.mxu0 0
      %599 = vmatprep.subr.bf16.mxu0 0
      %600 = vmatpush1.bf16.xpose.msra.mxu0 0
      %601 = vmatprep.subr.bf16.mxu0 0
      %602 = vmatpush1.bf16.xpose.msra.mxu0 0
      %603 = vmatprep.subr.bf16.mxu0 0
      %604 = vmatpush1.bf16.xpose.msra.mxu0 0
      %605 = vmatprep.subr.bf16.mxu0 0
      %606 = vmatpush1.bf16.xpose.msra.mxu0 0
      %607 = vmatprep.subr.bf16.mxu0 0
      %608 = vmatpush1.bf16.xpose.msra.mxu0 0
      %609 = vmatprep.subr.bf16.mxu0 0
      %610 = vmatpush1.bf16.xpose.msra.mxu0 0
      %611 = vmatprep.mubr.bf16.mxu0 0
      %612 = vmatmul.mubr.bf16.gmra.mrb[0].mxu0 %v574
      %v613 = vpop.f32.mrb[0].mxu0
      %v614 = vadd.f32 0.0, %v613
      %v615 = vpop.f32.mrb[0].mxu0
      %v616 = vpop.f32.mrb[0].mxu0
      %v617 = vpop.f32.mrb[0].mxu0
      %618 = vdwg.mxu0
      %v619 = vsel %vm458, %v614, -inf
      %620 = vmax.xlane.f32.xlu0 %v619
      %v621 = vpop.xlane.xlu0 %620
      %v622 = vsub.f32 %v614, %v621
      %v623 = vmul.f32 %v622, 1.442695
      %v624 = vpow.pop %v623
      %v625 = vsel %vm458, %v624, 0.0
      %626 = vadd.xlane.f32.xlu0 %v625
      %v627 = vpop.xlane.xlu0 %626
      %v628 = vrcp.pop %v627
      %v629 = vmul.f32 %v624, %v628
      %v630 = vpack.c.bf16 %v629, %v629
      %631 = vrot.lane.b32.xlu0 %v453, 88
      %v632 = vpop.permute.xlu0 %631
      %v634 = vsel %vm458, %v630, 0
      %v637 = vsel %vm523, %v632, 0
      %639 = vmatprep.subr.bf16.mxu0 0
      %640 = vmatpush1.bf16.msra.mxu0 %v637
      %641 = vmatprep.subr.bf16.mxu0 0
      %642 = vmatpush1.bf16.msra.mxu0 0
      %643 = vmatprep.subr.bf16.mxu0 0
      %644 = vmatpush1.bf16.msra.mxu0 0
      %645 = vmatprep.subr.bf16.mxu0 0
      %646 = vmatpush1.bf16.msra.mxu0 0
      %647 = vmatprep.subr.bf16.mxu0 0
      %648 = vmatpush1.bf16.msra.mxu0 0
      %649 = vmatprep.subr.bf16.mxu0 0
      %650 = vmatpush1.bf16.msra.mxu0 0
      %651 = vmatprep.subr.bf16.mxu0 0
      %652 = vmatpush1.bf16.msra.mxu0 0
      %653 = vmatprep.subr.bf16.mxu0 0
      %654 = vmatpush1.bf16.msra.mxu0 0
      %655 = vmatprep.subr.bf16.mxu0 0
      %656 = vmatpush1.bf16.msra.mxu0 0
      %657 = vmatprep.subr.bf16.mxu0 0
      %658 = vmatpush1.bf16.msra.mxu0 0
      %659 = vmatprep.subr.bf16.mxu0 0
      %660 = vmatpush1.bf16.msra.mxu0 0
      %661 = vmatprep.subr.bf16.mxu0 0
      %662 = vmatpush1.bf16.msra.mxu0 0
      %663 = vmatprep.subr.bf16.mxu0 0
      %664 = vmatpush1.bf16.msra.mxu0 0
      %665 = vmatprep.subr.bf16.mxu0 0
      %666 = vmatpush1.bf16.msra.mxu0 0
      %667 = vmatprep.subr.bf16.mxu0 0
      %668 = vmatpush1.bf16.msra.mxu0 0
      %669 = vmatprep.subr.bf16.mxu0 0
      %670 = vmatpush1.bf16.msra.mxu0 0
      %671 = vmatprep.mubr.bf16.mxu0 0
      %672 = vmatmul.mubr.bf16.gmra.mrb[0].mxu0 %v634
      %v673 = vpop.f32.mrb[0].mxu0
      %v674 = vadd.f32 0.0, %v673
      %v675 = vpop.f32.mrb[0].mxu0
      %v676 = vpop.f32.mrb[0].mxu0
      %v677 = vpop.f32.mrb[0].mxu0
      %678 = vdwg.mxu0
      %v679 = vpack.c.bf16 %v674, %v674
      %v681 = vsel %vm458, %v679, 0
      %v684 = vsel %vm523, %v455, 0
      %686 = vmatprep.subr.bf16.mxu0 0
      %687 = vmatpush1.bf16.msra.mxu0 %v684
      %688 = vmatprep.subr.bf16.mxu0 0
      %689 = vmatpush1.bf16.msra.mxu0 0
      %690 = vmatprep.subr.bf16.mxu0 0
      %691 = vmatpush1.bf16.msra.mxu0 0
      %692 = vmatprep.subr.bf16.mxu0 0
      %693 = vmatpush1.bf16.msra.mxu0 0
      %694 = vmatprep.subr.bf16.mxu0 0
      %695 = vmatpush1.bf16.msra.mxu0 0
      %696 = vmatprep.subr.bf16.mxu0 0
      %697 = vmatpush1.bf16.msra.mxu0 0
      %698 = vmatprep.subr.bf16.mxu0 0
      %699 = vmatpush1.bf16.msra.mxu0 0
      %700 = vmatprep.subr.bf16.mxu0 0
      %701 = vmatpush1.bf16.msra.mxu0 0
      %702 = vmatprep.subr.bf16.mxu0 0
      %703 = vmatpush1.bf16.msra.mxu0 0
      %704 = vmatprep.subr.bf16.mxu0 0
      %705 = vmatpush1.bf16.msra.mxu0 0
      %706 = vmatprep.subr.bf16.mxu0 0
      %707 = vmatpush1.bf16.msra.mxu0 0
      %708 = vmatprep.subr.bf16.mxu0 0
      %709 = vmatpush1.bf16.msra.mxu0 0
      %710 = vmatprep.subr.bf16.mxu0 0
      %711 = vmatpush1.bf16.msra.mxu0 0
      %712 = vmatprep.subr.bf16.mxu0 0
      %713 = vmatpush1.bf16.msra.mxu0 0
      %714 = vmatprep.subr.bf16.mxu0 0
      %715 = vmatpush1.bf16.msra.mxu0 0
      %716 = vmatprep.subr.bf16.mxu0 0
      %717 = vmatpush1.bf16.msra.mxu0 0
      %718 = vmatprep.mubr.bf16.mxu0 0
      %719 = vmatmul.mubr.bf16.gmra.mrb[0].mxu0 %v681
      %v720 = vpop.f32.mrb[0].mxu0
      %v721 = vadd.f32 0.0, %v720
      %v722 = vpop.f32.mrb[0].mxu0
      %v723 = vpop.f32.mrb[0].mxu0
      %v724 = vpop.f32.mrb[0].mxu0
      %725 = vdwg.mxu0
      %v727 = vsel %vm458, %v567, 0
      %v730 = vsel %vm523, %v454, 0
      %732 = vmatprep.subr.bf16.mxu0 0
      %733 = vmatpush1.bf16.msra.mxu0 %v730
      %734 = vmatprep.subr.bf16.mxu0 0
      %735 = vmatpush1.bf16.msra.mxu0 0
      %736 = vmatprep.subr.bf16.mxu0 0
      %737 = vmatpush1.bf16.msra.mxu0 0
      %738 = vmatprep.subr.bf16.mxu0 0
      %739 = vmatpush1.bf16.msra.mxu0 0
      %740 = vmatprep.subr.bf16.mxu0 0
      %741 = vmatpush1.bf16.msra.mxu0 0
      %742 = vmatprep.subr.bf16.mxu0 0
      %743 = vmatpush1.bf16.msra.mxu0 0
      %744 = vmatprep.subr.bf16.mxu0 0
      %745 = vmatpush1.bf16.msra.mxu0 0
      %746 = vmatprep.subr.bf16.mxu0 0
      %747 = vmatpush1.bf16.msra.mxu0 0
      %748 = vmatprep.subr.bf16.mxu0 0
      %749 = vmatpush1.bf16.msra.mxu0 0
      %750 = vmatprep.subr.bf16.mxu0 0
      %751 = vmatpush1.bf16.msra.mxu0 0
      %752 = vmatprep.subr.bf16.mxu0 0
      %753 = vmatpush1.bf16.msra.mxu0 0
      %754 = vmatprep.subr.bf16.mxu0 0
      %755 = vmatpush1.bf16.msra.mxu0 0
      %756 = vmatprep.subr.bf16.mxu0 0
      %757 = vmatpush1.bf16.msra.mxu0 0
      %758 = vmatprep.subr.bf16.mxu0 0
      %759 = vmatpush1.bf16.msra.mxu0 0
      %760 = vmatprep.subr.bf16.mxu0 0
      %761 = vmatpush1.bf16.msra.mxu0 0
      %762 = vmatprep.subr.bf16.mxu0 0
      %763 = vmatpush1.bf16.msra.mxu0 0
      %764 = vmatprep.mubr.bf16.mxu0 0
      %765 = vmatmul.mubr.bf16.gmra.mrb[0].mxu0 %v727
      %v766 = vpop.f32.mrb[0].mxu0
      %v767 = vadd.f32 %v721, %v766
      %v768 = vpop.f32.mrb[0].mxu0
      %v769 = vpop.f32.mrb[0].mxu0
      %v770 = vpop.f32.mrb[0].mxu0
      %771 = vdwg.mxu0
      %772 = vrot.lane.b32.xlu0 %v386, 112
      %v773 = vpop.permute.xlu0 %772
      %774 = vrot.lane.b32.xlu0 %v453, 112
      %v775 = vpop.permute.xlu0 %774
      %v777 = vsel %vm458, %v773, 0
      %v780 = vsel %vm458, %v775, 0
      %782 = vmatprep.subr.bf16.mxu0 0
      %783 = vmatpush1.bf16.xpose.msra.mxu0 %v780
      %784 = vmatprep.subr.bf16.mxu0 0
      %785 = vmatpush1.bf16.xpose.msra.mxu0 0
      %786 = vmatprep.subr.bf16.mxu0 0
      %787 = vmatpush1.bf16.xpose.msra.mxu0 0
      %788 = vmatprep.subr.bf16.mxu0 0
      %789 = vmatpush1.bf16.xpose.msra.mxu0 0
      %790 = vmatprep.subr.bf16.mxu0 0
      %791 = vmatpush1.bf16.xpose.msra.mxu0 0
      %792 = vmatprep.subr.bf16.mxu0 0
      %793 = vmatpush1.bf16.xpose.msra.mxu0 0
      %794 = vmatprep.subr.bf16.mxu0 0
      %795 = vmatpush1.bf16.xpose.msra.mxu0 0
      %796 = vmatprep.subr.bf16.mxu0 0
      %797 = vmatpush1.bf16.xpose.msra.mxu0 0
      %798 = vmatprep.subr.bf16.mxu0 0
      %799 = vmatpush1.bf16.xpose.msra.mxu0 0
      %800 = vmatprep.subr.bf16.mxu0 0
      %801 = vmatpush1.bf16.xpose.msra.mxu0 0
      %802 = vmatprep.subr.bf16.mxu0 0
      %803 = vmatpush1.bf16.xpose.msra.mxu0 0
      %804 = vmatprep.subr.bf16.mxu0 0
      %805 = vmatpush1.bf16.xpose.msra.mxu0 0
      %806 = vmatprep.subr.bf16.mxu0 0
      %807 = vmatpush1.bf16.xpose.msra.mxu0 0
      %808 = vmatprep.subr.bf16.mxu0 0
      %809 = vmatpush1.bf16.xpose.msra.mxu0 0
      %810 = vmatprep.subr.bf16.mxu0 0
      %811 = vmatpush1.bf16.xpose.msra.mxu0 0
      %812 = vmatprep.subr.bf16.mxu0 0
      %813 = vmatpush1.bf16.xpose.msra.mxu0 0
      %814 = vmatprep.mubr.bf16.mxu0 0
      %815 = vmatmul.mubr.bf16.gmra.mrb[0].mxu0 %v777
      %v816 = vpop.f32.mrb[0].mxu0
      %v817 = vadd.f32 0.0, %v816
      %v818 = vpop.f32.mrb[0].mxu0
      %v819 = vpop.f32.mrb[0].mxu0
      %v820 = vpop.f32.mrb[0].mxu0
      %821 = vdwg.mxu0
      %v822 = vsel %vm458, %v817, -inf
      %823 = vmax.xlane.f32.xlu0 %v822
      %v824 = vpop.xlane.xlu0 %823
      %v825 = vsub.f32 %v817, %v824
      %v826 = vmul.f32 %v825, 1.442695
      %v827 = vpow.pop %v826
      %v828 = vsel %vm458, %v827, 0.0
      %829 = vadd.xlane.f32.xlu0 %v828
      %v830 = vpop.xlane.xlu0 %829
      %v831 = vrcp.pop %v830
      %v832 = vmul.f32 %v827, %v831
      %v833 = vpack.c.bf16 %v832, %v832
      %834 = vrot.lane.b32.xlu0 %v453, 80
      %v835 = vpop.permute.xlu0 %834
      %v837 = vsel %vm458, %v833, 0
      %v840 = vsel %vm523, %v835, 0
      %842 = vmatprep.subr.bf16.mxu0 0
      %843 = vmatpush1.bf16.msra.mxu0 %v840
      %844 = vmatprep.subr.bf16.mxu0 0
      %845 = vmatpush1.bf16.msra.mxu0 0
      %846 = vmatprep.subr.bf16.mxu0 0
      %847 = vmatpush1.bf16.msra.mxu0 0
      %848 = vmatprep.subr.bf16.mxu0 0
      %849 = vmatpush1.bf16.msra.mxu0 0
      %850 = vmatprep.subr.bf16.mxu0 0
      %851 = vmatpush1.bf16.msra.mxu0 0
      %852 = vmatprep.subr.bf16.mxu0 0
      %853 = vmatpush1.bf16.msra.mxu0 0
      %854 = vmatprep.subr.bf16.mxu0 0
      %855 = vmatpush1.bf16.msra.mxu0 0
      %856 = vmatprep.subr.bf16.mxu0 0
      %857 = vmatpush1.bf16.msra.mxu0 0
      %858 = vmatprep.subr.bf16.mxu0 0
      %859 = vmatpush1.bf16.msra.mxu0 0
      %860 = vmatprep.subr.bf16.mxu0 0
      %861 = vmatpush1.bf16.msra.mxu0 0
      %862 = vmatprep.subr.bf16.mxu0 0
      %863 = vmatpush1.bf16.msra.mxu0 0
      %864 = vmatprep.subr.bf16.mxu0 0
      %865 = vmatpush1.bf16.msra.mxu0 0
      %866 = vmatprep.subr.bf16.mxu0 0
      %867 = vmatpush1.bf16.msra.mxu0 0
      %868 = vmatprep.subr.bf16.mxu0 0
      %869 = vmatpush1.bf16.msra.mxu0 0
      %870 = vmatprep.subr.bf16.mxu0 0
      %871 = vmatpush1.bf16.msra.mxu0 0
      %872 = vmatprep.subr.bf16.mxu0 0
      %873 = vmatpush1.bf16.msra.mxu0 0
      %874 = vmatprep.mubr.bf16.mxu0 0
      %875 = vmatmul.mubr.bf16.gmra.mrb[0].mxu0 %v837
      %v876 = vpop.f32.mrb[0].mxu0
      %v877 = vadd.f32 0.0, %v876
      %v878 = vpop.f32.mrb[0].mxu0
      %v879 = vpop.f32.mrb[0].mxu0
      %v880 = vpop.f32.mrb[0].mxu0
      %881 = vdwg.mxu0
      %v882 = vpack.c.bf16 %v877, %v877
      %v884 = vsel %vm458, %v882, 0
      %v887 = vsel %vm523, %v456, 0
      %889 = vmatprep.subr.bf16.mxu0 0
      %890 = vmatpush1.bf16.msra.mxu0 %v887
      %891 = vmatprep.subr.bf16.mxu0 0
      %892 = vmatpush1.bf16.msra.mxu0 0
      %893 = vmatprep.subr.bf16.mxu0 0
      %894 = vmatpush1.bf16.msra.mxu0 0
      %895 = vmatprep.subr.bf16.mxu0 0
      %896 = vmatpush1.bf16.msra.mxu0 0
      %897 = vmatprep.subr.bf16.mxu0 0
      %898 = vmatpush1.bf16.msra.mxu0 0
      %899 = vmatprep.subr.bf16.mxu0 0
      %900 = vmatpush1.bf16.msra.mxu0 0
      %901 = vmatprep.subr.bf16.mxu0 0
      %902 = vmatpush1.bf16.msra.mxu0 0
      %903 = vmatprep.subr.bf16.mxu0 0
      %904 = vmatpush1.bf16.msra.mxu0 0
      %905 = vmatprep.subr.bf16.mxu0 0
      %906 = vmatpush1.bf16.msra.mxu0 0
      %907 = vmatprep.subr.bf16.mxu0 0
      %908 = vmatpush1.bf16.msra.mxu0 0
      %909 = vmatprep.subr.bf16.mxu0 0
      %910 = vmatpush1.bf16.msra.mxu0 0
      %911 = vmatprep.subr.bf16.mxu0 0
      %912 = vmatpush1.bf16.msra.mxu0 0
      %913 = vmatprep.subr.bf16.mxu0 0
      %914 = vmatpush1.bf16.msra.mxu0 0
      %915 = vmatprep.subr.bf16.mxu0 0
      %916 = vmatpush1.bf16.msra.mxu0 0
      %917 = vmatprep.subr.bf16.mxu0 0
      %918 = vmatpush1.bf16.msra.mxu0 0
      %919 = vmatprep.subr.bf16.mxu0 0
      %920 = vmatpush1.bf16.msra.mxu0 0
      %921 = vmatprep.mubr.bf16.mxu0 0
      %922 = vmatmul.mubr.bf16.gmra.mrb[0].mxu0 %v884
      %v923 = vpop.f32.mrb[0].mxu0
      %v924 = vadd.f32 0.0, %v923
      %v925 = vpop.f32.mrb[0].mxu0
      %v926 = vpop.f32.mrb[0].mxu0
      %v927 = vpop.f32.mrb[0].mxu0
      %928 = vdwg.mxu0
      %v929 = vadd.f32 %v767, %v924
      %930 = vrot.lane.b32.xlu0 %v386, 104
      %v931 = vpop.permute.xlu0 %930
      %932 = vrot.lane.b32.xlu0 %v453, 104
      %v933 = vpop.permute.xlu0 %932
      %v935 = vsel %vm458, %v931, 0
      %v938 = vsel %vm458, %v933, 0
      %940 = vmatprep.subr.bf16.mxu0 0
      %941 = vmatpush1.bf16.xpose.msra.mxu0 %v938
      %942 = vmatprep.subr.bf16.mxu0 0
      %943 = vmatpush1.bf16.xpose.msra.mxu0 0
      %944 = vmatprep.subr.bf16.mxu0 0
      %945 = vmatpush1.bf16.xpose.msra.mxu0 0
      %946 = vmatprep.subr.bf16.mxu0 0
      %947 = vmatpush1.bf16.xpose.msra.mxu0 0
      %948 = vmatprep.subr.bf16.mxu0 0
      %949 = vmatpush1.bf16.xpose.msra.mxu0 0
      %950 = vmatprep.subr.bf16.mxu0 0
      %951 = vmatpush1.bf16.xpose.msra.mxu0 0
      %952 = vmatprep.subr.bf16.mxu0 0
      %953 = vmatpush1.bf16.xpose.msra.mxu0 0
      %954 = vmatprep.subr.bf16.mxu0 0
      %955 = vmatpush1.bf16.xpose.msra.mxu0 0
      %956 = vmatprep.subr.bf16.mxu0 0
      %957 = vmatpush1.bf16.xpose.msra.mxu0 0
      %958 = vmatprep.subr.bf16.mxu0 0
      %959 = vmatpush1.bf16.xpose.msra.mxu0 0
      %960 = vmatprep.subr.bf16.mxu0 0
      %961 = vmatpush1.bf16.xpose.msra.mxu0 0
      %962 = vmatprep.subr.bf16.mxu0 0
      %963 = vmatpush1.bf16.xpose.msra.mxu0 0
      %964 = vmatprep.subr.bf16.mxu0 0
      %965 = vmatpush1.bf16.xpose.msra.mxu0 0
      %966 = vmatprep.subr.bf16.mxu0 0
      %967 = vmatpush1.bf16.xpose.msra.mxu0 0
      %968 = vmatprep.subr.bf16.mxu0 0
      %969 = vmatpush1.bf16.xpose.msra.mxu0 0
      %970 = vmatprep.subr.bf16.mxu0 0
      %971 = vmatpush1.bf16.xpose.msra.mxu0 0
      %972 = vmatprep.mubr.bf16.mxu0 0
      %973 = vmatmul.mubr.bf16.gmra.mrb[0].mxu0 %v935
      %v974 = vpop.f32.mrb[0].mxu0
      %v975 = vadd.f32 0.0, %v974
      %v976 = vpop.f32.mrb[0].mxu0
      %v977 = vpop.f32.mrb[0].mxu0
      %v978 = vpop.f32.mrb[0].mxu0
      %979 = vdwg.mxu0
      %v980 = vsel %vm458, %v975, -inf
      %981 = vmax.xlane.f32.xlu0 %v980
      %v982 = vpop.xlane.xlu0 %981
      %v983 = vsub.f32 %v975, %v982
      %v984 = vmul.f32 %v983, 1.442695
      %v985 = vpow.pop %v984
      %v986 = vsel %vm458, %v985, 0.0
      %987 = vadd.xlane.f32.xlu0 %v986
      %v988 = vpop.xlane.xlu0 %987
      %v989 = vrcp.pop %v988
      %v990 = vmul.f32 %v985, %v989
      %v991 = vpack.c.bf16 %v990, %v990
      %992 = vrot.lane.b32.xlu0 %v453, 72
      %v993 = vpop.permute.xlu0 %992
      %v995 = vsel %vm458, %v991, 0
      %v998 = vsel %vm523, %v993, 0
      %1000 = vmatprep.subr.bf16.mxu0 0
      %1001 = vmatpush1.bf16.msra.mxu0 %v998
      %1002 = vmatprep.subr.bf16.mxu0 0
      %1003 = vmatpush1.bf16.msra.mxu0 0
      %1004 = vmatprep.subr.bf16.mxu0 0
      %1005 = vmatpush1.bf16.msra.mxu0 0
      %1006 = vmatprep.subr.bf16.mxu0 0
      %1007 = vmatpush1.bf16.msra.mxu0 0
      %1008 = vmatprep.subr.bf16.mxu0 0
      %1009 = vmatpush1.bf16.msra.mxu0 0
      %1010 = vmatprep.subr.bf16.mxu0 0
      %1011 = vmatpush1.bf16.msra.mxu0 0
      %1012 = vmatprep.subr.bf16.mxu0 0
      %1013 = vmatpush1.bf16.msra.mxu0 0
      %1014 = vmatprep.subr.bf16.mxu0 0
      %1015 = vmatpush1.bf16.msra.mxu0 0
      %1016 = vmatprep.subr.bf16.mxu0 0
      %1017 = vmatpush1.bf16.msra.mxu0 0
      %1018 = vmatprep.subr.bf16.mxu0 0
      %1019 = vmatpush1.bf16.msra.mxu0 0
      %1020 = vmatprep.subr.bf16.mxu0 0
      %1021 = vmatpush1.bf16.msra.mxu0 0
      %1022 = vmatprep.subr.bf16.mxu0 0
      %1023 = vmatpush1.bf16.msra.mxu0 0
      %1024 = vmatprep.subr.bf16.mxu0 0
      %1025 = vmatpush1.bf16.msra.mxu0 0
      %1026 = vmatprep.subr.bf16.mxu0 0
      %1027 = vmatpush1.bf16.msra.mxu0 0
      %1028 = vmatprep.subr.bf16.mxu0 0
      %1029 = vmatpush1.bf16.msra.mxu0 0
      %1030 = vmatprep.subr.bf16.mxu0 0
      %1031 = vmatpush1.bf16.msra.mxu0 0
      %1032 = vmatprep.mubr.bf16.mxu0 0
      %1033 = vmatmul.mubr.bf16.gmra.mrb[0].mxu0 %v995
      %v1034 = vpop.f32.mrb[0].mxu0
      %v1035 = vadd.f32 0.0, %v1034
      %v1036 = vpop.f32.mrb[0].mxu0
      %v1037 = vpop.f32.mrb[0].mxu0
      %v1038 = vpop.f32.mrb[0].mxu0
      %1039 = vdwg.mxu0
      %v1040 = vpack.c.bf16 %v1035, %v1035
      %v1042 = vsel %vm458, %v1040, 0
      %v1045 = vsel %vm523, %v457, 0
      %1047 = vmatprep.subr.bf16.mxu0 0
      %1048 = vmatpush1.bf16.msra.mxu0 %v1045
      %1049 = vmatprep.subr.bf16.mxu0 0
      %1050 = vmatpush1.bf16.msra.mxu0 0
      %1051 = vmatprep.subr.bf16.mxu0 0
      %1052 = vmatpush1.bf16.msra.mxu0 0
      %1053 = vmatprep.subr.bf16.mxu0 0
      %1054 = vmatpush1.bf16.msra.mxu0 0
      %1055 = vmatprep.subr.bf16.mxu0 0
      %1056 = vmatpush1.bf16.msra.mxu0 0
      %1057 = vmatprep.subr.bf16.mxu0 0
      %1058 = vmatpush1.bf16.msra.mxu0 0
      %1059 = vmatprep.subr.bf16.mxu0 0
      %1060 = vmatpush1.bf16.msra.mxu0 0
      %1061 = vmatprep.subr.bf16.mxu0 0
      %1062 = vmatpush1.bf16.msra.mxu0 0
      %1063 = vmatprep.subr.bf16.mxu0 0
      %1064 = vmatpush1.bf16.msra.mxu0 0
      %1065 = vmatprep.subr.bf16.mxu0 0
      %1066 = vmatpush1.bf16.msra.mxu0 0
      %1067 = vmatprep.subr.bf16.mxu0 0
      %1068 = vmatpush1.bf16.msra.mxu0 0
      %1069 = vmatprep.subr.bf16.mxu0 0
      %1070 = vmatpush1.bf16.msra.mxu0 0
      %1071 = vmatprep.subr.bf16.mxu0 0
      %1072 = vmatpush1.bf16.msra.mxu0 0
      %1073 = vmatprep.subr.bf16.mxu0 0
      %1074 = vmatpush1.bf16.msra.mxu0 0
      %1075 = vmatprep.subr.bf16.mxu0 0
      %1076 = vmatpush1.bf16.msra.mxu0 0
      %1077 = vmatprep.subr.bf16.mxu0 0
      %1078 = vmatpush1.bf16.msra.mxu0 0
      %1079 = vmatprep.mubr.bf16.mxu0 0
      %1080 = vmatmul.mubr.bf16.gmra.mrb[0].mxu0 %v1042
      %v1081 = vpop.f32.mrb[0].mxu0
      %v1082 = vadd.f32 0.0, %v1081
      %v1083 = vpop.f32.mrb[0].mxu0
      %v1084 = vpop.f32.mrb[0].mxu0
      %v1085 = vpop.f32.mrb[0].mxu0
      %1086 = vdwg.mxu0
      %v1087 = vadd.f32 %v929, %v1082
      %v1088 = vld [vmem:[%s7] sm:$0x1]
      %v1089 = vunpack.c.l.bf16 %v1088
      %v1090 = vlaneseq
      %v1091 = vshrl.u32 %v1090, 7
      %v1092 = vsub.s32 0, %v1091
      %v1093 = vrot.slane %v1089, %v1092
      %v1094 = vadd.f32 %v1087, %v1093
      %v1095 = vpack.c.bf16 %v1094, %v1094
      %vm1096 = vcmask 257024
      %1097 = vst.msk [vmem:[%s317] sm:$0xf] %vm1096, %v1095
      %p1098 = scmp.lt.s32.totalorder %s19, 1
      %s1099 = scalar_select %p1098, %s19, 1
      %s1100 = smul.addr %s1099, 4
      %s1101 = scalar_lea.vmem %s8, %s1100
      // Predicated region
      $region53: #{nat_decoder.10} parent=51 // pred_check
        %p1102 = pneg %p215
      $region54: #{nat_decoder.10} parent=51 // pred_check_branch
        %1104 = sbr.rel (%p1102) target = $region56
      $region55: #{nat_decoder.10} parent=51 // pred_region
        _
      $region56: #{nat_decoder.10} parent=51 // pred_fallthru
        _
    $region52: #{nat_decoder.10} parent=5 // pred_fallthru
      _
    %p1105 = scmp.le.s32.totalorder 2, %s14
    // Predicated region
    $region57: #{nat_decoder.10} parent=5 // pred_check
      %p1106 = pneg %p1105
    $region58: #{nat_decoder.10} parent=5 // pred_check_branch
      %1108 = sbr.rel (%p1106) target = $region60
    $region59: #{nat_decoder.10} parent=5 // pred_region
      %s1109 = ssub.s32 %s14, 2
      // Predicated region
      $region61: #{nat_decoder.10} parent=59 // pred_check
        %p1110 = pneg %p221
      $region62: #{nat_decoder.10} parent=59 // pred_check_branch
        %1112 = sbr.rel (%p1110) target = $region64
      $region63: #{nat_decoder.10} parent=59 // pred_region
        %p1113 = scmp.lt.s32.totalorder %s20, 1
        %s1114 = scalar_select %p1113, %s20, 1
        %s1115 = smul.addr %s1114, 4
        %s1116 = scalar_lea.vmem %s8, %s1115
      $region64: #{nat_decoder.10} parent=59 // pred_fallthru
        _
    $region60: #{nat_decoder.10} parent=5 // pred_fallthru
      _
  $region6: #{nat_decoder.10} parent=0 // loop_footer
    %s18 = sadd.s32 1, %s14
  $region7: #{nat_decoder.10} parent=0 // loop_footer_branch
    %13 = sbr.rel target = $region3
  $region8: #{nat_decoder.10} parent=0 // loop_exit
    _

// kernel: nat_decoder.9
$region0: #{nat_decoder.9}
  #allocation0 [shape = 'u32[]', space=smem, size = 0x4, offset = 0x4, fixed_abs, tag = 'smem constant byte address 0x4 - core index']
  #allocation1 [shape = 'u32[144,128]{1,0:T(1,128)}', space=vmem, size = 0x12000, scoped, tag = 'internal scratch']
  %s0 = inlined_call_operand.vmem [shape: bf16[2,8,32], index: 0, kind: input, shape index: {}]
  %s1 = inlined_call_operand.vmem [shape: bf16[8,32], index: 1, kind: input, shape index: {}]
  %s2 = inlined_call_operand.vmem [shape: bf16[32,32], index: 2, kind: input, shape index: {}]
  %s3 = inlined_call_operand.vmem [shape: bf16[1,32], index: 3, kind: input, shape index: {}]
  %s4 = inlined_call_operand.vmem [shape: bf16[32,64], index: 4, kind: input, shape index: {}]
  %s5 = inlined_call_operand.vmem [shape: bf16[1,64], index: 5, kind: input, shape index: {}]
  %s6 = inlined_call_operand.vmem [shape: bf16[32,32], index: 6, kind: input, shape index: {}]
  %s7 = inlined_call_operand.vmem [shape: bf16[1,32], index: 7, kind: input, shape index: {}]
  %s8 = inlined_call_operand.vmem [shape: f32[2,1,8], index: 8, kind: input, shape index: {}]
  %s9 = inlined_call_operand.vmem [shape: bf16[2,8,32], index: 9, kind: output, shape index: {}]
  %s10 = sld [smem:[#allocation0]]
  $region69: #{nat_decoder.9} parent=0
    _
  %s12 = ssub.s32 1, %s10
  %s13 = scalar_select 0, %s12, %s10
  loop: start=0, step=1, limit=4
  $region2: #{nat_decoder.9} parent=0 // loop_pre_header
    _
  $region3: #{nat_decoder.9} parent=0 // loop_header
    %s15 = sphi 0, %s19
    %p16 = scmp.ge.s32.totalorder %s15, 4
    %s25 = sphi 0, %s27
    %s28 = sphi 0, %s25
    %s29 = sphi 0, %s28
    %s45 = sphi 0, %s29
    %s49 = sphi 0, %s49
    %s51 = sphi 0, %s49
    %s52 = sphi 0, %s51
    %s66 = sphi 0, %s52
    %s70 = sphi 0, %s70
    %s72 = sphi 0, %s70
    %s73 = sphi 0, %s72
    %s87 = sphi 0, %s73
    %s91 = sphi 0, %s91
    %s93 = sphi 0, %s91
    %s94 = sphi 0, %s93
    %s108 = sphi 0, %s94
    %s112 = sphi 0, %s112
    %s114 = sphi 0, %s112
    %s115 = sphi 0, %s114
    %s129 = sphi 0, %s115
    %s133 = sphi 0, %s133
    %s135 = sphi 0, %s133
    %s136 = sphi 0, %s135
    %s150 = sphi 0, %s136
    %s154 = sphi 0, %s154
    %s156 = sphi 0, %s154
    %s157 = sphi 0, %s156
    %s171 = sphi 0, %s157
    %s175 = sphi 0, %s175
    %s177 = sphi 0, %s175
    %s178 = sphi 0, %s177
    %s192 = sphi 0, %s178
    %s198 = sphi 0, %s200
    %s201 = sphi 0, %s198
    %s202 = sphi 0, %s201
    %s218 = sphi 0, %s202
    %s224 = sphi 0, %s226
    %s227 = sphi 0, %s224
    %s228 = sphi 0, %s227
    %s244 = sphi 0, %s228
  $region4: #{nat_decoder.9} parent=0 // loop_header_branch
    %18 = sbr.rel (%p16) target = $region8
  $region5: #{nat_decoder.9} parent=0 // loop_body
    %s20 = ssub.s32 %s15, 1
    %s21 = ssub.s32 %s15, 2
    %s22 = sadd.s32 %s15, 1
    %s23 = ssub.s32 %s15, %s22
    %p24 = scmp.eq.s32.totalorder %s23, 0
    %s26 = sadd.s32 %s25, 1
    %s27 = scalar_select %p24, %s25, %s26
    %p30 = pneg %p24
    %p31 = scmp.eq.s32.totalorder %s15, 1
    %p32 = por %p30, %p31
    %p33 = scmp.ne.s32.totalorder %s25, %s28
    %p34 = scmp.eq.s32.totalorder %s15, 0
    %p35 = por %p33, %p34
    %p36 = scmp.ne.s32.totalorder %s25, %s28
    %p37 = scmp.eq.s32.totalorder %s20, 1
    %p38 = por %p36, %p37
    %p39 = scmp.ne.s32.totalorder %s28, %s29
    %p40 = scmp.eq.s32.totalorder %s20, 0
    %p41 = por %p39, %p40
    %p42 = scmp.ne.s32.totalorder %s28, %s29
    %p43 = scmp.eq.s32.totalorder %s21, 1
    %p44 = por %p42, %p43
    %p46 = scmp.ne.s32.totalorder %s29, %s45
    %p47 = scmp.eq.s32.totalorder %s21, 0
    %p48 = por %p46, %p47
    %s50 = sadd.s32 %s49, 1
    %p53 = scmp.eq.s32.totalorder %s15, 1
    %p54 = scmp.ne.s32.totalorder %s49, %s51
    %p55 = scmp.eq.s32.totalorder %s15, 0
    %p56 = por %p54, %p55
    %p57 = scmp.ne.s32.totalorder %s49, %s51
    %p58 = scmp.eq.s32.totalorder %s20, 1
    %p59 = por %p57, %p58
    %p60 = scmp.ne.s32.totalorder %s51, %s52
    %p61 = scmp.eq.s32.totalorder %s20, 0
    %p62 = por %p60, %p61
    %p63 = scmp.ne.s32.totalorder %s51, %s52
    %p64 = scmp.eq.s32.totalorder %s21, 1
    %p65 = por %p63, %p64
    %p67 = scmp.ne.s32.totalorder %s52, %s66
    %p68 = scmp.eq.s32.totalorder %s21, 0
    %p69 = por %p67, %p68
    %s71 = sadd.s32 %s70, 1
    %p74 = scmp.eq.s32.totalorder %s15, 1
    %p75 = scmp.ne.s32.totalorder %s70, %s72
    %p76 = scmp.eq.s32.totalorder %s15, 0
    %p77 = por %p75, %p76
    %p78 = scmp.ne.s32.totalorder %s70, %s72
    %p79 = scmp.eq.s32.totalorder %s20, 1
    %p80 = por %p78, %p79
    %p81 = scmp.ne.s32.totalorder %s72, %s73
    %p82 = scmp.eq.s32.totalorder %s20, 0
    %p83 = por %p81, %p82
    %p84 = scmp.ne.s32.totalorder %s72, %s73
    %p85 = scmp.eq.s32.totalorder %s21, 1
    %p86 = por %p84, %p85
    %p88 = scmp.ne.s32.totalorder %s73, %s87
    %p89 = scmp.eq.s32.totalorder %s21, 0
    %p90 = por %p88, %p89
    %s92 = sadd.s32 %s91, 1
    %p95 = scmp.eq.s32.totalorder %s15, 1
    %p96 = scmp.ne.s32.totalorder %s91, %s93
    %p97 = scmp.eq.s32.totalorder %s15, 0
    %p98 = por %p96, %p97
    %p99 = scmp.ne.s32.totalorder %s91, %s93
    %p100 = scmp.eq.s32.totalorder %s20, 1
    %p101 = por %p99, %p100
    %p102 = scmp.ne.s32.totalorder %s93, %s94
    %p103 = scmp.eq.s32.totalorder %s20, 0
    %p104 = por %p102, %p103
    %p105 = scmp.ne.s32.totalorder %s93, %s94
    %p106 = scmp.eq.s32.totalorder %s21, 1
    %p107 = por %p105, %p106
    %p109 = scmp.ne.s32.totalorder %s94, %s108
    %p110 = scmp.eq.s32.totalorder %s21, 0
    %p111 = por %p109, %p110
    %s113 = sadd.s32 %s112, 1
    %p116 = scmp.eq.s32.totalorder %s15, 1
    %p117 = scmp.ne.s32.totalorder %s112, %s114
    %p118 = scmp.eq.s32.totalorder %s15, 0
    %p119 = por %p117, %p118
    %p120 = scmp.ne.s32.totalorder %s112, %s114
    %p121 = scmp.eq.s32.totalorder %s20, 1
    %p122 = por %p120, %p121
    %p123 = scmp.ne.s32.totalorder %s114, %s115
    %p124 = scmp.eq.s32.totalorder %s20, 0
    %p125 = por %p123, %p124
    %p126 = scmp.ne.s32.totalorder %s114, %s115
    %p127 = scmp.eq.s32.totalorder %s21, 1
    %p128 = por %p126, %p127
    %p130 = scmp.ne.s32.totalorder %s115, %s129
    %p131 = scmp.eq.s32.totalorder %s21, 0
    %p132 = por %p130, %p131
    %s134 = sadd.s32 %s133, 1
    %p137 = scmp.eq.s32.totalorder %s15, 1
    %p138 = scmp.ne.s32.totalorder %s133, %s135
    %p139 = scmp.eq.s32.totalorder %s15, 0
    %p140 = por %p138, %p139
    %p141 = scmp.ne.s32.totalorder %s133, %s135
    %p142 = scmp.eq.s32.totalorder %s20, 1
    %p143 = por %p141, %p142
    %p144 = scmp.ne.s32.totalorder %s135, %s136
    %p145 = scmp.eq.s32.totalorder %s20, 0
    %p146 = por %p144, %p145
    %p147 = scmp.ne.s32.totalorder %s135, %s136
    %p148 = scmp.eq.s32.totalorder %s21, 1
    %p149 = por %p147, %p148
    %p151 = scmp.ne.s32.totalorder %s136, %s150
    %p152 = scmp.eq.s32.totalorder %s21, 0
    %p153 = por %p151, %p152
    %s155 = sadd.s32 %s154, 1
    %p158 = scmp.eq.s32.totalorder %s15, 1
    %p159 = scmp.ne.s32.totalorder %s154, %s156
    %p160 = scmp.eq.s32.totalorder %s15, 0
    %p161 = por %p159, %p160
    %p162 = scmp.ne.s32.totalorder %s154, %s156
    %p163 = scmp.eq.s32.totalorder %s20, 1
    %p164 = por %p162, %p163
    %p165 = scmp.ne.s32.totalorder %s156, %s157
    %p166 = scmp.eq.s32.totalorder %s20, 0
    %p167 = por %p165, %p166
    %p168 = scmp.ne.s32.totalorder %s156, %s157
    %p169 = scmp.eq.s32.totalorder %s21, 1
    %p170 = por %p168, %p169
    %p172 = scmp.ne.s32.totalorder %s157, %s171
    %p173 = scmp.eq.s32.totalorder %s21, 0
    %p174 = por %p172, %p173
    %s176 = sadd.s32 %s175, 1
    %p179 = scmp.eq.s32.totalorder %s15, 1
    %p180 = scmp.ne.s32.totalorder %s175, %s177
    %p181 = scmp.eq.s32.totalorder %s15, 0
    %p182 = por %p180, %p181
    %p183 = scmp.ne.s32.totalorder %s175, %s177
    %p184 = scmp.eq.s32.totalorder %s20, 1
    %p185 = por %p183, %p184
    %p186 = scmp.ne.s32.totalorder %s177, %s178
    %p187 = scmp.eq.s32.totalorder %s20, 0
    %p188 = por %p186, %p187
    %p189 = scmp.ne.s32.totalorder %s177, %s178
    %p190 = scmp.eq.s32.totalorder %s21, 1
    %p191 = por %p189, %p190
    %p193 = scmp.ne.s32.totalorder %s178, %s192
    %p194 = scmp.eq.s32.totalorder %s21, 0
    %p195 = por %p193, %p194
    %s196 = ssub.s32 %s15, %s22
    %p197 = scmp.eq.s32.totalorder %s196, 0
    %s199 = sadd.s32 %s198, 1
    %s200 = scalar_select %p197, %s198, %s199
    %p203 = pneg %p197
    %p204 = scmp.eq.s32.totalorder %s15, 1
    %p205 = por %p203, %p204
    %p206 = scmp.ne.s32.totalorder %s198, %s201
    %p207 = scmp.eq.s32.totalorder %s15, 0
    %p208 = por %p206, %p207
    %p209 = scmp.ne.s32.totalorder %s198, %s201
    %p210 = scmp.eq.s32.totalorder %s20, 1
    %p211 = por %p209, %p210
    %p212 = scmp.ne.s32.totalorder %s201, %s202
    %p213 = scmp.eq.s32.totalorder %s20, 0
    %p214 = por %p212, %p213
    %p215 = scmp.ne.s32.totalorder %s201, %s202
    %p216 = scmp.eq.s32.totalorder %s21, 1
    %p217 = por %p215, %p216
    %p219 = scmp.ne.s32.totalorder %s202, %s218
    %p220 = scmp.eq.s32.totalorder %s21, 0
    %p221 = por %p219, %p220
    %s222 = ssub.s32 %s15, %s22
    %p223 = scmp.eq.s32.totalorder %s222, 0
    %s225 = sadd.s32 %s224, 1
    %s226 = scalar_select %p223, %s224, %s225
    %p229 = pneg %p223
    %p230 = scmp.eq.s32.totalorder %s15, 1
    %p231 = por %p229, %p230
    %p232 = scmp.ne.s32.totalorder %s224, %s227
    %p233 = scmp.eq.s32.totalorder %s15, 0
    %p234 = por %p232, %p233
    %p235 = scmp.ne.s32.totalorder %s224, %s227
    %p236 = scmp.eq.s32.totalorder %s20, 1
    %p237 = por %p235, %p236
    %p238 = scmp.ne.s32.totalorder %s227, %s228
    %p239 = scmp.eq.s32.totalorder %s20, 0
    %p240 = por %p238, %p239
    %p241 = scmp.ne.s32.totalorder %s227, %s228
    %p242 = scmp.eq.s32.totalorder %s21, 1
    %p243 = por %p241, %p242
    %p245 = scmp.ne.s32.totalorder %s228, %s244
    %p246 = scmp.eq.s32.totalorder %s21, 0
    %p247 = por %p245, %p246
    %p248 = scmp.le.s32.totalorder 1, %s15
    %p249 = scmp.lt.s32.totalorder %s15, 3
    %p250 = pnand %p248, %p249
    %p251 = pneg %p250
    // Predicated region
    $region9: #{nat_decoder.9} parent=5 // pred_check
      _
    $region10: #{nat_decoder.9} parent=5 // pred_check_branch
      %253 = sbr.rel (%p250) target = $region12
    $region11: #{nat_decoder.9} parent=5 // pred_region
      %s254 = ssub.s32 %s15, 1
      // Predicated region
      $region13: #{nat_decoder.9} parent=11 // pred_check
        %p255 = pneg %p62
      $region14: #{nat_decoder.9} parent=11 // pred_check_branch
        %257 = sbr.rel (%p255) target = $region16
      $region15: #{nat_decoder.9} parent=11 // pred_region
        _
      $region16: #{nat_decoder.9} parent=11 // pred_fallthru
        _
      // Predicated region
      $region17: #{nat_decoder.9} parent=11 // pred_check
        %p258 = pneg %p83
      $region18: #{nat_decoder.9} parent=11 // pred_check_branch
        %260 = sbr.rel (%p258) target = $region20
      $region19: #{nat_decoder.9} parent=11 // pred_region
        _
      $region20: #{nat_decoder.9} parent=11 // pred_fallthru
        _
      // Predicated region
      $region21: #{nat_decoder.9} parent=11 // pred_check
        %p261 = pneg %p104
      $region22: #{nat_decoder.9} parent=11 // pred_check_branch
        %263 = sbr.rel (%p261) target = $region24
      $region23: #{nat_decoder.9} parent=11 // pred_region
        _
      $region24: #{nat_decoder.9} parent=11 // pred_fallthru
        _
      // Predicated region
      $region25: #{nat_decoder.9} parent=11 // pred_check
        %p264 = pneg %p125
      $region26: #{nat_decoder.9} parent=11 // pred_check_branch
        %266 = sbr.rel (%p264) target = $region28
      $region27: #{nat_decoder.9} parent=11 // pred_region
        _
      $region28: #{nat_decoder.9} parent=11 // pred_fallthru
        _
      // Predicated region
      $region29: #{nat_decoder.9} parent=11 // pred_check
        %p267 = pneg %p146
      $region30: #{nat_decoder.9} parent=11 // pred_check_branch
        %269 = sbr.rel (%p267) target = $region32
      $region31: #{nat_decoder.9} parent=11 // pred_region
        _
      $region32: #{nat_decoder.9} parent=11 // pred_fallthru
        _
      // Predicated region
      $region33: #{nat_decoder.9} parent=11 // pred_check
        %p270 = pneg %p167
      $region34: #{nat_decoder.9} parent=11 // pred_check_branch
        %272 = sbr.rel (%p270) target = $region36
      $region35: #{nat_decoder.9} parent=11 // pred_region
        _
      $region36: #{nat_decoder.9} parent=11 // pred_fallthru
        _
      // Predicated region
      $region37: #{nat_decoder.9} parent=11 // pred_check
        %p273 = pneg %p188
      $region38: #{nat_decoder.9} parent=11 // pred_check_branch
        %275 = sbr.rel (%p273) target = $region40
      $region39: #{nat_decoder.9} parent=11 // pred_region
        _
      $region40: #{nat_decoder.9} parent=11 // pred_fallthru
        _
    $region12: #{nat_decoder.9} parent=5 // pred_fallthru
      _
    %p276 = scmp.lt.s32.totalorder %s15, 2
    // Predicated region
    $region41: #{nat_decoder.9} parent=5 // pred_check
      %p277 = pneg %p276
    $region42: #{nat_decoder.9} parent=5 // pred_check_branch
      %279 = sbr.rel (%p277) target = $region44
    $region43: #{nat_decoder.9} parent=5 // pred_region
      // Predicated region
      $region45: #{nat_decoder.9} parent=43 // pred_check
        %p280 = pneg %p35
      $region46: #{nat_decoder.9} parent=43 // pred_check_branch
        %282 = sbr.rel (%p280) target = $region48
      $region47: #{nat_decoder.9} parent=43 // pred_region
        %p283 = scmp.lt.s32.totalorder %s15, 1
        %s284 = scalar_select %p283, %s15, 1
        %s285 = smul.addr %s284, 4
        %s286 = scalar_lea.vmem %s0, %s285
      $region48: #{nat_decoder.9} parent=43 // pred_fallthru
        _
      // Predicated region
      $region49: #{nat_decoder.9} parent=43 // pred_check
        %p287 = pneg %p208
      $region50: #{nat_decoder.9} parent=43 // pred_check_branch
        %289 = sbr.rel (%p287) target = $region52
      $region51: #{nat_decoder.9} parent=43 // pred_region
        %p290 = scmp.lt.s32.totalorder %s15, 1
        %s291 = scalar_select %p290, %s15, 1
        %s292 = scalar_lea.vmem %s8, %s291
      $region52: #{nat_decoder.9} parent=43 // pred_fallthru
        _
    $region44: #{nat_decoder.9} parent=5 // pred_fallthru
      _
    %p293 = scmp.le.s32.totalorder 1, %s15
    %p294 = scmp.lt.s32.totalorder %s15, 3
    %p295 = pnand %p293, %p294
    %p296 = pneg %p295
    // Predicated region
    $region53: #{nat_decoder.9} parent=5 // pred_check
      _
    $region54: #{nat_decoder.9} parent=5 // pred_check_branch
      %298 = sbr.rel (%p295) target = $region56
    $region55: #{nat_decoder.9} parent=5 // pred_region
      %s299 = ssub.s32 %s15, 1
      %p300 = scmp.lt.s32.totalorder %s20, 1
      %s301 = scalar_select %p300, %s20, 1
      %s302 = smul.addr %s301, 4
      %s303 = scalar_lea.vmem %s0, %s302
      %p304 = pneg %p41
      %p305 = pneg %p38
      %p306 = pneg %p62
      %p307 = pneg %p59
      %p308 = pneg %p83
      %p309 = pneg %p80
      %p310 = pneg %p104
      %p311 = pneg %p101
      %p312 = pneg %p125
      %p313 = pneg %p122
      %p314 = pneg %p146
      %p315 = pneg %p143
      %p316 = pneg %p167
      %p317 = pneg %p164
      %p318 = pneg %p188
      %p319 = pneg %p185
      %p320 = scmp.lt.s32.totalorder %s20, 1
      %s321 = scalar_select %p320, %s20, 1
      %s322 = scalar_lea.vmem %s8, %s321
      %p323 = pneg %p214
      %p324 = pneg %p211
      %p325 = pneg %p240
      %p326 = pneg %p237
      %p327 = scmp.lt.s32.totalorder %s20, 1
      %s328 = scalar_select %p327, %s20, 1
      %s329 = smul.addr %s328, 4
      %s330 = scalar_lea.vmem %s9, %s329
      %p331 = scmp.lt.s32.totalorder %s20, 1
      %s332 = scalar_select %p331, %s20, 1
      %s333 = smul.addr %s332, 4
      %s334 = scalar_lea.vmem %s0, %s333
      %p335 = scmp.lt.s32.totalorder %s20, 1
      %s336 = scalar_select %p335, %s20, 1
      %s337 = scalar_lea.vmem %s8, %s336
      %p338 = scmp.lt.s32.totalorder %s20, 1
      %s339 = scalar_select %p338, %s20, 1
      %s340 = smul.addr %s339, 4
      %s341 = scalar_lea.vmem %s9, %s340
      %v343 = vld [vmem:[%s334] sm:$0xf]
      %v344 = vld [vmem:[%s2] sm:$0xf]
      %v345 = vld [vmem:[%s2 + $0x4] sm:$0xf]
      %v346 = vld [vmem:[%s2 + $0x8] sm:$0xf]
      %v347 = vld [vmem:[%s2 + $0xc] sm:$0xf]
      %v348 = vld [vmem:[%s3] sm:$0x1]
      %v349 = vunpack.c.l.bf16 %v348
      %v350 = vlaneseq
      %v351 = vshrl.u32 %v350, 7
      %v352 = vsub.s32 0, %v351
      %v353 = vrot.slane %v349, %v352
      %v358 = vunpack.c.l.b16 %v344
      %v359 = vunpack.c.l.b16 %v345
      %v360 = vunpack.c.l.b16 %v346
      %v361 = vunpack.c.l.b16 %v347
      %v362 = vpack.c.b16 %v359, %v358
      %v363 = vpack.c.b16 %v361, %v360
      %vm366 = vcmask 261120
      %v368 = vsel %vm366, %v343, 0
      %370 = vmatprep.subr.bf16.mxu0 0
      %371 = vmatpush1.bf16.msra.mxu0 %v362
      %372 = vmatprep.subr.bf16.mxu0 0
      %373 = vmatpush1.bf16.msra.mxu0 %v363
      %374 = vmatprep.subr.bf16.mxu0 0
      %375 = vmatpush1.bf16.msra.mxu0 0
      %376 = vmatprep.subr.bf16.mxu0 0
      %377 = vmatpush1.bf16.msra.mxu0 0
      %378 = vmatprep.subr.bf16.mxu0 0
      %379 = vmatpush1.bf16.msra.mxu0 0
      %380 = vmatprep.subr.bf16.mxu0 0
      %381 = vmatpush1.bf16.msra.mxu0 0
      %382 = vmatprep.subr.bf16.mxu0 0
      %383 = vmatpush1.bf16.msra.mxu0 0
      %384 = vmatprep.subr.bf16.mxu0 0
      %385 = vmatpush1.bf16.msra.mxu0 0
      %386 = vmatprep.subr.bf16.mxu0 0
      %387 = vmatpush1.bf16.msra.mxu0 0
      %388 = vmatprep.subr.bf16.mxu0 0
      %389 = vmatpush1.bf16.msra.mxu0 0
      %390 = vmatprep.subr.bf16.mxu0 0
      %391 = vmatpush1.bf16.msra.mxu0 0
      %392 = vmatprep.subr.bf16.mxu0 0
      %393 = vmatpush1.bf16.msra.mxu0 0
      %394 = vmatprep.subr.bf16.mxu0 0
      %395 = vmatpush1.bf16.msra.mxu0 0
      %396 = vmatprep.subr.bf16.mxu0 0
      %397 = vmatpush1.bf16.msra.mxu0 0
      %398 = vmatprep.subr.bf16.mxu0 0
      %399 = vmatpush1.bf16.msra.mxu0 0
      %400 = vmatprep.subr.bf16.mxu0 0
      %401 = vmatpush1.bf16.msra.mxu0 0
      %402 = vmatprep.mubr.bf16.mxu0 0
      %403 = vmatmul.mubr.bf16.gmra.mrb[0].mxu0 %v368
      %v404 = vpop.f32.mrb[0].mxu0
      %v405 = vadd.f32 %v353, %v404
      %v406 = vpop.f32.mrb[0].mxu0
      %v407 = vpop.f32.mrb[0].mxu0
      %v408 = vpop.f32.mrb[0].mxu0
      %409 = vdwg.mxu0
      %v410 = vpack.c.bf16 %v405, %v405
      %v411 = vld [vmem:[%s1] sm:$0xf]
      %v412 = vld [vmem:[%s4] sm:$0xf]
      %v413 = vld [vmem:[%s4 + $0x4] sm:$0xf]
      %v414 = vld [vmem:[%s4 + $0x8] sm:$0xf]
      %v415 = vld [vmem:[%s4 + $0xc] sm:$0xf]
      %v416 = vld [vmem:[%s5] sm:$0x1]
      %v417 = vunpack.c.l.bf16 %v416
      %v418 = vlaneseq
      %v419 = vshrl.u32 %v418, 7
      %v420 = vsub.s32 0, %v419
      %v421 = vrot.slane %v417, %v420
      %v426 = vunpack.c.l.b16 %v412
      %v427 = vunpack.c.l.b16 %v413
      %v428 = vunpack.c.l.b16 %v414
      %v429 = vunpack.c.l.b16 %v415
      %v430 = vpack.c.b16 %v427, %v426
      %v431 = vpack.c.b16 %v429, %v428
      %v435 = vsel %vm366, %v411, 0
      %437 = vmatprep.subr.bf16.mxu0 0
      %438 = vmatpush1.bf16.msra.mxu0 %v430
      %439 = vmatprep.subr.bf16.mxu0 0
      %440 = vmatpush1.bf16.msra.mxu0 %v431
      %441 = vmatprep.subr.bf16.mxu0 0
      %442 = vmatpush1.bf16.msra.mxu0 0
      %443 = vmatprep.subr.bf16.mxu0 0
      %444 = vmatpush1.bf16.msra.mxu0 0
      %445 = vmatprep.subr.bf16.mxu0 0
      %446 = vmatpush1.bf16.msra.mxu0 0
      %447 = vmatprep.subr.bf16.mxu0 0
      %448 = vmatpush1.bf16.msra.mxu0 0
      %449 = vmatprep.subr.bf16.mxu0 0
      %450 = vmatpush1.bf16.msra.mxu0 0
      %451 = vmatprep.subr.bf16.mxu0 0
      %452 = vmatpush1.bf16.msra.mxu0 0
      %453 = vmatprep.subr.bf16.mxu0 0
      %454 = vmatpush1.bf16.msra.mxu0 0
      %455 = vmatprep.subr.bf16.mxu0 0
      %456 = vmatpush1.bf16.msra.mxu0 0
      %457 = vmatprep.subr.bf16.mxu0 0
      %458 = vmatpush1.bf16.msra.mxu0 0
      %459 = vmatprep.subr.bf16.mxu0 0
      %460 = vmatpush1.bf16.msra.mxu0 0
      %461 = vmatprep.subr.bf16.mxu0 0
      %462 = vmatpush1.bf16.msra.mxu0 0
      %463 = vmatprep.subr.bf16.mxu0 0
      %464 = vmatpush1.bf16.msra.mxu0 0
      %465 = vmatprep.subr.bf16.mxu0 0
      %466 = vmatpush1.bf16.msra.mxu0 0
      %467 = vmatprep.subr.bf16.mxu0 0
      %468 = vmatpush1.bf16.msra.mxu0 0
      %469 = vmatprep.mubr.bf16.mxu0 0
      %470 = vmatmul.mubr.bf16.gmra.mrb[0].mxu0 %v435
      %v471 = vpop.f32.mrb[0].mxu0
      %v472 = vadd.f32 %v421, %v471
      %v473 = vpop.f32.mrb[0].mxu0
      %v474 = vpop.f32.mrb[0].mxu0
      %v475 = vpop.f32.mrb[0].mxu0
      %476 = vdwg.mxu0
      %v477 = vpack.c.bf16 %v472, %v472
      %v478 = vld [vmem:[%s337] sm:$0x1]
      %v479 = vld [vmem:[%s6] sm:$0xf]
      %v480 = vld [vmem:[%s6 + $0x4] sm:$0xf]
      %v481 = vld [vmem:[%s6 + $0x8] sm:$0xf]
      %v482 = vld [vmem:[%s6 + $0xc] sm:$0xf]
      %v484 = vlaneseq
      %v485 = vshrl.u32 %v484, 7
      %v486 = vsub.s32 0, %v485
      %v487 = vrot.slane %v478, %v486
      %vm489 = vcmask 64512
      %v491 = vsel %vm489, %v410, 0
      %v494 = vsel %vm489, %v477, 0
      %496 = vmatprep.subr.bf16.mxu0 0
      %497 = vmatpush1.bf16.xpose.msra.mxu0 %v494
      %498 = vmatprep.subr.bf16.mxu0 0
      %499 = vmatpush1.bf16.xpose.msra.mxu0 0
      %500 = vmatprep.subr.bf16.mxu0 0
      %501 = vmatpush1.bf16.xpose.msra.mxu0 0
      %502 = vmatprep.subr.bf16.mxu0 0
      %503 = vmatpush1.bf16.xpose.msra.mxu0 0
      %504 = vmatprep.subr.bf16.mxu0 0
      %505 = vmatpush1.bf16.xpose.msra.mxu0 0
      %506 = vmatprep.subr.bf16.mxu0 0
      %507 = vmatpush1.bf16.xpose.msra.mxu0 0
      %508 = vmatprep.subr.bf16.mxu0 0
      %509 = vmatpush1.bf16.xpose.msra.mxu0 0
      %510 = vmatprep.subr.bf16.mxu0 0
      %511 = vmatpush1.bf16.xpose.msra.mxu0 0
      %512 = vmatprep.subr.bf16.mxu0 0
      %513 = vmatpush1.bf16.xpose.msra.mxu0 0
      %514 = vmatprep.subr.bf16.mxu0 0
      %515 = vmatpush1.bf16.xpose.msra.mxu0 0
      %516 = vmatprep.subr.bf16.mxu0 0
      %517 = vmatpush1.bf16.xpose.msra.mxu0 0
      %518 = vmatprep.subr.bf16.mxu0 0
      %519 = vmatpush1.bf16.xpose.msra.mxu0 0
      %520 = vmatprep.subr.bf16.mxu0 0
      %521 = vmatpush1.bf16.xpose.msra.mxu0 0
      %522 = vmatprep.subr.bf16.mxu0 0
      %523 = vmatpush1.bf16.xpose.msra.mxu0 0
      %524 = vmatprep.subr.bf16.mxu0 0
      %525 = vmatpush1.bf16.xpose.msra.mxu0 0
      %526 = vmatprep.subr.bf16.mxu0 0
      %527 = vmatpush1.bf16.xpose.msra.mxu0 0
      %528 = vmatprep.mubr.bf16.mxu0 0
      %529 = vmatmul.mubr.bf16.gmra.mrb[0].mxu0 %v491
      %v530 = vpop.f32.mrb[0].mxu0
      %v531 = vadd.f32 %v487, %v530
      %v532 = vpop.f32.mrb[0].mxu0
      %v533 = vpop.f32.mrb[0].mxu0
      %v534 = vpop.f32.mrb[0].mxu0
      %535 = vdwg.mxu0
      %v536 = vsel %vm489, %v531, -inf
      %537 = vmax.xlane.f32.xlu0 %v536
      %v538 = vpop.xlane.xlu0 %537
      %v539 = vsub.f32 %v531, %v538
      %v540 = vmul.f32 %v539, 1.442695
      %v541 = vpow.pop %v540
      %v542 = vsel %vm489, %v541, 0.0
      %543 = vadd.xlane.f32.xlu0 %v542
      %v544 = vpop.xlane.xlu0 %543
      %v545 = vrcp.pop %v544
      %v546 = vmul.f32 %v541, %v545
      %v547 = vpack.c.bf16 %v546, %v546
      %549 = vrot.lane.b32.xlu0 %v477, 96
      %v550 = vpop.permute.xlu0 %549
      %v552 = vsel %vm489, %v547, 0
      %vm554 = vcmask 1043456
      %v556 = vsel %vm554, %v550, 0
      %558 = vmatprep.subr.bf16.mxu0 0
      %559 = vmatpush1.bf16.msra.mxu0 %v556
      %560 = vmatprep.subr.bf16.mxu0 0
      %561 = vmatpush1.bf16.msra.mxu0 0
      %562 = vmatprep.subr.bf16.mxu0 0
      %563 = vmatpush1.bf16.msra.mxu0 0
      %564 = vmatprep.subr.bf16.mxu0 0
      %565 = vmatpush1.bf16.msra.mxu0 0
      %566 = vmatprep.subr.bf16.mxu0 0
      %567 = vmatpush1.bf16.msra.mxu0 0
      %568 = vmatprep.subr.bf16.mxu0 0
      %569 = vmatpush1.bf16.msra.mxu0 0
      %570 = vmatprep.subr.bf16.mxu0 0
      %571 = vmatpush1.bf16.msra.mxu0 0
      %572 = vmatprep.subr.bf16.mxu0 0
      %573 = vmatpush1.bf16.msra.mxu0 0
      %574 = vmatprep.subr.bf16.mxu0 0
      %575 = vmatpush1.bf16.msra.mxu0 0
      %576 = vmatprep.subr.bf16.mxu0 0
      %577 = vmatpush1.bf16.msra.mxu0 0
      %578 = vmatprep.subr.bf16.mxu0 0
      %579 = vmatpush1.bf16.msra.mxu0 0
      %580 = vmatprep.subr.bf16.mxu0 0
      %581 = vmatpush1.bf16.msra.mxu0 0
      %582 = vmatprep.subr.bf16.mxu0 0
      %583 = vmatpush1.bf16.msra.mxu0 0
      %584 = vmatprep.subr.bf16.mxu0 0
      %585 = vmatpush1.bf16.msra.mxu0 0
      %586 = vmatprep.subr.bf16.mxu0 0
      %587 = vmatpush1.bf16.msra.mxu0 0
      %588 = vmatprep.subr.bf16.mxu0 0
      %589 = vmatpush1.bf16.msra.mxu0 0
      %590 = vmatprep.mubr.bf16.mxu0 0
      %591 = vmatmul.mubr.bf16.gmra.mrb[0].mxu0 %v552
      %v592 = vpop.f32.mrb[0].mxu0
      %v593 = vadd.f32 0.0, %v592
      %v594 = vpop.f32.mrb[0].mxu0
      %v595 = vpop.f32.mrb[0].mxu0
      %v596 = vpop.f32.mrb[0].mxu0
      %597 = vdwg.mxu0
      %v598 = vpack.c.bf16 %v593, %v593
      %600 = vrot.lane.b32.xlu0 %v410, 120
      %v601 = vpop.permute.xlu0 %600
      %602 = vrot.lane.b32.xlu0 %v477, 120
      %v603 = vpop.permute.xlu0 %602
      %v605 = vsel %vm489, %v601, 0
      %v608 = vsel %vm489, %v603, 0
      %610 = vmatprep.subr.bf16.mxu0 0
      %611 = vmatpush1.bf16.xpose.msra.mxu0 %v608
      %612 = vmatprep.subr.bf16.mxu0 0
      %613 = vmatpush1.bf16.xpose.msra.mxu0 0
      %614 = vmatprep.subr.bf16.mxu0 0
      %615 = vmatpush1.bf16.xpose.msra.mxu0 0
      %616 = vmatprep.subr.bf16.mxu0 0
      %617 = vmatpush1.bf16.xpose.msra.mxu0 0
      %618 = vmatprep.subr.bf16.mxu0 0
      %619 = vmatpush1.bf16.xpose.msra.mxu0 0
      %620 = vmatprep.subr.bf16.mxu0 0
      %621 = vmatpush1.bf16.xpose.msra.mxu0 0
      %622 = vmatprep.subr.bf16.mxu0 0
      %623 = vmatpush1.bf16.xpose.msra.mxu0 0
      %624 = vmatprep.subr.bf16.mxu0 0
      %625 = vmatpush1.bf16.xpose.msra.mxu0 0
      %626 = vmatprep.subr.bf16.mxu0 0
      %627 = vmatpush1.bf16.xpose.msra.mxu0 0
      %628 = vmatprep.subr.bf16.mxu0 0
      %629 = vmatpush1.bf16.xpose.msra.mxu0 0
      %630 = vmatprep.subr.bf16.mxu0 0
      %631 = vmatpush1.bf16.xpose.msra.mxu0 0
      %632 = vmatprep.subr.bf16.mxu0 0
      %633 = vmatpush1.bf16.xpose.msra.mxu0 0
      %634 = vmatprep.subr.bf16.mxu0 0
      %635 = vmatpush1.bf16.xpose.msra.mxu0 0
      %636 = vmatprep.subr.bf16.mxu0 0
      %637 = vmatpush1.bf16.xpose.msra.mxu0 0
      %638 = vmatprep.subr.bf16.mxu0 0
      %639 = vmatpush1.bf16.xpose.msra.mxu0 0
      %640 = vmatprep.subr.bf16.mxu0 0
      %641 = vmatpush1.bf16.xpose.msra.mxu0 0
      %642 = vmatprep.mubr.bf16.mxu0 0
      %643 = vmatmul.mubr.bf16.gmra.mrb[0].mxu0 %v605
      %v644 = vpop.f32.mrb[0].mxu0
      %v645 = vadd.f32 %v487, %v644
      %v646 = vpop.f32.mrb[0].mxu0
      %v647 = vpop.f32.mrb[0].mxu0
      %v648 = vpop.f32.mrb[0].mxu0
      %649 = vdwg.mxu0
      %v650 = vsel %vm489, %v645, -inf
      %651 = vmax.xlane.f32.xlu0 %v650
      %v652 = vpop.xlane.xlu0 %651
      %v653 = vsub.f32 %v645, %v652
      %v654 = vmul.f32 %v653, 1.442695
      %v655 = vpow.pop %v654
      %v656 = vsel %vm489, %v655, 0.0
      %657 = vadd.xlane.f32.xlu0 %v656
      %v658 = vpop.xlane.xlu0 %657
      %v659 = vrcp.pop %v658
      %v660 = vmul.f32 %v655, %v659
      %v661 = vpack.c.bf16 %v660, %v660
      %662 = vrot.lane.b32.xlu0 %v477, 88
      %v663 = vpop.permute.xlu0 %662
      %v665 = vsel %vm489, %v661, 0
      %v668 = vsel %vm554, %v663, 0
      %670 = vmatprep.subr.bf16.mxu0 0
      %671 = vmatpush1.bf16.msra.mxu0 %v668
      %672 = vmatprep.subr.bf16.mxu0 0
      %673 = vmatpush1.bf16.msra.mxu0 0
      %674 = vmatprep.subr.bf16.mxu0 0
      %675 = vmatpush1.bf16.msra.mxu0 0
      %676 = vmatprep.subr.bf16.mxu0 0
      %677 = vmatpush1.bf16.msra.mxu0 0
      %678 = vmatprep.subr.bf16.mxu0 0
      %679 = vmatpush1.bf16.msra.mxu0 0
      %680 = vmatprep.subr.bf16.mxu0 0
      %681 = vmatpush1.bf16.msra.mxu0 0
      %682 = vmatprep.subr.bf16.mxu0 0
      %683 = vmatpush1.bf16.msra.mxu0 0
      %684 = vmatprep.subr.bf16.mxu0 0
      %685 = vmatpush1.bf16.msra.mxu0 0
      %686 = vmatprep.subr.bf16.mxu0 0
      %687 = vmatpush1.bf16.msra.mxu0 0
      %688 = vmatprep.subr.bf16.mxu0 0
      %689 = vmatpush1.bf16.msra.mxu0 0
      %690 = vmatprep.subr.bf16.mxu0 0
      %691 = vmatpush1.bf16.msra.mxu0 0
      %692 = vmatprep.subr.bf16.mxu0 0
      %693 = vmatpush1.bf16.msra.mxu0 0
      %694 = vmatprep.subr.bf16.mxu0 0
      %695 = vmatpush1.bf16.msra.mxu0 0
      %696 = vmatprep.subr.bf16.mxu0 0
      %697 = vmatpush1.bf16.msra.mxu0 0
      %698 = vmatprep.subr.bf16.mxu0 0
      %699 = vmatpush1.bf16.msra.mxu0 0
      %700 = vmatprep.subr.bf16.mxu0 0
      %701 = vmatpush1.bf16.msra.mxu0 0
      %702 = vmatprep.mubr.bf16.mxu0 0
      %703 = vmatmul.mubr.bf16.gmra.mrb[0].mxu0 %v665
      %v704 = vpop.f32.mrb[0].mxu0
      %v705 = vadd.f32 0.0, %v704
      %v706 = vpop.f32.mrb[0].mxu0
      %v707 = vpop.f32.mrb[0].mxu0
      %v708 = vpop.f32.mrb[0].mxu0
      %709 = vdwg.mxu0
      %v710 = vpack.c.bf16 %v705, %v705
      %v712 = vsel %vm489, %v710, 0
      %v715 = vsel %vm554, %v480, 0
      %717 = vmatprep.subr.bf16.mxu0 0
      %718 = vmatpush1.bf16.msra.mxu0 %v715
      %719 = vmatprep.subr.bf16.mxu0 0
      %720 = vmatpush1.bf16.msra.mxu0 0
      %721 = vmatprep.subr.bf16.mxu0 0
      %722 = vmatpush1.bf16.msra.mxu0 0
      %723 = vmatprep.subr.bf16.mxu0 0
      %724 = vmatpush1.bf16.msra.mxu0 0
      %725 = vmatprep.subr.bf16.mxu0 0
      %726 = vmatpush1.bf16.msra.mxu0 0
      %727 = vmatprep.subr.bf16.mxu0 0
      %728 = vmatpush1.bf16.msra.mxu0 0
      %729 = vmatprep.subr.bf16.mxu0 0
      %730 = vmatpush1.bf16.msra.mxu0 0
      %731 = vmatprep.subr.bf16.mxu0 0
      %732 = vmatpush1.bf16.msra.mxu0 0
      %733 = vmatprep.subr.bf16.mxu0 0
      %734 = vmatpush1.bf16.msra.mxu0 0
      %735 = vmatprep.subr.bf16.mxu0 0
      %736 = vmatpush1.bf16.msra.mxu0 0
      %737 = vmatprep.subr.bf16.mxu0 0
      %738 = vmatpush1.bf16.msra.mxu0 0
      %739 = vmatprep.subr.bf16.mxu0 0
      %740 = vmatpush1.bf16.msra.mxu0 0
      %741 = vmatprep.subr.bf16.mxu0 0
      %742 = vmatpush1.bf16.msra.mxu0 0
      %743 = vmatprep.subr.bf16.mxu0 0
      %744 = vmatpush1.bf16.msra.mxu0 0
      %745 = vmatprep.subr.bf16.mxu0 0
      %746 = vmatpush1.bf16.msra.mxu0 0
      %747 = vmatprep.subr.bf16.mxu0 0
      %748 = vmatpush1.bf16.msra.mxu0 0
      %749 = vmatprep.mubr.bf16.mxu0 0
      %750 = vmatmul.mubr.bf16.gmra.mrb[0].mxu0 %v712
      %v751 = vpop.f32.mrb[0].mxu0
      %v752 = vadd.f32 0.0, %v751
      %v753 = vpop.f32.mrb[0].mxu0
      %v754 = vpop.f32.mrb[0].mxu0
      %v755 = vpop.f32.mrb[0].mxu0
      %756 = vdwg.mxu0
      %v758 = vsel %vm489, %v598, 0
      %v761 = vsel %vm554, %v479, 0
      %763 = vmatprep.subr.bf16.mxu0 0
      %764 = vmatpush1.bf16.msra.mxu0 %v761
      %765 = vmatprep.subr.bf16.mxu0 0
      %766 = vmatpush1.bf16.msra.mxu0 0
      %767 = vmatprep.subr.bf16.mxu0 0
      %768 = vmatpush1.bf16.msra.mxu0 0
      %769 = vmatprep.subr.bf16.mxu0 0
      %770 = vmatpush1.bf16.msra.mxu0 0
      %771 = vmatprep.subr.bf16.mxu0 0
      %772 = vmatpush1.bf16.msra.mxu0 0
      %773 = vmatprep.subr.bf16.mxu0 0
      %774 = vmatpush1.bf16.msra.mxu0 0
      %775 = vmatprep.subr.bf16.mxu0 0
      %776 = vmatpush1.bf16.msra.mxu0 0
      %777 = vmatprep.subr.bf16.mxu0 0
      %778 = vmatpush1.bf16.msra.mxu0 0
      %779 = vmatprep.subr.bf16.mxu0 0
      %780 = vmatpush1.bf16.msra.mxu0 0
      %781 = vmatprep.subr.bf16.mxu0 0
      %782 = vmatpush1.bf16.msra.mxu0 0
      %783 = vmatprep.subr.bf16.mxu0 0
      %784 = vmatpush1.bf16.msra.mxu0 0
      %785 = vmatprep.subr.bf16.mxu0 0
      %786 = vmatpush1.bf16.msra.mxu0 0
      %787 = vmatprep.subr.bf16.mxu0 0
      %788 = vmatpush1.bf16.msra.mxu0 0
      %789 = vmatprep.subr.bf16.mxu0 0
      %790 = vmatpush1.bf16.msra.mxu0 0
      %791 = vmatprep.subr.bf16.mxu0 0
      %792 = vmatpush1.bf16.msra.mxu0 0
      %793 = vmatprep.subr.bf16.mxu0 0
      %794 = vmatpush1.bf16.msra.mxu0 0
      %795 = vmatprep.mubr.bf16.mxu0 0
      %796 = vmatmul.mubr.bf16.gmra.mrb[0].mxu0 %v758
      %v797 = vpop.f32.mrb[0].mxu0
      %v798 = vadd.f32 %v752, %v797
      %v799 = vpop.f32.mrb[0].mxu0
      %v800 = vpop.f32.mrb[0].mxu0
      %v801 = vpop.f32.mrb[0].mxu0
      %802 = vdwg.mxu0
      %803 = vrot.lane.b32.xlu0 %v410, 112
      %v804 = vpop.permute.xlu0 %803
      %805 = vrot.lane.b32.xlu0 %v477, 112
      %v806 = vpop.permute.xlu0 %805
      %v808 = vsel %vm489, %v804, 0
      %v811 = vsel %vm489, %v806, 0
      %813 = vmatprep.subr.bf16.mxu0 0
      %814 = vmatpush1.bf16.xpose.msra.mxu0 %v811
      %815 = vmatprep.subr.bf16.mxu0 0
      %816 = vmatpush1.bf16.xpose.msra.mxu0 0
      %817 = vmatprep.subr.bf16.mxu0 0
      %818 = vmatpush1.bf16.xpose.msra.mxu0 0
      %819 = vmatprep.subr.bf16.mxu0 0
      %820 = vmatpush1.bf16.xpose.msra.mxu0 0
      %821 = vmatprep.subr.bf16.mxu0 0
      %822 = vmatpush1.bf16.xpose.msra.mxu0 0
      %823 = vmatprep.subr.bf16.mxu0 0
      %824 = vmatpush1.bf16.xpose.msra.mxu0 0
      %825 = vmatprep.subr.bf16.mxu0 0
      %826 = vmatpush1.bf16.xpose.msra.mxu0 0
      %827 = vmatprep.subr.bf16.mxu0 0
      %828 = vmatpush1.bf16.xpose.msra.mxu0 0
      %829 = vmatprep.subr.bf16.mxu0 0
      %830 = vmatpush1.bf16.xpose.msra.mxu0 0
      %831 = vmatprep.subr.bf16.mxu0 0
      %832 = vmatpush1.bf16.xpose.msra.mxu0 0
      %833 = vmatprep.subr.bf16.mxu0 0
      %834 = vmatpush1.bf16.xpose.msra.mxu0 0
      %835 = vmatprep.subr.bf16.mxu0 0
      %836 = vmatpush1.bf16.xpose.msra.mxu0 0
      %837 = vmatprep.subr.bf16.mxu0 0
      %838 = vmatpush1.bf16.xpose.msra.mxu0 0
      %839 = vmatprep.subr.bf16.mxu0 0
      %840 = vmatpush1.bf16.xpose.msra.mxu0 0
      %841 = vmatprep.subr.bf16.mxu0 0
      %842 = vmatpush1.bf16.xpose.msra.mxu0 0
      %843 = vmatprep.subr.bf16.mxu0 0
      %844 = vmatpush1.bf16.xpose.msra.mxu0 0
      %845 = vmatprep.mubr.bf16.mxu0 0
      %846 = vmatmul.mubr.bf16.gmra.mrb[0].mxu0 %v808
      %v847 = vpop.f32.mrb[0].mxu0
      %v848 = vadd.f32 %v487, %v847
      %v849 = vpop.f32.mrb[0].mxu0
      %v850 = vpop.f32.mrb[0].mxu0
      %v851 = vpop.f32.mrb[0].mxu0
      %852 = vdwg.mxu0
      %v853 = vsel %vm489, %v848, -inf
      %854 = vmax.xlane.f32.xlu0 %v853
      %v855 = vpop.xlane.xlu0 %854
      %v856 = vsub.f32 %v848, %v855
      %v857 = vmul.f32 %v856, 1.442695
      %v858 = vpow.pop %v857
      %v859 = vsel %vm489, %v858, 0.0
      %860 = vadd.xlane.f32.xlu0 %v859
      %v861 = vpop.xlane.xlu0 %860
      %v862 = vrcp.pop %v861
      %v863 = vmul.f32 %v858, %v862
      %v864 = vpack.c.bf16 %v863, %v863
      %865 = vrot.lane.b32.xlu0 %v477, 80
      %v866 = vpop.permute.xlu0 %865
      %v868 = vsel %vm489, %v864, 0
      %v871 = vsel %vm554, %v866, 0
      %873 = vmatprep.subr.bf16.mxu0 0
      %874 = vmatpush1.bf16.msra.mxu0 %v871
      %875 = vmatprep.subr.bf16.mxu0 0
      %876 = vmatpush1.bf16.msra.mxu0 0
      %877 = vmatprep.subr.bf16.mxu0 0
      %878 = vmatpush1.bf16.msra.mxu0 0
      %879 = vmatprep.subr.bf16.mxu0 0
      %880 = vmatpush1.bf16.msra.mxu0 0
      %881 = vmatprep.subr.bf16.mxu0 0
      %882 = vmatpush1.bf16.msra.mxu0 0
      %883 = vmatprep.subr.bf16.mxu0 0
      %884 = vmatpush1.bf16.msra.mxu0 0
      %885 = vmatprep.subr.bf16.mxu0 0
      %886 = vmatpush1.bf16.msra.mxu0 0
      %887 = vmatprep.subr.bf16.mxu0 0
      %888 = vmatpush1.bf16.msra.mxu0 0
      %889 = vmatprep.subr.bf16.mxu0 0
      %890 = vmatpush1.bf16.msra.mxu0 0
      %891 = vmatprep.subr.bf16.mxu0 0
      %892 = vmatpush1.bf16.msra.mxu0 0
      %893 = vmatprep.subr.bf16.mxu0 0
      %894 = vmatpush1.bf16.msra.mxu0 0
      %895 = vmatprep.subr.bf16.mxu0 0
      %896 = vmatpush1.bf16.msra.mxu0 0
      %897 = vmatprep.subr.bf16.mxu0 0
      %898 = vmatpush1.bf16.msra.mxu0 0
      %899 = vmatprep.subr.bf16.mxu0 0
      %900 = vmatpush1.bf16.msra.mxu0 0
      %901 = vmatprep.subr.bf16.mxu0 0
      %902 = vmatpush1.bf16.msra.mxu0 0
      %903 = vmatprep.subr.bf16.mxu0 0
      %904 = vmatpush1.bf16.msra.mxu0 0
      %905 = vmatprep.mubr.bf16.mxu0 0
      %906 = vmatmul.mubr.bf16.gmra.mrb[0].mxu0 %v868
      %v907 = vpop.f32.mrb[0].mxu0
      %v908 = vadd.f32 0.0, %v907
      %v909 = vpop.f32.mrb[0].mxu0
      %v910 = vpop.f32.mrb[0].mxu0
      %v911 = vpop.f32.mrb[0].mxu0
      %912 = vdwg.mxu0
      %v913 = vpack.c.bf16 %v908, %v908
      %v915 = vsel %vm489, %v913, 0
      %v918 = vsel %vm554, %v481, 0
      %920 = vmatprep.subr.bf16.mxu0 0
      %921 = vmatpush1.bf16.msra.mxu0 %v918
      %922 = vmatprep.subr.bf16.mxu0 0
      %923 = vmatpush1.bf16.msra.mxu0 0
      %924 = vmatprep.subr.bf16.mxu0 0
      %925 = vmatpush1.bf16.msra.mxu0 0
      %926 = vmatprep.subr.bf16.mxu0 0
      %927 = vmatpush1.bf16.msra.mxu0 0
      %928 = vmatprep.subr.bf16.mxu0 0
      %929 = vmatpush1.bf16.msra.mxu0 0
      %930 = vmatprep.subr.bf16.mxu0 0
      %931 = vmatpush1.bf16.msra.mxu0 0
      %932 = vmatprep.subr.bf16.mxu0 0
      %933 = vmatpush1.bf16.msra.mxu0 0
      %934 = vmatprep.subr.bf16.mxu0 0
      %935 = vmatpush1.bf16.msra.mxu0 0
      %936 = vmatprep.subr.bf16.mxu0 0
      %937 = vmatpush1.bf16.msra.mxu0 0
      %938 = vmatprep.subr.bf16.mxu0 0
      %939 = vmatpush1.bf16.msra.mxu0 0
      %940 = vmatprep.subr.bf16.mxu0 0
      %941 = vmatpush1.bf16.msra.mxu0 0
      %942 = vmatprep.subr.bf16.mxu0 0
      %943 = vmatpush1.bf16.msra.mxu0 0
      %944 = vmatprep.subr.bf16.mxu0 0
      %945 = vmatpush1.bf16.msra.mxu0 0
      %946 = vmatprep.subr.bf16.mxu0 0
      %947 = vmatpush1.bf16.msra.mxu0 0
      %948 = vmatprep.subr.bf16.mxu0 0
      %949 = vmatpush1.bf16.msra.mxu0 0
      %950 = vmatprep.subr.bf16.mxu0 0
      %951 = vmatpush1.bf16.msra.mxu0 0
      %952 = vmatprep.mubr.bf16.mxu0 0
      %953 = vmatmul.mubr.bf16.gmra.mrb[0].mxu0 %v915
      %v954 = vpop.f32.mrb[0].mxu0
      %v955 = vadd.f32 0.0, %v954
      %v956 = vpop.f32.mrb[0].mxu0
      %v957 = vpop.f32.mrb[0].mxu0
      %v958 = vpop.f32.mrb[0].mxu0
      %959 = vdwg.mxu0
      %v960 = vadd.f32 %v798, %v955
      %961 = vrot.lane.b32.xlu0 %v410, 104
      %v962 = vpop.permute.xlu0 %961
      %963 = vrot.lane.b32.xlu0 %v477, 104
      %v964 = vpop.permute.xlu0 %963
      %v966 = vsel %vm489, %v962, 0
      %v969 = vsel %vm489, %v964, 0
      %971 = vmatprep.subr.bf16.mxu0 0
      %972 = vmatpush1.bf16.xpose.msra.mxu0 %v969
      %973 = vmatprep.subr.bf16.mxu0 0
      %974 = vmatpush1.bf16.xpose.msra.mxu0 0
      %975 = vmatprep.subr.bf16.mxu0 0
      %976 = vmatpush1.bf16.xpose.msra.mxu0 0
      %977 = vmatprep.subr.bf16.mxu0 0
      %978 = vmatpush1.bf16.xpose.msra.mxu0 0
      %979 = vmatprep.subr.bf16.mxu0 0
      %980 = vmatpush1.bf16.xpose.msra.mxu0 0
      %981 = vmatprep.subr.bf16.mxu0 0
      %982 = vmatpush1.bf16.xpose.msra.mxu0 0
      %983 = vmatprep.subr.bf16.mxu0 0
      %984 = vmatpush1.bf16.xpose.msra.mxu0 0
      %985 = vmatprep.subr.bf16.mxu0 0
      %986 = vmatpush1.bf16.xpose.msra.mxu0 0
      %987 = vmatprep.subr.bf16.mxu0 0
      %988 = vmatpush1.bf16.xpose.msra.mxu0 0
      %989 = vmatprep.subr.bf16.mxu0 0
      %990 = vmatpush1.bf16.xpose.msra.mxu0 0
      %991 = vmatprep.subr.bf16.mxu0 0
      %992 = vmatpush1.bf16.xpose.msra.mxu0 0
      %993 = vmatprep.subr.bf16.mxu0 0
      %994 = vmatpush1.bf16.xpose.msra.mxu0 0
      %995 = vmatprep.subr.bf16.mxu0 0
      %996 = vmatpush1.bf16.xpose.msra.mxu0 0
      %997 = vmatprep.subr.bf16.mxu0 0
      %998 = vmatpush1.bf16.xpose.msra.mxu0 0
      %999 = vmatprep.subr.bf16.mxu0 0
      %1000 = vmatpush1.bf16.xpose.msra.mxu0 0
      %1001 = vmatprep.subr.bf16.mxu0 0
      %1002 = vmatpush1.bf16.xpose.msra.mxu0 0
      %1003 = vmatprep.mubr.bf16.mxu0 0
      %1004 = vmatmul.mubr.bf16.gmra.mrb[0].mxu0 %v966
      %v1005 = vpop.f32.mrb[0].mxu0
      %v1006 = vadd.f32 %v487, %v1005
      %v1007 = vpop.f32.mrb[0].mxu0
      %v1008 = vpop.f32.mrb[0].mxu0
      %v1009 = vpop.f32.mrb[0].mxu0
      %1010 = vdwg.mxu0
      %v1011 = vsel %vm489, %v1006, -inf
      %1012 = vmax.xlane.f32.xlu0 %v1011
      %v1013 = vpop.xlane.xlu0 %1012
      %v1014 = vsub.f32 %v1006, %v1013
      %v1015 = vmul.f32 %v1014, 1.442695
      %v1016 = vpow.pop %v1015
      %v1017 = vsel %vm489, %v1016, 0.0
      %1018 = vadd.xlane.f32.xlu0 %v1017
      %v1019 = vpop.xlane.xlu0 %1018
      %v1020 = vrcp.pop %v1019
      %v1021 = vmul.f32 %v1016, %v1020
      %v1022 = vpack.c.bf16 %v1021, %v1021
      %1023 = vrot.lane.b32.xlu0 %v477, 72
      %v1024 = vpop.permute.xlu0 %1023
      %v1026 = vsel %vm489, %v1022, 0
      %v1029 = vsel %vm554, %v1024, 0
      %1031 = vmatprep.subr.bf16.mxu0 0
      %1032 = vmatpush1.bf16.msra.mxu0 %v1029
      %1033 = vmatprep.subr.bf16.mxu0 0
      %1034 = vmatpush1.bf16.msra.mxu0 0
      %1035 = vmatprep.subr.bf16.mxu0 0
      %1036 = vmatpush1.bf16.msra.mxu0 0
      %1037 = vmatprep.subr.bf16.mxu0 0
      %1038 = vmatpush1.bf16.msra.mxu0 0
      %1039 = vmatprep.subr.bf16.mxu0 0
      %1040 = vmatpush1.bf16.msra.mxu0 0
      %1041 = vmatprep.subr.bf16.mxu0 0
      %1042 = vmatpush1.bf16.msra.mxu0 0
      %1043 = vmatprep.subr.bf16.mxu0 0
      %1044 = vmatpush1.bf16.msra.mxu0 0
      %1045 = vmatprep.subr.bf16.mxu0 0
      %1046 = vmatpush1.bf16.msra.mxu0 0
      %1047 = vmatprep.subr.bf16.mxu0 0
      %1048 = vmatpush1.bf16.msra.mxu0 0
      %1049 = vmatprep.subr.bf16.mxu0 0
      %1050 = vmatpush1.bf16.msra.mxu0 0
      %1051 = vmatprep.subr.bf16.mxu0 0
      %1052 = vmatpush1.bf16.msra.mxu0 0
      %1053 = vmatprep.subr.bf16.mxu0 0
      %1054 = vmatpush1.bf16.msra.mxu0 0
      %1055 = vmatprep.subr.bf16.mxu0 0
      %1056 = vmatpush1.bf16.msra.mxu0 0
      %1057 = vmatprep.subr.bf16.mxu0 0
      %1058 = vmatpush1.bf16.msra.mxu0 0
      %1059 = vmatprep.subr.bf16.mxu0 0
      %1060 = vmatpush1.bf16.msra.mxu0 0
      %1061 = vmatprep.subr.bf16.mxu0 0
      %1062 = vmatpush1.bf16.msra.mxu0 0
      %1063 = vmatprep.mubr.bf16.mxu0 0
      %1064 = vmatmul.mubr.bf16.gmra.mrb[0].mxu0 %v1026
      %v1065 = vpop.f32.mrb[0].mxu0
      %v1066 = vadd.f32 0.0, %v1065
      %v1067 = vpop.f32.mrb[0].mxu0
      %v1068 = vpop.f32.mrb[0].mxu0
      %v1069 = vpop.f32.mrb[0].mxu0
      %1070 = vdwg.mxu0
      %v1071 = vpack.c.bf16 %v1066, %v1066
      %v1073 = vsel %vm489, %v1071, 0
      %v1076 = vsel %vm554, %v482, 0
      %1078 = vmatprep.subr.bf16.mxu0 0
      %1079 = vmatpush1.bf16.msra.mxu0 %v1076
      %1080 = vmatprep.subr.bf16.mxu0 0
      %1081 = vmatpush1.bf16.msra.mxu0 0
      %1082 = vmatprep.subr.bf16.mxu0 0
      %1083 = vmatpush1.bf16.msra.mxu0 0
      %1084 = vmatprep.subr.bf16.mxu0 0
      %1085 = vmatpush1.bf16.msra.mxu0 0
      %1086 = vmatprep.subr.bf16.mxu0 0
      %1087 = vmatpush1.bf16.msra.mxu0 0
      %1088 = vmatprep.subr.bf16.mxu0 0
      %1089 = vmatpush1.bf16.msra.mxu0 0
      %1090 = vmatprep.subr.bf16.mxu0 0
      %1091 = vmatpush1.bf16.msra.mxu0 0
      %1092 = vmatprep.subr.bf16.mxu0 0
      %1093 = vmatpush1.bf16.msra.mxu0 0
      %1094 = vmatprep.subr.bf16.mxu0 0
      %1095 = vmatpush1.bf16.msra.mxu0 0
      %1096 = vmatprep.subr.bf16.mxu0 0
      %1097 = vmatpush1.bf16.msra.mxu0 0
      %1098 = vmatprep.subr.bf16.mxu0 0
      %1099 = vmatpush1.bf16.msra.mxu0 0
      %1100 = vmatprep.subr.bf16.mxu0 0
      %1101 = vmatpush1.bf16.msra.mxu0 0
      %1102 = vmatprep.subr.bf16.mxu0 0
      %1103 = vmatpush1.bf16.msra.mxu0 0
      %1104 = vmatprep.subr.bf16.mxu0 0
      %1105 = vmatpush1.bf16.msra.mxu0 0
      %1106 = vmatprep.subr.bf16.mxu0 0
      %1107 = vmatpush1.bf16.msra.mxu0 0
      %1108 = vmatprep.subr.bf16.mxu0 0
      %1109 = vmatpush1.bf16.msra.mxu0 0
      %1110 = vmatprep.mubr.bf16.mxu0 0
      %1111 = vmatmul.mubr.bf16.gmra.mrb[0].mxu0 %v1073
      %v1112 = vpop.f32.mrb[0].mxu0
      %v1113 = vadd.f32 0.0, %v1112
      %v1114 = vpop.f32.mrb[0].mxu0
      %v1115 = vpop.f32.mrb[0].mxu0
      %v1116 = vpop.f32.mrb[0].mxu0
      %1117 = vdwg.mxu0
      %v1118 = vadd.f32 %v960, %v1113
      %v1119 = vld [vmem:[%s7] sm:$0x1]
      %v1120 = vunpack.c.l.bf16 %v1119
      %v1121 = vlaneseq
      %v1122 = vshrl.u32 %v1121, 7
      %v1123 = vsub.s32 0, %v1122
      %v1124 = vrot.slane %v1120, %v1123
      %v1125 = vadd.f32 %v1118, %v1124
      %v1126 = vpack.c.bf16 %v1125, %v1125
      %vm1127 = vcmask 257024
      %1128 = vst.msk [vmem:[%s341] sm:$0xf] %vm1127, %v1126
      %p1129 = scmp.lt.s32.totalorder %s20, 1
      %s1130 = scalar_select %p1129, %s20, 1
      %s1131 = smul.addr %s1130, 4
      %s1132 = scalar_lea.vmem %s9, %s1131
      // Predicated region
      $region57: #{nat_decoder.9} parent=55 // pred_check
        %p1133 = pneg %p237
      $region58: #{nat_decoder.9} parent=55 // pred_check_branch
        %1135 = sbr.rel (%p1133) target = $region60
      $region59: #{nat_decoder.9} parent=55 // pred_region
        _
      $region60: #{nat_decoder.9} parent=55 // pred_fallthru
        _
    $region56: #{nat_decoder.9} parent=5 // pred_fallthru
      _
    %p1136 = scmp.le.s32.totalorder 2, %s15
    // Predicated region
    $region61: #{nat_decoder.9} parent=5 // pred_check
      %p1137 = pneg %p1136
    $region62: #{nat_decoder.9} parent=5 // pred_check_branch
      %1139 = sbr.rel (%p1137) target = $region64
    $region63: #{nat_decoder.9} parent=5 // pred_region
      %s1140 = ssub.s32 %s15, 2
      // Predicated region
      $region65: #{nat_decoder.9} parent=63 // pred_check
        %p1141 = pneg %p243
      $region66: #{nat_decoder.9} parent=63 // pred_check_branch
        %1143 = sbr.rel (%p1141) target = $region68
      $region67: #{nat_decoder.9} parent=63 // pred_region
        %p1144 = scmp.lt.s32.totalorder %s21, 1
        %s1145 = scalar_select %p1144, %s21, 1
        %s1146 = smul.addr %s1145, 4
        %s1147 = scalar_lea.vmem %s9, %s1146
      $region68: #{nat_decoder.9} parent=63 // pred_fallthru
        _
    $region64: #{nat_decoder.9} parent=5 // pred_fallthru
      _
  $region6: #{nat_decoder.9} parent=0 // loop_footer
    %s19 = sadd.s32 1, %s15
  $region7: #{nat_decoder.9} parent=0 // loop_footer_branch
    %14 = sbr.rel target = $region3
  $region8: #{nat_decoder.9} parent=0 // loop_exit
    _

</llo_original>
